<compile_context>
chip_gen: v7x
topology: tpu7x:2x2x1
jax: 0.10.0
libtpu: 0.0.40
codegen_flags: <defaults>
</compile_context>

<pallas_src>
import functools
import math

import jax
import jax.numpy as jnp
from jax import lax
from jax.experimental import pallas as pl
from jax.experimental.pallas import tpu as pltpu

LANE = 128      # f32 vreg lane width
SUBLANE = 8     # f32 vreg sublane count
NEG_INF = -1.0e30


# ----------------------------------------------------------------------------
# Fused kernel: MLP preamble + T-step greedy LSTM decode + vocab projection
# ----------------------------------------------------------------------------
def fused_qgen_kernel(x_ref,                     # (Bp, Rp)        f32
                      w1_ref, w2_ref, w3_ref,    # MLP weights     compute dtype
                      wl_ref,                    # (Vp+3Hp, 4Hp)   stacked LSTM weights
                      wp_ref,                    # (Hp, Vp)        projection
                      bias_ref,                  # (1, H1p+H2p+Hp+8Hp+Vp)  f32 packed biases
                      out_ref):                  # (Bp, T, Vp)     f32
    Bp = x_ref.shape[0]
    T = out_ref.shape[1]
    Hp, Vp = wp_ref.shape
    H1p = w1_ref.shape[1]
    H2p = w2_ref.shape[1]
    G = wl_ref.shape[1]              # == 4*Hp

    # ---- static, lane-aligned slices of the packed bias array ---------------
    o = 0
    b1 = bias_ref[:, o:o + H1p]; o += H1p
    b2 = bias_ref[:, o:o + H2p]; o += H2p
    b3 = bias_ref[:, o:o + Hp];  o += Hp
    bg0 = bias_ref[:, o:o + G];  o += G
    bg1 = bias_ref[:, o:o + G];  o += G
    bp = bias_ref[:, o:o + Vp]

    def mm(a, w):
        # cast activation to the weight dtype (f32 or bf16); accumulate in f32
        return jnp.dot(a.astype(w.dtype), w, preferred_element_type=jnp.float32)

    # ---- MLP preamble: Linear -> ReLU -> Linear -> ReLU -> Linear -----------
    # (Dropout = eval-mode identity)
    h = jnp.maximum(mm(x_ref[...], w1_ref[...]) + b1, 0.0)
    h = jnp.maximum(mm(h, w2_ref[...]) + b2, 0.0)
    processed = mm(h, w3_ref[...]) + b3                         # (Bp, Hp) f32

    # ---- loop-invariant loads (hoisted out of the decode loop) --------------
    W0 = wl_ref[0:Vp + Hp, :]                 # layer-0 stacked [W_ih ; W_hh]
    W1 = wl_ref[Vp + Hp:Vp + 3 * Hp, :]       # layer-1 stacked [W_ih ; W_hh]
    wp = wp_ref[...]
    col = lax.broadcasted_iota(jnp.int32, (Bp, Vp), 1)

    def lstm_cell(xh, c, W, bg):
        # one stacked MXU matmul per cell: [x, h] @ [W_ih ; W_hh] + b
        gates = mm(xh, W) + bg                 # (1,4Hp) bias broadcasts over sublanes
        i_g = jax.nn.sigmoid(gates[:, 0 * Hp:1 * Hp])
        f_g = jax.nn.sigmoid(gates[:, 1 * Hp:2 * Hp])
        g_g = jnp.tanh(gates[:, 2 * Hp:3 * Hp])
        o_g = jax.nn.sigmoid(gates[:, 3 * Hp:4 * Hp])
        c_new = f_g * c + i_g * g_g
        return o_g * jnp.tanh(c_new), c_new

    # Reference input_token = ones(B,1,V); [:,:,1]=1.0 collapses to all-ones.
    # Padded vocab rows of W0 are zero, so the extra ones-lanes are inert.
    xt = jnp.ones((Bp, Vp), jnp.float32)
    h0 = processed
    h1 = processed                             # h0 = stack([processed, processed])
    c0 = jnp.zeros((Bp, Hp), jnp.float32)
    c1 = jnp.zeros((Bp, Hp), jnp.float32)

    # T is a small static constant; full unroll with static store offsets.
    for t in range(T):
        h0, c0 = lstm_cell(jnp.concatenate([xt, h0], axis=1), c0, W0, bg0)
        h1, c1 = lstm_cell(jnp.concatenate([h0, h1], axis=1), c1, W1, bg1)
        logits = mm(h1, wp) + bp                               # (Bp, Vp) f32
        out_ref[:, pl.ds(t, 1), :] = logits[:, None, :]        # lane-dense store
        # greedy argmax -> one-hot feedback (first-occurrence tie-break, like
        # torch.argmax). Pad vocab lanes carry bias -1e30, so they never win.
        mx = jnp.max(logits, axis=1, keepdims=True)
        idx = jnp.min(jnp.where(logits == mx, col, Vp), axis=1, keepdims=True)
        xt = (col == idx).astype(jnp.float32)


# ----------------------------------------------------------------------------
# One-time host-side packing (padding / stacking) of the parameters
# ----------------------------------------------------------------------------
def _round_up(x, m):
    return ((x + m - 1) // m) * m


def _pad2(a, r, c, fill=0.0):
    return jnp.pad(a, ((0, r - a.shape[0]), (0, c - a.shape[1])),
                   constant_values=fill)


def _pad_lstm_w(w, in_p, H, Hp):
    """Pad a (in, 4H) gate-ordered LSTM weight to (in_p, 4Hp), per gate block."""
    in_dim = w.shape[0]
    blocks = [jnp.pad(w[:, k * H:(k + 1) * H],
                      ((0, in_p - in_dim), (0, Hp - H))) for k in range(4)]
    return jnp.concatenate(blocks, axis=1)


def _pad_lstm_b(b, H, Hp):
    """Pad a (1, 4H) gate-ordered LSTM bias to (1, 4Hp), per gate block."""
    blocks = [jnp.pad(b[:, k * H:(k + 1) * H], ((0, 0), (0, Hp - H)))
              for k in range(4)]
    return jnp.concatenate(blocks, axis=1)


def prepare_params(params, compute_dtype=jnp.float32):
    """Pad/stack the raw parameters once (do NOT call per forward pass)."""
    mlp_p, lstm_p, proj_p = params
    (w1, b1), (w2, b2), (w3, b3) = mlp_p
    (wih0, whh0, bl0), (wih1, whh1, bl1) = lstm_p
    wp, bp = proj_p

    R = w1.shape[0]
    H = w3.shape[1]
    V = wp.shape[1]

    Rp = _round_up(R, LANE)
    H1p = _round_up(w1.shape[1], LANE)
    H2p = _round_up(w2.shape[1], LANE)
    Hp = _round_up(H, LANE)
    Vp = _round_up(V, LANE)

    # MLP weights (zero padding is exact: extra rows/cols contribute 0)
    w1_p = _pad2(w1, Rp, H1p).astype(compute_dtype)
    w2_p = _pad2(w2, H1p, H2p).astype(compute_dtype)
    w3_p = _pad2(w3, H2p, Hp).astype(compute_dtype)

    # LSTM: stack [W_ih ; W_hh] per layer, then both layers into one operand
    W0 = jnp.concatenate([_pad_lstm_w(wih0, Vp, H, Hp),
                          _pad_lstm_w(whh0, Hp, H, Hp)], axis=0)   # (Vp+Hp, 4Hp)
    W1 = jnp.concatenate([_pad_lstm_w(wih1, Hp, H, Hp),
                          _pad_lstm_w(whh1, Hp, H, Hp)], axis=0)   # (2Hp, 4Hp)
    wl_p = jnp.concatenate([W0, W1], axis=0).astype(compute_dtype)  # (Vp+3Hp, 4Hp)

    # Projection (vocab-pad bias lanes = -1e30 so argmax ignores them)
    wp_p = _pad2(wp, Hp, Vp).astype(compute_dtype)
    bp_p = jnp.pad(bp, ((0, 0), (0, Vp - V)), constant_values=NEG_INF)

    # All biases packed into one lane-aligned f32 operand
    bias = jnp.concatenate([
        _pad2(b1, 1, H1p), _pad2(b2, 1, H2p), _pad2(b3, 1, Hp),
        _pad_lstm_b(bl0, H, Hp), _pad_lstm_b(bl1, H, Hp), bp_p,
    ], axis=1).astype(jnp.float32)

    return (w1_p, w2_p, w3_p, wl_p, wp_p, bias)


# ----------------------------------------------------------------------------
# Forward wrapper: pad activations, single fused pallas_call, slice back
# ----------------------------------------------------------------------------
def _nbytes(a):
    return math.prod(a.shape) * a.dtype.itemsize


@functools.partial(jax.jit, static_argnums=(2, 3))
def question_generator_forward(reasoning, packed, max_question_length, vocab_size):
    w1_p, w2_p, w3_p, wl_p, wp_p, bias = packed
    B, R = reasoning.shape
    Rp = w1_p.shape[0]
    Hp, Vp = wp_p.shape
    T = max_question_length
    Bp = _round_up(B, SUBLANE)

    x_p = jnp.pad(reasoning.astype(jnp.float32), ((0, Bp - B), (0, Rp - R)))

    # VMEM limit sized to the resident footprint (+2x headroom), not the default
    total_bytes = (_nbytes(x_p) + sum(_nbytes(a) for a in packed)
                   + Bp * T * Vp * 4)
    vmem_limit = min(2 * total_bytes + (2 << 20), 64 << 20)

    out = pl.pallas_call(
        fused_qgen_kernel,
        out_shape=jax.ShapeDtypeStruct((Bp, T, Vp), jnp.float32),
        compiler_params=pltpu.CompilerParams(vmem_limit_bytes=int(vmem_limit)),
    )(x_p, w1_p, w2_p, w3_p, wl_p, wp_p, bias)

    return out[:B, :, :vocab_size]          # (B, T, V) PyTorch convention


# ----------------------------------------------------------------------------
# Parameter construction (deterministic, PyTorch-uniform-ish init, UNPADDED)
# ----------------------------------------------------------------------------
def _uniform(key, shape, fan_in):
    bound = 1.0 / jnp.sqrt(float(fan_in))
    return jax.random.uniform(key, shape, jnp.float32, -bound, bound)


def make_params(key, reasoning_dim, hidden_dims, vocab_size):
    h1, h2 = hidden_dims
    H = hidden_dims[-1]
    keys = jax.random.split(key, 16)
    # MLP: Linear(R,h1) ReLU Dropout Linear(h1,h2) ReLU Dropout Linear(h2,H)
    mlp = (
        (_uniform(keys[0], (reasoning_dim, h1), reasoning_dim),
         _uniform(keys[1], (1, h1), reasoning_dim)),
        (_uniform(keys[2], (h1, h2), h1), _uniform(keys[3], (1, h2), h1)),
        (_uniform(keys[4], (h2, H), h2), _uniform(keys[5], (1, H), h2)),
    )
    # LSTM layer 0: input_size = H (== vocab_size), hidden = H ; layer 1: H -> H
    lstm = (
        (_uniform(keys[6], (vocab_size, 4 * H), H),
         _uniform(keys[7], (H, 4 * H), H),
         _uniform(keys[8], (1, 4 * H), H) + _uniform(keys[9], (1, 4 * H), H)),
        (_uniform(keys[10], (H, 4 * H), H),
         _uniform(keys[11], (H, 4 * H), H),
         _uniform(keys[12], (1, 4 * H), H) + _uniform(keys[13], (1, 4 * H), H)),
    )
    proj = (_uniform(keys[14], (H, vocab_size), H),
            _uniform(keys[15], (1, vocab_size), H))
    return mlp, lstm, proj


# ----------------------------------------------------------------------------
# Pure-JAX reference (for correctness check)
# ----------------------------------------------------------------------------
def reference_forward(reasoning, params, max_question_length):
    mlp_p, lstm_p, proj_p = params
    (w1, b1), (w2, b2), (w3, b3) = mlp_p
    h = jnp.maximum(reasoning @ w1 + b1, 0.0)
    h = jnp.maximum(h @ w2 + b2, 0.0)
    processed = h @ w3 + b3

    (wih0, whh0, b0), (wih1, whh1, b1_) = lstm_p
    wp, bp = proj_p
    B, H = processed.shape
    V = wp.shape[1]

    def cell(x, hh, cc, wih, whh, b):
        g = x @ wih + hh @ whh + b
        i = jax.nn.sigmoid(g[:, :H]); f = jax.nn.sigmoid(g[:, H:2 * H])
        gg = jnp.tanh(g[:, 2 * H:3 * H]); o = jax.nn.sigmoid(g[:, 3 * H:])
        cn = f * cc + i * gg
        return o * jnp.tanh(cn), cn

    x = jnp.ones((B, V), jnp.float32)
    h0, c0 = processed, jnp.zeros_like(processed)
    h1, c1 = processed, jnp.zeros_like(processed)
    outs = []
    for _ in range(max_question_length):
        h0, c0 = cell(x, h0, c0, wih0, whh0, b0)
        h1, c1 = cell(h0, h1, c1, wih1, whh1, b1_)
        logits = h1 @ wp + bp
        outs.append(logits)
        x = jax.nn.one_hot(jnp.argmax(logits, axis=1), V, dtype=jnp.float32)
    return jnp.stack(outs, axis=1)


if __name__ == "__main__":
    # Small shapes consistent with the module: vocab_size must equal hidden_dims[-1].
    batch = 4
    reasoning_dim = 16
    hidden_dims = [32, 32]
    vocab_size = 32
    max_question_length = 8

    key = jax.random.PRNGKey(0)
    pkey, xkey = jax.random.split(key)
    params = make_params(pkey, reasoning_dim, hidden_dims, vocab_size)
    reasoning = jax.random.normal(xkey, (batch, reasoning_dim), jnp.float32)

    # One-time parameter packing (hoisted out of the per-call path).
    packed_f32 = prepare_params(params)                       # exact-parity path
    out = question_generator_forward(reasoning, packed_f32,
                                     max_question_length, vocab_size)
    out = jax.block_until_ready(out)
    assert out.shape == (batch, max_question_length, vocab_size)

    ref = reference_forward(reasoning, params, max_question_length)
    assert jnp.allclose(out, ref, rtol=1e-3, atol=1e-3), "mismatch vs reference"

    # bf16-weight / f32-accumulation path (MXU-native on v5e/v6e/v7x): run once
    # to exercise it; numerics can differ from the f32 reference through the
    # greedy-argmax feedback, so we only check the shape here.
    packed_bf16 = prepare_params(params, compute_dtype=jnp.bfloat16)
    out_bf16 = jax.block_until_ready(
        question_generator_forward(reasoning, packed_bf16,
                                   max_question_length, vocab_size))
    assert out_bf16.shape == (batch, max_question_length, vocab_size)

    print("KERNEL_OK")
</pallas_src>

<mosaic_0001>
module attributes {stable_mosaic.version = 11 : i64} {
  func.func @fused_qgen_kernel(%arg0: memref<8x128xf32, #tpu.memory_space<vmem>>, %arg1: memref<128x128xf32, #tpu.memory_space<vmem>>, %arg2: memref<128x128xf32, #tpu.memory_space<vmem>>, %arg3: memref<128x128xf32, #tpu.memory_space<vmem>>, %arg4: memref<512x512xf32, #tpu.memory_space<vmem>>, %arg5: memref<128x128xf32, #tpu.memory_space<vmem>>, %arg6: memref<1x1536xf32, #tpu.memory_space<vmem>>, %arg7: memref<8x8x128xf32, #tpu.memory_space<vmem>>) attributes {dimension_semantics = [], scalar_prefetch = 0 : i64, scratch_operands = 0 : i64, tpu.core_type = #tpu.core_type<tc>} {
    %c0 = arith.constant 0 : index
    %c0_0 = arith.constant 0 : index
    %0 = vector.load %arg6[%c0, %c0_0] : memref<1x1536xf32, #tpu.memory_space<vmem>>, vector<1x128xf32>
    %c0_1 = arith.constant 0 : index
    %c128 = arith.constant 128 : index
    %1 = vector.load %arg6[%c0_1, %c128] : memref<1x1536xf32, #tpu.memory_space<vmem>>, vector<1x128xf32>
    %c0_2 = arith.constant 0 : index
    %c256 = arith.constant 256 : index
    %2 = vector.load %arg6[%c0_2, %c256] : memref<1x1536xf32, #tpu.memory_space<vmem>>, vector<1x128xf32>
    %c0_3 = arith.constant 0 : index
    %c384 = arith.constant 384 : index
    %3 = vector.load %arg6[%c0_3, %c384] : memref<1x1536xf32, #tpu.memory_space<vmem>>, vector<1x512xf32>
    %c0_4 = arith.constant 0 : index
    %c896 = arith.constant 896 : index
    %4 = vector.load %arg6[%c0_4, %c896] : memref<1x1536xf32, #tpu.memory_space<vmem>>, vector<1x512xf32>
    %c0_5 = arith.constant 0 : index
    %c1408 = arith.constant 1408 : index
    %5 = vector.load %arg6[%c0_5, %c1408] : memref<1x1536xf32, #tpu.memory_space<vmem>>, vector<1x128xf32>
    %c0_6 = arith.constant 0 : index
    %c0_7 = arith.constant 0 : index
    %6 = vector.load %arg0[%c0_6, %c0_7] : memref<8x128xf32, #tpu.memory_space<vmem>>, vector<8x128xf32>
    %c0_8 = arith.constant 0 : index
    %c0_9 = arith.constant 0 : index
    %7 = vector.load %arg1[%c0_8, %c0_9] : memref<128x128xf32, #tpu.memory_space<vmem>>, vector<128x128xf32>
    %cst = arith.constant dense<0.000000e+00> : vector<8x128xf32>
    %8 = tpu.matmul %6, %7, %cst {dimension_numbers = #tpu.dot_dimension_numbers<[1], [0], [0], [1], [0, 0, 1, 1], [], []>} : vector<8x128xf32>, vector<128x128xf32>, vector<8x128xf32> -> vector<8x128xf32>
    %9 = vector.broadcast %0 : vector<1x128xf32> to vector<8x128xf32>
    %10 = arith.addf %8, %9 : vector<8x128xf32>
    %cst_10 = arith.constant 0.000000e+00 : f32
    %11 = vector.broadcast %cst_10 : f32 to vector<8x128xf32>
    %12 = arith.maximumf %10, %11 : vector<8x128xf32>
    %c0_11 = arith.constant 0 : index
    %c0_12 = arith.constant 0 : index
    %13 = vector.load %arg2[%c0_11, %c0_12] : memref<128x128xf32, #tpu.memory_space<vmem>>, vector<128x128xf32>
    %cst_13 = arith.constant dense<0.000000e+00> : vector<8x128xf32>
    %14 = tpu.matmul %12, %13, %cst_13 {dimension_numbers = #tpu.dot_dimension_numbers<[1], [0], [0], [1], [0, 0, 1, 1], [], []>} : vector<8x128xf32>, vector<128x128xf32>, vector<8x128xf32> -> vector<8x128xf32>
    %15 = vector.broadcast %1 : vector<1x128xf32> to vector<8x128xf32>
    %16 = arith.addf %14, %15 : vector<8x128xf32>
    %cst_14 = arith.constant 0.000000e+00 : f32
    %17 = vector.broadcast %cst_14 : f32 to vector<8x128xf32>
    %18 = arith.maximumf %16, %17 : vector<8x128xf32>
    %c0_15 = arith.constant 0 : index
    %c0_16 = arith.constant 0 : index
    %19 = vector.load %arg3[%c0_15, %c0_16] : memref<128x128xf32, #tpu.memory_space<vmem>>, vector<128x128xf32>
    %cst_17 = arith.constant dense<0.000000e+00> : vector<8x128xf32>
    %20 = tpu.matmul %18, %19, %cst_17 {dimension_numbers = #tpu.dot_dimension_numbers<[1], [0], [0], [1], [0, 0, 1, 1], [], []>} : vector<8x128xf32>, vector<128x128xf32>, vector<8x128xf32> -> vector<8x128xf32>
    %21 = vector.broadcast %2 : vector<1x128xf32> to vector<8x128xf32>
    %22 = arith.addf %20, %21 : vector<8x128xf32>
    %c0_18 = arith.constant 0 : index
    %c0_19 = arith.constant 0 : index
    %23 = vector.load %arg4[%c0_18, %c0_19] : memref<512x512xf32, #tpu.memory_space<vmem>>, vector<256x512xf32>
    %c256_20 = arith.constant 256 : index
    %c0_21 = arith.constant 0 : index
    %24 = vector.load %arg4[%c256_20, %c0_21] : memref<512x512xf32, #tpu.memory_space<vmem>>, vector<256x512xf32>
    %c0_22 = arith.constant 0 : index
    %c0_23 = arith.constant 0 : index
    %25 = vector.load %arg5[%c0_22, %c0_23] : memref<128x128xf32, #tpu.memory_space<vmem>>, vector<128x128xf32>
    %26 = tpu.iota {dimensions = array<i32: 1>} : vector<8x128xi32>
    %cst_24 = arith.constant 1.000000e+00 : f32
    %27 = vector.broadcast %cst_24 : f32 to vector<8x128xf32>
    %cst_25 = arith.constant 0.000000e+00 : f32
    %28 = vector.broadcast %cst_25 : f32 to vector<8x128xf32>
    %cst_26 = arith.constant 0.000000e+00 : f32
    %29 = vector.broadcast %cst_26 : f32 to vector<8x128xf32>
    %30 = tpu.concatenate %27, %22 in 1 : vector<8x128xf32>, vector<8x128xf32> -> vector<8x256xf32>
    %cst_27 = arith.constant dense<0.000000e+00> : vector<8x512xf32>
    %31 = tpu.matmul %30, %23, %cst_27 {dimension_numbers = #tpu.dot_dimension_numbers<[1], [0], [0], [1], [0, 0, 1, 1], [], []>} : vector<8x256xf32>, vector<256x512xf32>, vector<8x512xf32> -> vector<8x512xf32>
    %32 = vector.broadcast %3 : vector<1x512xf32> to vector<8x512xf32>
    %33 = arith.addf %31, %32 : vector<8x512xf32>
    %34 = vector.extract_strided_slice %33 {offsets = [0, 0], sizes = [8, 128], strides = [1, 1]} : vector<8x512xf32> to vector<8x128xf32>
    %35 = arith.negf %34 : vector<8x128xf32>
    %36 = math.exp %35 : vector<8x128xf32>
    %cst_28 = arith.constant 1.000000e+00 : f32
    %37 = vector.broadcast %cst_28 : f32 to vector<8x128xf32>
    %38 = arith.addf %37, %36 : vector<8x128xf32>
    %39 = arith.divf %37, %38 : vector<8x128xf32>
    %40 = vector.extract_strided_slice %33 {offsets = [0, 128], sizes = [8, 128], strides = [1, 1]} : vector<8x512xf32> to vector<8x128xf32>
    %41 = arith.negf %40 : vector<8x128xf32>
    %42 = math.exp %41 : vector<8x128xf32>
    %cst_29 = arith.constant 1.000000e+00 : f32
    %43 = vector.broadcast %cst_29 : f32 to vector<8x128xf32>
    %44 = arith.addf %43, %42 : vector<8x128xf32>
    %45 = arith.divf %43, %44 : vector<8x128xf32>
    %46 = vector.extract_strided_slice %33 {offsets = [0, 256], sizes = [8, 128], strides = [1, 1]} : vector<8x512xf32> to vector<8x128xf32>
    %47 = math.tanh %46 : vector<8x128xf32>
    %48 = vector.extract_strided_slice %33 {offsets = [0, 384], sizes = [8, 128], strides = [1, 1]} : vector<8x512xf32> to vector<8x128xf32>
    %49 = arith.negf %48 : vector<8x128xf32>
    %50 = math.exp %49 : vector<8x128xf32>
    %cst_30 = arith.constant 1.000000e+00 : f32
    %51 = vector.broadcast %cst_30 : f32 to vector<8x128xf32>
    %52 = arith.addf %51, %50 : vector<8x128xf32>
    %53 = arith.divf %51, %52 : vector<8x128xf32>
    %54 = arith.mulf %45, %28 : vector<8x128xf32>
    %55 = arith.mulf %39, %47 : vector<8x128xf32>
    %56 = arith.addf %54, %55 : vector<8x128xf32>
    %57 = math.tanh %56 : vector<8x128xf32>
    %58 = arith.mulf %53, %57 : vector<8x128xf32>
    %59 = tpu.concatenate %58, %22 in 1 : vector<8x128xf32>, vector<8x128xf32> -> vector<8x256xf32>
    %cst_31 = arith.constant dense<0.000000e+00> : vector<8x512xf32>
    %60 = tpu.matmul %59, %24, %cst_31 {dimension_numbers = #tpu.dot_dimension_numbers<[1], [0], [0], [1], [0, 0, 1, 1], [], []>} : vector<8x256xf32>, vector<256x512xf32>, vector<8x512xf32> -> vector<8x512xf32>
    %61 = vector.broadcast %4 : vector<1x512xf32> to vector<8x512xf32>
    %62 = arith.addf %60, %61 : vector<8x512xf32>
    %63 = vector.extract_strided_slice %62 {offsets = [0, 0], sizes = [8, 128], strides = [1, 1]} : vector<8x512xf32> to vector<8x128xf32>
    %64 = arith.negf %63 : vector<8x128xf32>
    %65 = math.exp %64 : vector<8x128xf32>
    %cst_32 = arith.constant 1.000000e+00 : f32
    %66 = vector.broadcast %cst_32 : f32 to vector<8x128xf32>
    %67 = arith.addf %66, %65 : vector<8x128xf32>
    %68 = arith.divf %66, %67 : vector<8x128xf32>
    %69 = vector.extract_strided_slice %62 {offsets = [0, 128], sizes = [8, 128], strides = [1, 1]} : vector<8x512xf32> to vector<8x128xf32>
    %70 = arith.negf %69 : vector<8x128xf32>
    %71 = math.exp %70 : vector<8x128xf32>
    %cst_33 = arith.constant 1.000000e+00 : f32
    %72 = vector.broadcast %cst_33 : f32 to vector<8x128xf32>
    %73 = arith.addf %72, %71 : vector<8x128xf32>
    %74 = arith.divf %72, %73 : vector<8x128xf32>
    %75 = vector.extract_strided_slice %62 {offsets = [0, 256], sizes = [8, 128], strides = [1, 1]} : vector<8x512xf32> to vector<8x128xf32>
    %76 = math.tanh %75 : vector<8x128xf32>
    %77 = vector.extract_strided_slice %62 {offsets = [0, 384], sizes = [8, 128], strides = [1, 1]} : vector<8x512xf32> to vector<8x128xf32>
    %78 = arith.negf %77 : vector<8x128xf32>
    %79 = math.exp %78 : vector<8x128xf32>
    %cst_34 = arith.constant 1.000000e+00 : f32
    %80 = vector.broadcast %cst_34 : f32 to vector<8x128xf32>
    %81 = arith.addf %80, %79 : vector<8x128xf32>
    %82 = arith.divf %80, %81 : vector<8x128xf32>
    %83 = arith.mulf %74, %29 : vector<8x128xf32>
    %84 = arith.mulf %68, %76 : vector<8x128xf32>
    %85 = arith.addf %83, %84 : vector<8x128xf32>
    %86 = math.tanh %85 : vector<8x128xf32>
    %87 = arith.mulf %82, %86 : vector<8x128xf32>
    %cst_35 = arith.constant dense<0.000000e+00> : vector<8x128xf32>
    %88 = tpu.matmul %87, %25, %cst_35 {dimension_numbers = #tpu.dot_dimension_numbers<[1], [0], [0], [1], [0, 0, 1, 1], [], []>} : vector<8x128xf32>, vector<128x128xf32>, vector<8x128xf32> -> vector<8x128xf32>
    %89 = vector.broadcast %5 : vector<1x128xf32> to vector<8x128xf32>
    %90 = arith.addf %88, %89 : vector<8x128xf32>
    %91 = vector.shape_cast %90 : vector<8x128xf32> to vector<8x1x128xf32>
    %c0_36 = arith.constant 0 : index
    %c0_37 = arith.constant 0 : index
    %c0_38 = arith.constant 0 : index
    %92 = vector.load %arg7[%c0_36, %c0_37, %c0_38] : memref<8x8x128xf32, #tpu.memory_space<vmem>>, vector<8x1x128xf32>
    tpu.vector_store %arg7[%c0_36, %c0_37, %c0_38], %91 {strides = array<i32>} : memref<8x8x128xf32, #tpu.memory_space<vmem>>, vector<8x1x128xf32>,
    %cst_39 = arith.constant dense<0xFF800000> : vector<8xf32>
    %93 = vector.multi_reduction <maximumf>, %90, %cst_39 [1] : vector<8x128xf32> to vector<8xf32>
    %94 = vector.shape_cast %93 : vector<8xf32> to vector<8x1xf32>
    %95 = vector.broadcast %94 : vector<8x1xf32> to vector<8x128xf32>
    %96 = arith.cmpf oeq, %90, %95 : vector<8x128xf32>
    %c128_i32 = arith.constant 128 : i32
    %97 = vector.broadcast %c128_i32 : i32 to vector<8x128xi32>
    %98 = arith.select %96, %26, %97 : vector<8x128xi1>, vector<8x128xi32>
    %cst_40 = arith.constant dense<2147483647> : vector<8xi32>
    %99 = vector.multi_reduction <minsi>, %98, %cst_40 [1] : vector<8x128xi32> to vector<8xi32>
    %100 = vector.shape_cast %99 : vector<8xi32> to vector<8x1xi32>
    %101 = vector.broadcast %100 : vector<8x1xi32> to vector<8x128xi32>
    %102 = arith.cmpi eq, %26, %101 : vector<8x128xi32>
    %103 = arith.extui %102 : vector<8x128xi1> to vector<8x128xi32>
    %104 = arith.sitofp %103 : vector<8x128xi32> to vector<8x128xf32>
    %105 = tpu.concatenate %104, %58 in 1 : vector<8x128xf32>, vector<8x128xf32> -> vector<8x256xf32>
    %cst_41 = arith.constant dense<0.000000e+00> : vector<8x512xf32>
    %106 = tpu.matmul %105, %23, %cst_41 {dimension_numbers = #tpu.dot_dimension_numbers<[1], [0], [0], [1], [0, 0, 1, 1], [], []>} : vector<8x256xf32>, vector<256x512xf32>, vector<8x512xf32> -> vector<8x512xf32>
    %107 = vector.broadcast %3 : vector<1x512xf32> to vector<8x512xf32>
    %108 = arith.addf %106, %107 : vector<8x512xf32>
    %109 = vector.extract_strided_slice %108 {offsets = [0, 0], sizes = [8, 128], strides = [1, 1]} : vector<8x512xf32> to vector<8x128xf32>
    %110 = arith.negf %109 : vector<8x128xf32>
    %111 = math.exp %110 : vector<8x128xf32>
    %cst_42 = arith.constant 1.000000e+00 : f32
    %112 = vector.broadcast %cst_42 : f32 to vector<8x128xf32>
    %113 = arith.addf %112, %111 : vector<8x128xf32>
    %114 = arith.divf %112, %113 : vector<8x128xf32>
    %115 = vector.extract_strided_slice %108 {offsets = [0, 128], sizes = [8, 128], strides = [1, 1]} : vector<8x512xf32> to vector<8x128xf32>
    %116 = arith.negf %115 : vector<8x128xf32>
    %117 = math.exp %116 : vector<8x128xf32>
    %cst_43 = arith.constant 1.000000e+00 : f32
    %118 = vector.broadcast %cst_43 : f32 to vector<8x128xf32>
    %119 = arith.addf %118, %117 : vector<8x128xf32>
    %120 = arith.divf %118, %119 : vector<8x128xf32>
    %121 = vector.extract_strided_slice %108 {offsets = [0, 256], sizes = [8, 128], strides = [1, 1]} : vector<8x512xf32> to vector<8x128xf32>
    %122 = math.tanh %121 : vector<8x128xf32>
    %123 = vector.extract_strided_slice %108 {offsets = [0, 384], sizes = [8, 128], strides = [1, 1]} : vector<8x512xf32> to vector<8x128xf32>
    %124 = arith.negf %123 : vector<8x128xf32>
    %125 = math.exp %124 : vector<8x128xf32>
    %cst_44 = arith.constant 1.000000e+00 : f32
    %126 = vector.broadcast %cst_44 : f32 to vector<8x128xf32>
    %127 = arith.addf %126, %125 : vector<8x128xf32>
    %128 = arith.divf %126, %127 : vector<8x128xf32>
    %129 = arith.mulf %120, %56 : vector<8x128xf32>
    %130 = arith.mulf %114, %122 : vector<8x128xf32>
    %131 = arith.addf %129, %130 : vector<8x128xf32>
    %132 = math.tanh %131 : vector<8x128xf32>
    %133 = arith.mulf %128, %132 : vector<8x128xf32>
    %134 = tpu.concatenate %133, %87 in 1 : vector<8x128xf32>, vector<8x128xf32> -> vector<8x256xf32>
    %cst_45 = arith.constant dense<0.000000e+00> : vector<8x512xf32>
    %135 = tpu.matmul %134, %24, %cst_45 {dimension_numbers = #tpu.dot_dimension_numbers<[1], [0], [0], [1], [0, 0, 1, 1], [], []>} : vector<8x256xf32>, vector<256x512xf32>, vector<8x512xf32> -> vector<8x512xf32>
    %136 = vector.broadcast %4 : vector<1x512xf32> to vector<8x512xf32>
    %137 = arith.addf %135, %136 : vector<8x512xf32>
    %138 = vector.extract_strided_slice %137 {offsets = [0, 0], sizes = [8, 128], strides = [1, 1]} : vector<8x512xf32> to vector<8x128xf32>
    %139 = arith.negf %138 : vector<8x128xf32>
    %140 = math.exp %139 : vector<8x128xf32>
    %cst_46 = arith.constant 1.000000e+00 : f32
    %141 = vector.broadcast %cst_46 : f32 to vector<8x128xf32>
    %142 = arith.addf %141, %140 : vector<8x128xf32>
    %143 = arith.divf %141, %142 : vector<8x128xf32>
    %144 = vector.extract_strided_slice %137 {offsets = [0, 128], sizes = [8, 128], strides = [1, 1]} : vector<8x512xf32> to vector<8x128xf32>
    %145 = arith.negf %144 : vector<8x128xf32>
    %146 = math.exp %145 : vector<8x128xf32>
    %cst_47 = arith.constant 1.000000e+00 : f32
    %147 = vector.broadcast %cst_47 : f32 to vector<8x128xf32>
    %148 = arith.addf %147, %146 : vector<8x128xf32>
    %149 = arith.divf %147, %148 : vector<8x128xf32>
    %150 = vector.extract_strided_slice %137 {offsets = [0, 256], sizes = [8, 128], strides = [1, 1]} : vector<8x512xf32> to vector<8x128xf32>
    %151 = math.tanh %150 : vector<8x128xf32>
    %152 = vector.extract_strided_slice %137 {offsets = [0, 384], sizes = [8, 128], strides = [1, 1]} : vector<8x512xf32> to vector<8x128xf32>
    %153 = arith.negf %152 : vector<8x128xf32>
    %154 = math.exp %153 : vector<8x128xf32>
    %cst_48 = arith.constant 1.000000e+00 : f32
    %155 = vector.broadcast %cst_48 : f32 to vector<8x128xf32>
    %156 = arith.addf %155, %154 : vector<8x128xf32>
    %157 = arith.divf %155, %156 : vector<8x128xf32>
    %158 = arith.mulf %149, %85 : vector<8x128xf32>
    %159 = arith.mulf %143, %151 : vector<8x128xf32>
    %160 = arith.addf %158, %159 : vector<8x128xf32>
    %161 = math.tanh %160 : vector<8x128xf32>
    %162 = arith.mulf %157, %161 : vector<8x128xf32>
    %cst_49 = arith.constant dense<0.000000e+00> : vector<8x128xf32>
    %163 = tpu.matmul %162, %25, %cst_49 {dimension_numbers = #tpu.dot_dimension_numbers<[1], [0], [0], [1], [0, 0, 1, 1], [], []>} : vector<8x128xf32>, vector<128x128xf32>, vector<8x128xf32> -> vector<8x128xf32>
    %164 = vector.broadcast %5 : vector<1x128xf32> to vector<8x128xf32>
    %165 = arith.addf %163, %164 : vector<8x128xf32>
    %166 = vector.shape_cast %165 : vector<8x128xf32> to vector<8x1x128xf32>
    %c0_50 = arith.constant 0 : index
    %c1 = arith.constant 1 : index
    %c0_51 = arith.constant 0 : index
    %167 = vector.load %arg7[%c0_50, %c1, %c0_51] : memref<8x8x128xf32, #tpu.memory_space<vmem>>, vector<8x1x128xf32>
    tpu.vector_store %arg7[%c0_50, %c1, %c0_51], %166 {strides = array<i32>} : memref<8x8x128xf32, #tpu.memory_space<vmem>>, vector<8x1x128xf32>,
    %cst_52 = arith.constant dense<0xFF800000> : vector<8xf32>
    %168 = vector.multi_reduction <maximumf>, %165, %cst_52 [1] : vector<8x128xf32> to vector<8xf32>
    %169 = vector.shape_cast %168 : vector<8xf32> to vector<8x1xf32>
    %170 = vector.broadcast %169 : vector<8x1xf32> to vector<8x128xf32>
    %171 = arith.cmpf oeq, %165, %170 : vector<8x128xf32>
    %c128_i32_53 = arith.constant 128 : i32
    %172 = vector.broadcast %c128_i32_53 : i32 to vector<8x128xi32>
    %173 = arith.select %171, %26, %172 : vector<8x128xi1>, vector<8x128xi32>
    %cst_54 = arith.constant dense<2147483647> : vector<8xi32>
    %174 = vector.multi_reduction <minsi>, %173, %cst_54 [1] : vector<8x128xi32> to vector<8xi32>
    %175 = vector.shape_cast %174 : vector<8xi32> to vector<8x1xi32>
    %176 = vector.broadcast %175 : vector<8x1xi32> to vector<8x128xi32>
    %177 = arith.cmpi eq, %26, %176 : vector<8x128xi32>
    %178 = arith.extui %177 : vector<8x128xi1> to vector<8x128xi32>
    %179 = arith.sitofp %178 : vector<8x128xi32> to vector<8x128xf32>
    %180 = tpu.concatenate %179, %133 in 1 : vector<8x128xf32>, vector<8x128xf32> -> vector<8x256xf32>
    %cst_55 = arith.constant dense<0.000000e+00> : vector<8x512xf32>
    %181 = tpu.matmul %180, %23, %cst_55 {dimension_numbers = #tpu.dot_dimension_numbers<[1], [0], [0], [1], [0, 0, 1, 1], [], []>} : vector<8x256xf32>, vector<256x512xf32>, vector<8x512xf32> -> vector<8x512xf32>
    %182 = vector.broadcast %3 : vector<1x512xf32> to vector<8x512xf32>
    %183 = arith.addf %181, %182 : vector<8x512xf32>
    %184 = vector.extract_strided_slice %183 {offsets = [0, 0], sizes = [8, 128], strides = [1, 1]} : vector<8x512xf32> to vector<8x128xf32>
    %185 = arith.negf %184 : vector<8x128xf32>
    %186 = math.exp %185 : vector<8x128xf32>
    %cst_56 = arith.constant 1.000000e+00 : f32
    %187 = vector.broadcast %cst_56 : f32 to vector<8x128xf32>
    %188 = arith.addf %187, %186 : vector<8x128xf32>
    %189 = arith.divf %187, %188 : vector<8x128xf32>
    %190 = vector.extract_strided_slice %183 {offsets = [0, 128], sizes = [8, 128], strides = [1, 1]} : vector<8x512xf32> to vector<8x128xf32>
    %191 = arith.negf %190 : vector<8x128xf32>
    %192 = math.exp %191 : vector<8x128xf32>
    %cst_57 = arith.constant 1.000000e+00 : f32
    %193 = vector.broadcast %cst_57 : f32 to vector<8x128xf32>
    %194 = arith.addf %193, %192 : vector<8x128xf32>
    %195 = arith.divf %193, %194 : vector<8x128xf32>
    %196 = vector.extract_strided_slice %183 {offsets = [0, 256], sizes = [8, 128], strides = [1, 1]} : vector<8x512xf32> to vector<8x128xf32>
    %197 = math.tanh %196 : vector<8x128xf32>
    %198 = vector.extract_strided_slice %183 {offsets = [0, 384], sizes = [8, 128], strides = [1, 1]} : vector<8x512xf32> to vector<8x128xf32>
    %199 = arith.negf %198 : vector<8x128xf32>
    %200 = math.exp %199 : vector<8x128xf32>
    %cst_58 = arith.constant 1.000000e+00 : f32
    %201 = vector.broadcast %cst_58 : f32 to vector<8x128xf32>
    %202 = arith.addf %201, %200 : vector<8x128xf32>
    %203 = arith.divf %201, %202 : vector<8x128xf32>
    %204 = arith.mulf %195, %131 : vector<8x128xf32>
    %205 = arith.mulf %189, %197 : vector<8x128xf32>
    %206 = arith.addf %204, %205 : vector<8x128xf32>
    %207 = math.tanh %206 : vector<8x128xf32>
    %208 = arith.mulf %203, %207 : vector<8x128xf32>
    %209 = tpu.concatenate %208, %162 in 1 : vector<8x128xf32>, vector<8x128xf32> -> vector<8x256xf32>
    %cst_59 = arith.constant dense<0.000000e+00> : vector<8x512xf32>
    %210 = tpu.matmul %209, %24, %cst_59 {dimension_numbers = #tpu.dot_dimension_numbers<[1], [0], [0], [1], [0, 0, 1, 1], [], []>} : vector<8x256xf32>, vector<256x512xf32>, vector<8x512xf32> -> vector<8x512xf32>
    %211 = vector.broadcast %4 : vector<1x512xf32> to vector<8x512xf32>
    %212 = arith.addf %210, %211 : vector<8x512xf32>
    %213 = vector.extract_strided_slice %212 {offsets = [0, 0], sizes = [8, 128], strides = [1, 1]} : vector<8x512xf32> to vector<8x128xf32>
    %214 = arith.negf %213 : vector<8x128xf32>
    %215 = math.exp %214 : vector<8x128xf32>
    %cst_60 = arith.constant 1.000000e+00 : f32
    %216 = vector.broadcast %cst_60 : f32 to vector<8x128xf32>
    %217 = arith.addf %216, %215 : vector<8x128xf32>
    %218 = arith.divf %216, %217 : vector<8x128xf32>
    %219 = vector.extract_strided_slice %212 {offsets = [0, 128], sizes = [8, 128], strides = [1, 1]} : vector<8x512xf32> to vector<8x128xf32>
    %220 = arith.negf %219 : vector<8x128xf32>
    %221 = math.exp %220 : vector<8x128xf32>
    %cst_61 = arith.constant 1.000000e+00 : f32
    %222 = vector.broadcast %cst_61 : f32 to vector<8x128xf32>
    %223 = arith.addf %222, %221 : vector<8x128xf32>
    %224 = arith.divf %222, %223 : vector<8x128xf32>
    %225 = vector.extract_strided_slice %212 {offsets = [0, 256], sizes = [8, 128], strides = [1, 1]} : vector<8x512xf32> to vector<8x128xf32>
    %226 = math.tanh %225 : vector<8x128xf32>
    %227 = vector.extract_strided_slice %212 {offsets = [0, 384], sizes = [8, 128], strides = [1, 1]} : vector<8x512xf32> to vector<8x128xf32>
    %228 = arith.negf %227 : vector<8x128xf32>
    %229 = math.exp %228 : vector<8x128xf32>
    %cst_62 = arith.constant 1.000000e+00 : f32
    %230 = vector.broadcast %cst_62 : f32 to vector<8x128xf32>
    %231 = arith.addf %230, %229 : vector<8x128xf32>
    %232 = arith.divf %230, %231 : vector<8x128xf32>
    %233 = arith.mulf %224, %160 : vector<8x128xf32>
    %234 = arith.mulf %218, %226 : vector<8x128xf32>
    %235 = arith.addf %233, %234 : vector<8x128xf32>
    %236 = math.tanh %235 : vector<8x128xf32>
    %237 = arith.mulf %232, %236 : vector<8x128xf32>
    %cst_63 = arith.constant dense<0.000000e+00> : vector<8x128xf32>
    %238 = tpu.matmul %237, %25, %cst_63 {dimension_numbers = #tpu.dot_dimension_numbers<[1], [0], [0], [1], [0, 0, 1, 1], [], []>} : vector<8x128xf32>, vector<128x128xf32>, vector<8x128xf32> -> vector<8x128xf32>
    %239 = vector.broadcast %5 : vector<1x128xf32> to vector<8x128xf32>
    %240 = arith.addf %238, %239 : vector<8x128xf32>
    %241 = vector.shape_cast %240 : vector<8x128xf32> to vector<8x1x128xf32>
    %c0_64 = arith.constant 0 : index
    %c2 = arith.constant 2 : index
    %c0_65 = arith.constant 0 : index
    %242 = vector.load %arg7[%c0_64, %c2, %c0_65] : memref<8x8x128xf32, #tpu.memory_space<vmem>>, vector<8x1x128xf32>
    tpu.vector_store %arg7[%c0_64, %c2, %c0_65], %241 {strides = array<i32>} : memref<8x8x128xf32, #tpu.memory_space<vmem>>, vector<8x1x128xf32>,
    %cst_66 = arith.constant dense<0xFF800000> : vector<8xf32>
    %243 = vector.multi_reduction <maximumf>, %240, %cst_66 [1] : vector<8x128xf32> to vector<8xf32>
    %244 = vector.shape_cast %243 : vector<8xf32> to vector<8x1xf32>
    %245 = vector.broadcast %244 : vector<8x1xf32> to vector<8x128xf32>
    %246 = arith.cmpf oeq, %240, %245 : vector<8x128xf32>
    %c128_i32_67 = arith.constant 128 : i32
    %247 = vector.broadcast %c128_i32_67 : i32 to vector<8x128xi32>
    %248 = arith.select %246, %26, %247 : vector<8x128xi1>, vector<8x128xi32>
    %cst_68 = arith.constant dense<2147483647> : vector<8xi32>
    %249 = vector.multi_reduction <minsi>, %248, %cst_68 [1] : vector<8x128xi32> to vector<8xi32>
    %250 = vector.shape_cast %249 : vector<8xi32> to vector<8x1xi32>
    %251 = vector.broadcast %250 : vector<8x1xi32> to vector<8x128xi32>
    %252 = arith.cmpi eq, %26, %251 : vector<8x128xi32>
    %253 = arith.extui %252 : vector<8x128xi1> to vector<8x128xi32>
    %254 = arith.sitofp %253 : vector<8x128xi32> to vector<8x128xf32>
    %255 = tpu.concatenate %254, %208 in 1 : vector<8x128xf32>, vector<8x128xf32> -> vector<8x256xf32>
    %cst_69 = arith.constant dense<0.000000e+00> : vector<8x512xf32>
    %256 = tpu.matmul %255, %23, %cst_69 {dimension_numbers = #tpu.dot_dimension_numbers<[1], [0], [0], [1], [0, 0, 1, 1], [], []>} : vector<8x256xf32>, vector<256x512xf32>, vector<8x512xf32> -> vector<8x512xf32>
    %257 = vector.broadcast %3 : vector<1x512xf32> to vector<8x512xf32>
    %258 = arith.addf %256, %257 : vector<8x512xf32>
    %259 = vector.extract_strided_slice %258 {offsets = [0, 0], sizes = [8, 128], strides = [1, 1]} : vector<8x512xf32> to vector<8x128xf32>
    %260 = arith.negf %259 : vector<8x128xf32>
    %261 = math.exp %260 : vector<8x128xf32>
    %cst_70 = arith.constant 1.000000e+00 : f32
    %262 = vector.broadcast %cst_70 : f32 to vector<8x128xf32>
    %263 = arith.addf %262, %261 : vector<8x128xf32>
    %264 = arith.divf %262, %263 : vector<8x128xf32>
    %265 = vector.extract_strided_slice %258 {offsets = [0, 128], sizes = [8, 128], strides = [1, 1]} : vector<8x512xf32> to vector<8x128xf32>
    %266 = arith.negf %265 : vector<8x128xf32>
    %267 = math.exp %266 : vector<8x128xf32>
    %cst_71 = arith.constant 1.000000e+00 : f32
    %268 = vector.broadcast %cst_71 : f32 to vector<8x128xf32>
    %269 = arith.addf %268, %267 : vector<8x128xf32>
    %270 = arith.divf %268, %269 : vector<8x128xf32>
    %271 = vector.extract_strided_slice %258 {offsets = [0, 256], sizes = [8, 128], strides = [1, 1]} : vector<8x512xf32> to vector<8x128xf32>
    %272 = math.tanh %271 : vector<8x128xf32>
    %273 = vector.extract_strided_slice %258 {offsets = [0, 384], sizes = [8, 128], strides = [1, 1]} : vector<8x512xf32> to vector<8x128xf32>
    %274 = arith.negf %273 : vector<8x128xf32>
    %275 = math.exp %274 : vector<8x128xf32>
    %cst_72 = arith.constant 1.000000e+00 : f32
    %276 = vector.broadcast %cst_72 : f32 to vector<8x128xf32>
    %277 = arith.addf %276, %275 : vector<8x128xf32>
    %278 = arith.divf %276, %277 : vector<8x128xf32>
    %279 = arith.mulf %270, %206 : vector<8x128xf32>
    %280 = arith.mulf %264, %272 : vector<8x128xf32>
    %281 = arith.addf %279, %280 : vector<8x128xf32>
    %282 = math.tanh %281 : vector<8x128xf32>
    %283 = arith.mulf %278, %282 : vector<8x128xf32>
    %284 = tpu.concatenate %283, %237 in 1 : vector<8x128xf32>, vector<8x128xf32> -> vector<8x256xf32>
    %cst_73 = arith.constant dense<0.000000e+00> : vector<8x512xf32>
    %285 = tpu.matmul %284, %24, %cst_73 {dimension_numbers = #tpu.dot_dimension_numbers<[1], [0], [0], [1], [0, 0, 1, 1], [], []>} : vector<8x256xf32>, vector<256x512xf32>, vector<8x512xf32> -> vector<8x512xf32>
    %286 = vector.broadcast %4 : vector<1x512xf32> to vector<8x512xf32>
    %287 = arith.addf %285, %286 : vector<8x512xf32>
    %288 = vector.extract_strided_slice %287 {offsets = [0, 0], sizes = [8, 128], strides = [1, 1]} : vector<8x512xf32> to vector<8x128xf32>
    %289 = arith.negf %288 : vector<8x128xf32>
    %290 = math.exp %289 : vector<8x128xf32>
    %cst_74 = arith.constant 1.000000e+00 : f32
    %291 = vector.broadcast %cst_74 : f32 to vector<8x128xf32>
    %292 = arith.addf %291, %290 : vector<8x128xf32>
    %293 = arith.divf %291, %292 : vector<8x128xf32>
    %294 = vector.extract_strided_slice %287 {offsets = [0, 128], sizes = [8, 128], strides = [1, 1]} : vector<8x512xf32> to vector<8x128xf32>
    %295 = arith.negf %294 : vector<8x128xf32>
    %296 = math.exp %295 : vector<8x128xf32>
    %cst_75 = arith.constant 1.000000e+00 : f32
    %297 = vector.broadcast %cst_75 : f32 to vector<8x128xf32>
    %298 = arith.addf %297, %296 : vector<8x128xf32>
    %299 = arith.divf %297, %298 : vector<8x128xf32>
    %300 = vector.extract_strided_slice %287 {offsets = [0, 256], sizes = [8, 128], strides = [1, 1]} : vector<8x512xf32> to vector<8x128xf32>
    %301 = math.tanh %300 : vector<8x128xf32>
    %302 = vector.extract_strided_slice %287 {offsets = [0, 384], sizes = [8, 128], strides = [1, 1]} : vector<8x512xf32> to vector<8x128xf32>
    %303 = arith.negf %302 : vector<8x128xf32>
    %304 = math.exp %303 : vector<8x128xf32>
    %cst_76 = arith.constant 1.000000e+00 : f32
    %305 = vector.broadcast %cst_76 : f32 to vector<8x128xf32>
    %306 = arith.addf %305, %304 : vector<8x128xf32>
    %307 = arith.divf %305, %306 : vector<8x128xf32>
    %308 = arith.mulf %299, %235 : vector<8x128xf32>
    %309 = arith.mulf %293, %301 : vector<8x128xf32>
    %310 = arith.addf %308, %309 : vector<8x128xf32>
    %311 = math.tanh %310 : vector<8x128xf32>
    %312 = arith.mulf %307, %311 : vector<8x128xf32>
    %cst_77 = arith.constant dense<0.000000e+00> : vector<8x128xf32>
    %313 = tpu.matmul %312, %25, %cst_77 {dimension_numbers = #tpu.dot_dimension_numbers<[1], [0], [0], [1], [0, 0, 1, 1], [], []>} : vector<8x128xf32>, vector<128x128xf32>, vector<8x128xf32> -> vector<8x128xf32>
    %314 = vector.broadcast %5 : vector<1x128xf32> to vector<8x128xf32>
    %315 = arith.addf %313, %314 : vector<8x128xf32>
    %316 = vector.shape_cast %315 : vector<8x128xf32> to vector<8x1x128xf32>
    %c0_78 = arith.constant 0 : index
    %c3 = arith.constant 3 : index
    %c0_79 = arith.constant 0 : index
    %317 = vector.load %arg7[%c0_78, %c3, %c0_79] : memref<8x8x128xf32, #tpu.memory_space<vmem>>, vector<8x1x128xf32>
    tpu.vector_store %arg7[%c0_78, %c3, %c0_79], %316 {strides = array<i32>} : memref<8x8x128xf32, #tpu.memory_space<vmem>>, vector<8x1x128xf32>,
    %cst_80 = arith.constant dense<0xFF800000> : vector<8xf32>
    %318 = vector.multi_reduction <maximumf>, %315, %cst_80 [1] : vector<8x128xf32> to vector<8xf32>
    %319 = vector.shape_cast %318 : vector<8xf32> to vector<8x1xf32>
    %320 = vector.broadcast %319 : vector<8x1xf32> to vector<8x128xf32>
    %321 = arith.cmpf oeq, %315, %320 : vector<8x128xf32>
    %c128_i32_81 = arith.constant 128 : i32
    %322 = vector.broadcast %c128_i32_81 : i32 to vector<8x128xi32>
    %323 = arith.select %321, %26, %322 : vector<8x128xi1>, vector<8x128xi32>
    %cst_82 = arith.constant dense<2147483647> : vector<8xi32>
    %324 = vector.multi_reduction <minsi>, %323, %cst_82 [1] : vector<8x128xi32> to vector<8xi32>
    %325 = vector.shape_cast %324 : vector<8xi32> to vector<8x1xi32>
    %326 = vector.broadcast %325 : vector<8x1xi32> to vector<8x128xi32>
    %327 = arith.cmpi eq, %26, %326 : vector<8x128xi32>
    %328 = arith.extui %327 : vector<8x128xi1> to vector<8x128xi32>
    %329 = arith.sitofp %328 : vector<8x128xi32> to vector<8x128xf32>
    %330 = tpu.concatenate %329, %283 in 1 : vector<8x128xf32>, vector<8x128xf32> -> vector<8x256xf32>
    %cst_83 = arith.constant dense<0.000000e+00> : vector<8x512xf32>
    %331 = tpu.matmul %330, %23, %cst_83 {dimension_numbers = #tpu.dot_dimension_numbers<[1], [0], [0], [1], [0, 0, 1, 1], [], []>} : vector<8x256xf32>, vector<256x512xf32>, vector<8x512xf32> -> vector<8x512xf32>
    %332 = vector.broadcast %3 : vector<1x512xf32> to vector<8x512xf32>
    %333 = arith.addf %331, %332 : vector<8x512xf32>
    %334 = vector.extract_strided_slice %333 {offsets = [0, 0], sizes = [8, 128], strides = [1, 1]} : vector<8x512xf32> to vector<8x128xf32>
    %335 = arith.negf %334 : vector<8x128xf32>
    %336 = math.exp %335 : vector<8x128xf32>
    %cst_84 = arith.constant 1.000000e+00 : f32
    %337 = vector.broadcast %cst_84 : f32 to vector<8x128xf32>
    %338 = arith.addf %337, %336 : vector<8x128xf32>
    %339 = arith.divf %337, %338 : vector<8x128xf32>
    %340 = vector.extract_strided_slice %333 {offsets = [0, 128], sizes = [8, 128], strides = [1, 1]} : vector<8x512xf32> to vector<8x128xf32>
    %341 = arith.negf %340 : vector<8x128xf32>
    %342 = math.exp %341 : vector<8x128xf32>
    %cst_85 = arith.constant 1.000000e+00 : f32
    %343 = vector.broadcast %cst_85 : f32 to vector<8x128xf32>
    %344 = arith.addf %343, %342 : vector<8x128xf32>
    %345 = arith.divf %343, %344 : vector<8x128xf32>
    %346 = vector.extract_strided_slice %333 {offsets = [0, 256], sizes = [8, 128], strides = [1, 1]} : vector<8x512xf32> to vector<8x128xf32>
    %347 = math.tanh %346 : vector<8x128xf32>
    %348 = vector.extract_strided_slice %333 {offsets = [0, 384], sizes = [8, 128], strides = [1, 1]} : vector<8x512xf32> to vector<8x128xf32>
    %349 = arith.negf %348 : vector<8x128xf32>
    %350 = math.exp %349 : vector<8x128xf32>
    %cst_86 = arith.constant 1.000000e+00 : f32
    %351 = vector.broadcast %cst_86 : f32 to vector<8x128xf32>
    %352 = arith.addf %351, %350 : vector<8x128xf32>
    %353 = arith.divf %351, %352 : vector<8x128xf32>
    %354 = arith.mulf %345, %281 : vector<8x128xf32>
    %355 = arith.mulf %339, %347 : vector<8x128xf32>
    %356 = arith.addf %354, %355 : vector<8x128xf32>
    %357 = math.tanh %356 : vector<8x128xf32>
    %358 = arith.mulf %353, %357 : vector<8x128xf32>
    %359 = tpu.concatenate %358, %312 in 1 : vector<8x128xf32>, vector<8x128xf32> -> vector<8x256xf32>
    %cst_87 = arith.constant dense<0.000000e+00> : vector<8x512xf32>
    %360 = tpu.matmul %359, %24, %cst_87 {dimension_numbers = #tpu.dot_dimension_numbers<[1], [0], [0], [1], [0, 0, 1, 1], [], []>} : vector<8x256xf32>, vector<256x512xf32>, vector<8x512xf32> -> vector<8x512xf32>
    %361 = vector.broadcast %4 : vector<1x512xf32> to vector<8x512xf32>
    %362 = arith.addf %360, %361 : vector<8x512xf32>
    %363 = vector.extract_strided_slice %362 {offsets = [0, 0], sizes = [8, 128], strides = [1, 1]} : vector<8x512xf32> to vector<8x128xf32>
    %364 = arith.negf %363 : vector<8x128xf32>
    %365 = math.exp %364 : vector<8x128xf32>
    %cst_88 = arith.constant 1.000000e+00 : f32
    %366 = vector.broadcast %cst_88 : f32 to vector<8x128xf32>
    %367 = arith.addf %366, %365 : vector<8x128xf32>
    %368 = arith.divf %366, %367 : vector<8x128xf32>
    %369 = vector.extract_strided_slice %362 {offsets = [0, 128], sizes = [8, 128], strides = [1, 1]} : vector<8x512xf32> to vector<8x128xf32>
    %370 = arith.negf %369 : vector<8x128xf32>
    %371 = math.exp %370 : vector<8x128xf32>
    %cst_89 = arith.constant 1.000000e+00 : f32
    %372 = vector.broadcast %cst_89 : f32 to vector<8x128xf32>
    %373 = arith.addf %372, %371 : vector<8x128xf32>
    %374 = arith.divf %372, %373 : vector<8x128xf32>
    %375 = vector.extract_strided_slice %362 {offsets = [0, 256], sizes = [8, 128], strides = [1, 1]} : vector<8x512xf32> to vector<8x128xf32>
    %376 = math.tanh %375 : vector<8x128xf32>
    %377 = vector.extract_strided_slice %362 {offsets = [0, 384], sizes = [8, 128], strides = [1, 1]} : vector<8x512xf32> to vector<8x128xf32>
    %378 = arith.negf %377 : vector<8x128xf32>
    %379 = math.exp %378 : vector<8x128xf32>
    %cst_90 = arith.constant 1.000000e+00 : f32
    %380 = vector.broadcast %cst_90 : f32 to vector<8x128xf32>
    %381 = arith.addf %380, %379 : vector<8x128xf32>
    %382 = arith.divf %380, %381 : vector<8x128xf32>
    %383 = arith.mulf %374, %310 : vector<8x128xf32>
    %384 = arith.mulf %368, %376 : vector<8x128xf32>
    %385 = arith.addf %383, %384 : vector<8x128xf32>
    %386 = math.tanh %385 : vector<8x128xf32>
    %387 = arith.mulf %382, %386 : vector<8x128xf32>
    %cst_91 = arith.constant dense<0.000000e+00> : vector<8x128xf32>
    %388 = tpu.matmul %387, %25, %cst_91 {dimension_numbers = #tpu.dot_dimension_numbers<[1], [0], [0], [1], [0, 0, 1, 1], [], []>} : vector<8x128xf32>, vector<128x128xf32>, vector<8x128xf32> -> vector<8x128xf32>
    %389 = vector.broadcast %5 : vector<1x128xf32> to vector<8x128xf32>
    %390 = arith.addf %388, %389 : vector<8x128xf32>
    %391 = vector.shape_cast %390 : vector<8x128xf32> to vector<8x1x128xf32>
    %c0_92 = arith.constant 0 : index
    %c4 = arith.constant 4 : index
    %c0_93 = arith.constant 0 : index
    %392 = vector.load %arg7[%c0_92, %c4, %c0_93] : memref<8x8x128xf32, #tpu.memory_space<vmem>>, vector<8x1x128xf32>
    tpu.vector_store %arg7[%c0_92, %c4, %c0_93], %391 {strides = array<i32>} : memref<8x8x128xf32, #tpu.memory_space<vmem>>, vector<8x1x128xf32>,
    %cst_94 = arith.constant dense<0xFF800000> : vector<8xf32>
    %393 = vector.multi_reduction <maximumf>, %390, %cst_94 [1] : vector<8x128xf32> to vector<8xf32>
    %394 = vector.shape_cast %393 : vector<8xf32> to vector<8x1xf32>
    %395 = vector.broadcast %394 : vector<8x1xf32> to vector<8x128xf32>
    %396 = arith.cmpf oeq, %390, %395 : vector<8x128xf32>
    %c128_i32_95 = arith.constant 128 : i32
    %397 = vector.broadcast %c128_i32_95 : i32 to vector<8x128xi32>
    %398 = arith.select %396, %26, %397 : vector<8x128xi1>, vector<8x128xi32>
    %cst_96 = arith.constant dense<2147483647> : vector<8xi32>
    %399 = vector.multi_reduction <minsi>, %398, %cst_96 [1] : vector<8x128xi32> to vector<8xi32>
    %400 = vector.shape_cast %399 : vector<8xi32> to vector<8x1xi32>
    %401 = vector.broadcast %400 : vector<8x1xi32> to vector<8x128xi32>
    %402 = arith.cmpi eq, %26, %401 : vector<8x128xi32>
    %403 = arith.extui %402 : vector<8x128xi1> to vector<8x128xi32>
    %404 = arith.sitofp %403 : vector<8x128xi32> to vector<8x128xf32>
    %405 = tpu.concatenate %404, %358 in 1 : vector<8x128xf32>, vector<8x128xf32> -> vector<8x256xf32>
    %cst_97 = arith.constant dense<0.000000e+00> : vector<8x512xf32>
    %406 = tpu.matmul %405, %23, %cst_97 {dimension_numbers = #tpu.dot_dimension_numbers<[1], [0], [0], [1], [0, 0, 1, 1], [], []>} : vector<8x256xf32>, vector<256x512xf32>, vector<8x512xf32> -> vector<8x512xf32>
    %407 = vector.broadcast %3 : vector<1x512xf32> to vector<8x512xf32>
    %408 = arith.addf %406, %407 : vector<8x512xf32>
    %409 = vector.extract_strided_slice %408 {offsets = [0, 0], sizes = [8, 128], strides = [1, 1]} : vector<8x512xf32> to vector<8x128xf32>
    %410 = arith.negf %409 : vector<8x128xf32>
    %411 = math.exp %410 : vector<8x128xf32>
    %cst_98 = arith.constant 1.000000e+00 : f32
    %412 = vector.broadcast %cst_98 : f32 to vector<8x128xf32>
    %413 = arith.addf %412, %411 : vector<8x128xf32>
    %414 = arith.divf %412, %413 : vector<8x128xf32>
    %415 = vector.extract_strided_slice %408 {offsets = [0, 128], sizes = [8, 128], strides = [1, 1]} : vector<8x512xf32> to vector<8x128xf32>
    %416 = arith.negf %415 : vector<8x128xf32>
    %417 = math.exp %416 : vector<8x128xf32>
    %cst_99 = arith.constant 1.000000e+00 : f32
    %418 = vector.broadcast %cst_99 : f32 to vector<8x128xf32>
    %419 = arith.addf %418, %417 : vector<8x128xf32>
    %420 = arith.divf %418, %419 : vector<8x128xf32>
    %421 = vector.extract_strided_slice %408 {offsets = [0, 256], sizes = [8, 128], strides = [1, 1]} : vector<8x512xf32> to vector<8x128xf32>
    %422 = math.tanh %421 : vector<8x128xf32>
    %423 = vector.extract_strided_slice %408 {offsets = [0, 384], sizes = [8, 128], strides = [1, 1]} : vector<8x512xf32> to vector<8x128xf32>
    %424 = arith.negf %423 : vector<8x128xf32>
    %425 = math.exp %424 : vector<8x128xf32>
    %cst_100 = arith.constant 1.000000e+00 : f32
    %426 = vector.broadcast %cst_100 : f32 to vector<8x128xf32>
    %427 = arith.addf %426, %425 : vector<8x128xf32>
    %428 = arith.divf %426, %427 : vector<8x128xf32>
    %429 = arith.mulf %420, %356 : vector<8x128xf32>
    %430 = arith.mulf %414, %422 : vector<8x128xf32>
    %431 = arith.addf %429, %430 : vector<8x128xf32>
    %432 = math.tanh %431 : vector<8x128xf32>
    %433 = arith.mulf %428, %432 : vector<8x128xf32>
    %434 = tpu.concatenate %433, %387 in 1 : vector<8x128xf32>, vector<8x128xf32> -> vector<8x256xf32>
    %cst_101 = arith.constant dense<0.000000e+00> : vector<8x512xf32>
    %435 = tpu.matmul %434, %24, %cst_101 {dimension_numbers = #tpu.dot_dimension_numbers<[1], [0], [0], [1], [0, 0, 1, 1], [], []>} : vector<8x256xf32>, vector<256x512xf32>, vector<8x512xf32> -> vector<8x512xf32>
    %436 = vector.broadcast %4 : vector<1x512xf32> to vector<8x512xf32>
    %437 = arith.addf %435, %436 : vector<8x512xf32>
    %438 = vector.extract_strided_slice %437 {offsets = [0, 0], sizes = [8, 128], strides = [1, 1]} : vector<8x512xf32> to vector<8x128xf32>
    %439 = arith.negf %438 : vector<8x128xf32>
    %440 = math.exp %439 : vector<8x128xf32>
    %cst_102 = arith.constant 1.000000e+00 : f32
    %441 = vector.broadcast %cst_102 : f32 to vector<8x128xf32>
    %442 = arith.addf %441, %440 : vector<8x128xf32>
    %443 = arith.divf %441, %442 : vector<8x128xf32>
    %444 = vector.extract_strided_slice %437 {offsets = [0, 128], sizes = [8, 128], strides = [1, 1]} : vector<8x512xf32> to vector<8x128xf32>
    %445 = arith.negf %444 : vector<8x128xf32>
    %446 = math.exp %445 : vector<8x128xf32>
    %cst_103 = arith.constant 1.000000e+00 : f32
    %447 = vector.broadcast %cst_103 : f32 to vector<8x128xf32>
    %448 = arith.addf %447, %446 : vector<8x128xf32>
    %449 = arith.divf %447, %448 : vector<8x128xf32>
    %450 = vector.extract_strided_slice %437 {offsets = [0, 256], sizes = [8, 128], strides = [1, 1]} : vector<8x512xf32> to vector<8x128xf32>
    %451 = math.tanh %450 : vector<8x128xf32>
    %452 = vector.extract_strided_slice %437 {offsets = [0, 384], sizes = [8, 128], strides = [1, 1]} : vector<8x512xf32> to vector<8x128xf32>
    %453 = arith.negf %452 : vector<8x128xf32>
    %454 = math.exp %453 : vector<8x128xf32>
    %cst_104 = arith.constant 1.000000e+00 : f32
    %455 = vector.broadcast %cst_104 : f32 to vector<8x128xf32>
    %456 = arith.addf %455, %454 : vector<8x128xf32>
    %457 = arith.divf %455, %456 : vector<8x128xf32>
    %458 = arith.mulf %449, %385 : vector<8x128xf32>
    %459 = arith.mulf %443, %451 : vector<8x128xf32>
    %460 = arith.addf %458, %459 : vector<8x128xf32>
    %461 = math.tanh %460 : vector<8x128xf32>
    %462 = arith.mulf %457, %461 : vector<8x128xf32>
    %cst_105 = arith.constant dense<0.000000e+00> : vector<8x128xf32>
    %463 = tpu.matmul %462, %25, %cst_105 {dimension_numbers = #tpu.dot_dimension_numbers<[1], [0], [0], [1], [0, 0, 1, 1], [], []>} : vector<8x128xf32>, vector<128x128xf32>, vector<8x128xf32> -> vector<8x128xf32>
    %464 = vector.broadcast %5 : vector<1x128xf32> to vector<8x128xf32>
    %465 = arith.addf %463, %464 : vector<8x128xf32>
    %466 = vector.shape_cast %465 : vector<8x128xf32> to vector<8x1x128xf32>
    %c0_106 = arith.constant 0 : index
    %c5 = arith.constant 5 : index
    %c0_107 = arith.constant 0 : index
    %467 = vector.load %arg7[%c0_106, %c5, %c0_107] : memref<8x8x128xf32, #tpu.memory_space<vmem>>, vector<8x1x128xf32>
    tpu.vector_store %arg7[%c0_106, %c5, %c0_107], %466 {strides = array<i32>} : memref<8x8x128xf32, #tpu.memory_space<vmem>>, vector<8x1x128xf32>,
    %cst_108 = arith.constant dense<0xFF800000> : vector<8xf32>
    %468 = vector.multi_reduction <maximumf>, %465, %cst_108 [1] : vector<8x128xf32> to vector<8xf32>
    %469 = vector.shape_cast %468 : vector<8xf32> to vector<8x1xf32>
    %470 = vector.broadcast %469 : vector<8x1xf32> to vector<8x128xf32>
    %471 = arith.cmpf oeq, %465, %470 : vector<8x128xf32>
    %c128_i32_109 = arith.constant 128 : i32
    %472 = vector.broadcast %c128_i32_109 : i32 to vector<8x128xi32>
    %473 = arith.select %471, %26, %472 : vector<8x128xi1>, vector<8x128xi32>
    %cst_110 = arith.constant dense<2147483647> : vector<8xi32>
    %474 = vector.multi_reduction <minsi>, %473, %cst_110 [1] : vector<8x128xi32> to vector<8xi32>
    %475 = vector.shape_cast %474 : vector<8xi32> to vector<8x1xi32>
    %476 = vector.broadcast %475 : vector<8x1xi32> to vector<8x128xi32>
    %477 = arith.cmpi eq, %26, %476 : vector<8x128xi32>
    %478 = arith.extui %477 : vector<8x128xi1> to vector<8x128xi32>
    %479 = arith.sitofp %478 : vector<8x128xi32> to vector<8x128xf32>
    %480 = tpu.concatenate %479, %433 in 1 : vector<8x128xf32>, vector<8x128xf32> -> vector<8x256xf32>
    %cst_111 = arith.constant dense<0.000000e+00> : vector<8x512xf32>
    %481 = tpu.matmul %480, %23, %cst_111 {dimension_numbers = #tpu.dot_dimension_numbers<[1], [0], [0], [1], [0, 0, 1, 1], [], []>} : vector<8x256xf32>, vector<256x512xf32>, vector<8x512xf32> -> vector<8x512xf32>
    %482 = vector.broadcast %3 : vector<1x512xf32> to vector<8x512xf32>
    %483 = arith.addf %481, %482 : vector<8x512xf32>
    %484 = vector.extract_strided_slice %483 {offsets = [0, 0], sizes = [8, 128], strides = [1, 1]} : vector<8x512xf32> to vector<8x128xf32>
    %485 = arith.negf %484 : vector<8x128xf32>
    %486 = math.exp %485 : vector<8x128xf32>
    %cst_112 = arith.constant 1.000000e+00 : f32
    %487 = vector.broadcast %cst_112 : f32 to vector<8x128xf32>
    %488 = arith.addf %487, %486 : vector<8x128xf32>
    %489 = arith.divf %487, %488 : vector<8x128xf32>
    %490 = vector.extract_strided_slice %483 {offsets = [0, 128], sizes = [8, 128], strides = [1, 1]} : vector<8x512xf32> to vector<8x128xf32>
    %491 = arith.negf %490 : vector<8x128xf32>
    %492 = math.exp %491 : vector<8x128xf32>
    %cst_113 = arith.constant 1.000000e+00 : f32
    %493 = vector.broadcast %cst_113 : f32 to vector<8x128xf32>
    %494 = arith.addf %493, %492 : vector<8x128xf32>
    %495 = arith.divf %493, %494 : vector<8x128xf32>
    %496 = vector.extract_strided_slice %483 {offsets = [0, 256], sizes = [8, 128], strides = [1, 1]} : vector<8x512xf32> to vector<8x128xf32>
    %497 = math.tanh %496 : vector<8x128xf32>
    %498 = vector.extract_strided_slice %483 {offsets = [0, 384], sizes = [8, 128], strides = [1, 1]} : vector<8x512xf32> to vector<8x128xf32>
    %499 = arith.negf %498 : vector<8x128xf32>
    %500 = math.exp %499 : vector<8x128xf32>
    %cst_114 = arith.constant 1.000000e+00 : f32
    %501 = vector.broadcast %cst_114 : f32 to vector<8x128xf32>
    %502 = arith.addf %501, %500 : vector<8x128xf32>
    %503 = arith.divf %501, %502 : vector<8x128xf32>
    %504 = arith.mulf %495, %431 : vector<8x128xf32>
    %505 = arith.mulf %489, %497 : vector<8x128xf32>
    %506 = arith.addf %504, %505 : vector<8x128xf32>
    %507 = math.tanh %506 : vector<8x128xf32>
    %508 = arith.mulf %503, %507 : vector<8x128xf32>
    %509 = tpu.concatenate %508, %462 in 1 : vector<8x128xf32>, vector<8x128xf32> -> vector<8x256xf32>
    %cst_115 = arith.constant dense<0.000000e+00> : vector<8x512xf32>
    %510 = tpu.matmul %509, %24, %cst_115 {dimension_numbers = #tpu.dot_dimension_numbers<[1], [0], [0], [1], [0, 0, 1, 1], [], []>} : vector<8x256xf32>, vector<256x512xf32>, vector<8x512xf32> -> vector<8x512xf32>
    %511 = vector.broadcast %4 : vector<1x512xf32> to vector<8x512xf32>
    %512 = arith.addf %510, %511 : vector<8x512xf32>
    %513 = vector.extract_strided_slice %512 {offsets = [0, 0], sizes = [8, 128], strides = [1, 1]} : vector<8x512xf32> to vector<8x128xf32>
    %514 = arith.negf %513 : vector<8x128xf32>
    %515 = math.exp %514 : vector<8x128xf32>
    %cst_116 = arith.constant 1.000000e+00 : f32
    %516 = vector.broadcast %cst_116 : f32 to vector<8x128xf32>
    %517 = arith.addf %516, %515 : vector<8x128xf32>
    %518 = arith.divf %516, %517 : vector<8x128xf32>
    %519 = vector.extract_strided_slice %512 {offsets = [0, 128], sizes = [8, 128], strides = [1, 1]} : vector<8x512xf32> to vector<8x128xf32>
    %520 = arith.negf %519 : vector<8x128xf32>
    %521 = math.exp %520 : vector<8x128xf32>
    %cst_117 = arith.constant 1.000000e+00 : f32
    %522 = vector.broadcast %cst_117 : f32 to vector<8x128xf32>
    %523 = arith.addf %522, %521 : vector<8x128xf32>
    %524 = arith.divf %522, %523 : vector<8x128xf32>
    %525 = vector.extract_strided_slice %512 {offsets = [0, 256], sizes = [8, 128], strides = [1, 1]} : vector<8x512xf32> to vector<8x128xf32>
    %526 = math.tanh %525 : vector<8x128xf32>
    %527 = vector.extract_strided_slice %512 {offsets = [0, 384], sizes = [8, 128], strides = [1, 1]} : vector<8x512xf32> to vector<8x128xf32>
    %528 = arith.negf %527 : vector<8x128xf32>
    %529 = math.exp %528 : vector<8x128xf32>
    %cst_118 = arith.constant 1.000000e+00 : f32
    %530 = vector.broadcast %cst_118 : f32 to vector<8x128xf32>
    %531 = arith.addf %530, %529 : vector<8x128xf32>
    %532 = arith.divf %530, %531 : vector<8x128xf32>
    %533 = arith.mulf %524, %460 : vector<8x128xf32>
    %534 = arith.mulf %518, %526 : vector<8x128xf32>
    %535 = arith.addf %533, %534 : vector<8x128xf32>
    %536 = math.tanh %535 : vector<8x128xf32>
    %537 = arith.mulf %532, %536 : vector<8x128xf32>
    %cst_119 = arith.constant dense<0.000000e+00> : vector<8x128xf32>
    %538 = tpu.matmul %537, %25, %cst_119 {dimension_numbers = #tpu.dot_dimension_numbers<[1], [0], [0], [1], [0, 0, 1, 1], [], []>} : vector<8x128xf32>, vector<128x128xf32>, vector<8x128xf32> -> vector<8x128xf32>
    %539 = vector.broadcast %5 : vector<1x128xf32> to vector<8x128xf32>
    %540 = arith.addf %538, %539 : vector<8x128xf32>
    %541 = vector.shape_cast %540 : vector<8x128xf32> to vector<8x1x128xf32>
    %c0_120 = arith.constant 0 : index
    %c6 = arith.constant 6 : index
    %c0_121 = arith.constant 0 : index
    %542 = vector.load %arg7[%c0_120, %c6, %c0_121] : memref<8x8x128xf32, #tpu.memory_space<vmem>>, vector<8x1x128xf32>
    tpu.vector_store %arg7[%c0_120, %c6, %c0_121], %541 {strides = array<i32>} : memref<8x8x128xf32, #tpu.memory_space<vmem>>, vector<8x1x128xf32>,
    %cst_122 = arith.constant dense<0xFF800000> : vector<8xf32>
    %543 = vector.multi_reduction <maximumf>, %540, %cst_122 [1] : vector<8x128xf32> to vector<8xf32>
    %544 = vector.shape_cast %543 : vector<8xf32> to vector<8x1xf32>
    %545 = vector.broadcast %544 : vector<8x1xf32> to vector<8x128xf32>
    %546 = arith.cmpf oeq, %540, %545 : vector<8x128xf32>
    %c128_i32_123 = arith.constant 128 : i32
    %547 = vector.broadcast %c128_i32_123 : i32 to vector<8x128xi32>
    %548 = arith.select %546, %26, %547 : vector<8x128xi1>, vector<8x128xi32>
    %cst_124 = arith.constant dense<2147483647> : vector<8xi32>
    %549 = vector.multi_reduction <minsi>, %548, %cst_124 [1] : vector<8x128xi32> to vector<8xi32>
    %550 = vector.shape_cast %549 : vector<8xi32> to vector<8x1xi32>
    %551 = vector.broadcast %550 : vector<8x1xi32> to vector<8x128xi32>
    %552 = arith.cmpi eq, %26, %551 : vector<8x128xi32>
    %553 = arith.extui %552 : vector<8x128xi1> to vector<8x128xi32>
    %554 = arith.sitofp %553 : vector<8x128xi32> to vector<8x128xf32>
    %555 = tpu.concatenate %554, %508 in 1 : vector<8x128xf32>, vector<8x128xf32> -> vector<8x256xf32>
    %cst_125 = arith.constant dense<0.000000e+00> : vector<8x512xf32>
    %556 = tpu.matmul %555, %23, %cst_125 {dimension_numbers = #tpu.dot_dimension_numbers<[1], [0], [0], [1], [0, 0, 1, 1], [], []>} : vector<8x256xf32>, vector<256x512xf32>, vector<8x512xf32> -> vector<8x512xf32>
    %557 = vector.broadcast %3 : vector<1x512xf32> to vector<8x512xf32>
    %558 = arith.addf %556, %557 : vector<8x512xf32>
    %559 = vector.extract_strided_slice %558 {offsets = [0, 0], sizes = [8, 128], strides = [1, 1]} : vector<8x512xf32> to vector<8x128xf32>
    %560 = arith.negf %559 : vector<8x128xf32>
    %561 = math.exp %560 : vector<8x128xf32>
    %cst_126 = arith.constant 1.000000e+00 : f32
    %562 = vector.broadcast %cst_126 : f32 to vector<8x128xf32>
    %563 = arith.addf %562, %561 : vector<8x128xf32>
    %564 = arith.divf %562, %563 : vector<8x128xf32>
    %565 = vector.extract_strided_slice %558 {offsets = [0, 128], sizes = [8, 128], strides = [1, 1]} : vector<8x512xf32> to vector<8x128xf32>
    %566 = arith.negf %565 : vector<8x128xf32>
    %567 = math.exp %566 : vector<8x128xf32>
    %cst_127 = arith.constant 1.000000e+00 : f32
    %568 = vector.broadcast %cst_127 : f32 to vector<8x128xf32>
    %569 = arith.addf %568, %567 : vector<8x128xf32>
    %570 = arith.divf %568, %569 : vector<8x128xf32>
    %571 = vector.extract_strided_slice %558 {offsets = [0, 256], sizes = [8, 128], strides = [1, 1]} : vector<8x512xf32> to vector<8x128xf32>
    %572 = math.tanh %571 : vector<8x128xf32>
    %573 = vector.extract_strided_slice %558 {offsets = [0, 384], sizes = [8, 128], strides = [1, 1]} : vector<8x512xf32> to vector<8x128xf32>
    %574 = arith.negf %573 : vector<8x128xf32>
    %575 = math.exp %574 : vector<8x128xf32>
    %cst_128 = arith.constant 1.000000e+00 : f32
    %576 = vector.broadcast %cst_128 : f32 to vector<8x128xf32>
    %577 = arith.addf %576, %575 : vector<8x128xf32>
    %578 = arith.divf %576, %577 : vector<8x128xf32>
    %579 = arith.mulf %570, %506 : vector<8x128xf32>
    %580 = arith.mulf %564, %572 : vector<8x128xf32>
    %581 = arith.addf %579, %580 : vector<8x128xf32>
    %582 = math.tanh %581 : vector<8x128xf32>
    %583 = arith.mulf %578, %582 : vector<8x128xf32>
    %584 = tpu.concatenate %583, %537 in 1 : vector<8x128xf32>, vector<8x128xf32> -> vector<8x256xf32>
    %cst_129 = arith.constant dense<0.000000e+00> : vector<8x512xf32>
    %585 = tpu.matmul %584, %24, %cst_129 {dimension_numbers = #tpu.dot_dimension_numbers<[1], [0], [0], [1], [0, 0, 1, 1], [], []>} : vector<8x256xf32>, vector<256x512xf32>, vector<8x512xf32> -> vector<8x512xf32>
    %586 = vector.broadcast %4 : vector<1x512xf32> to vector<8x512xf32>
    %587 = arith.addf %585, %586 : vector<8x512xf32>
    %588 = vector.extract_strided_slice %587 {offsets = [0, 0], sizes = [8, 128], strides = [1, 1]} : vector<8x512xf32> to vector<8x128xf32>
    %589 = arith.negf %588 : vector<8x128xf32>
    %590 = math.exp %589 : vector<8x128xf32>
    %cst_130 = arith.constant 1.000000e+00 : f32
    %591 = vector.broadcast %cst_130 : f32 to vector<8x128xf32>
    %592 = arith.addf %591, %590 : vector<8x128xf32>
    %593 = arith.divf %591, %592 : vector<8x128xf32>
    %594 = vector.extract_strided_slice %587 {offsets = [0, 128], sizes = [8, 128], strides = [1, 1]} : vector<8x512xf32> to vector<8x128xf32>
    %595 = arith.negf %594 : vector<8x128xf32>
    %596 = math.exp %595 : vector<8x128xf32>
    %cst_131 = arith.constant 1.000000e+00 : f32
    %597 = vector.broadcast %cst_131 : f32 to vector<8x128xf32>
    %598 = arith.addf %597, %596 : vector<8x128xf32>
    %599 = arith.divf %597, %598 : vector<8x128xf32>
    %600 = vector.extract_strided_slice %587 {offsets = [0, 256], sizes = [8, 128], strides = [1, 1]} : vector<8x512xf32> to vector<8x128xf32>
    %601 = math.tanh %600 : vector<8x128xf32>
    %602 = vector.extract_strided_slice %587 {offsets = [0, 384], sizes = [8, 128], strides = [1, 1]} : vector<8x512xf32> to vector<8x128xf32>
    %603 = arith.negf %602 : vector<8x128xf32>
    %604 = math.exp %603 : vector<8x128xf32>
    %cst_132 = arith.constant 1.000000e+00 : f32
    %605 = vector.broadcast %cst_132 : f32 to vector<8x128xf32>
    %606 = arith.addf %605, %604 : vector<8x128xf32>
    %607 = arith.divf %605, %606 : vector<8x128xf32>
    %608 = arith.mulf %599, %535 : vector<8x128xf32>
    %609 = arith.mulf %593, %601 : vector<8x128xf32>
    %610 = arith.addf %608, %609 : vector<8x128xf32>
    %611 = math.tanh %610 : vector<8x128xf32>
    %612 = arith.mulf %607, %611 : vector<8x128xf32>
    %cst_133 = arith.constant dense<0.000000e+00> : vector<8x128xf32>
    %613 = tpu.matmul %612, %25, %cst_133 {dimension_numbers = #tpu.dot_dimension_numbers<[1], [0], [0], [1], [0, 0, 1, 1], [], []>} : vector<8x128xf32>, vector<128x128xf32>, vector<8x128xf32> -> vector<8x128xf32>
    %614 = vector.broadcast %5 : vector<1x128xf32> to vector<8x128xf32>
    %615 = arith.addf %613, %614 : vector<8x128xf32>
    %616 = vector.shape_cast %615 : vector<8x128xf32> to vector<8x1x128xf32>
    %c0_134 = arith.constant 0 : index
    %c7 = arith.constant 7 : index
    %c0_135 = arith.constant 0 : index
    %617 = vector.load %arg7[%c0_134, %c7, %c0_135] : memref<8x8x128xf32, #tpu.memory_space<vmem>>, vector<8x1x128xf32>
    tpu.vector_store %arg7[%c0_134, %c7, %c0_135], %616 {strides = array<i32>} : memref<8x8x128xf32, #tpu.memory_space<vmem>>, vector<8x1x128xf32>,
    return
  }
}

</mosaic_0001>

<llo_original>
// kernel: question_generator_forward.1
$region0: #{question_generator_forward.1}
  #allocation0 [shape = 'u32[]', space=smem, size = 0x4, offset = 0x4, fixed_abs, tag = 'smem constant byte address 0x4 - core index']
  #allocation1 [shape = 'u32[144,128]{1,0:T(1,128)}', space=vmem, size = 0x12000, scoped, tag = 'internal scratch']
  %s0 = inlined_call_operand.vmem [shape: f32[8,128], index: 0, kind: input, shape index: {}]
  %s1 = inlined_call_operand.hbm [shape: f32[128,128], index: 1, kind: input, shape index: {}]
  %s2 = inlined_call_operand.hbm [shape: f32[128,128], index: 2, kind: input, shape index: {}]
  %s3 = inlined_call_operand.hbm [shape: f32[128,128], index: 3, kind: input, shape index: {}]
  %s4 = inlined_call_operand.hbm [shape: f32[512,512], index: 4, kind: input, shape index: {}]
  %s5 = inlined_call_operand.hbm [shape: f32[128,128], index: 5, kind: input, shape index: {}]
  %s6 = inlined_call_operand.vmem [shape: f32[1,1536], index: 6, kind: input, shape index: {}]
  %s7 = inlined_call_operand.vmem [shape: f32[8,8,128], index: 7, kind: output, shape index: {}]
  %s8 = sld [smem:[#allocation0]]
  $region58: #{question_generator_forward.1} parent=0
    _
  %s10 = ssub.s32 1, %s8
  %s11 = scalar_select 0, %s10, %s8
  $region1: #{question_generator_forward.1} parent=0
    #allocation2 [shape = 'u8[65536]{0}', space=vmem, size = 0x10000, scoped, tag = 'input window, operand 1, single buffered']
    #allocation3 [shape = 's32[1]{0}', space=sflag, size = 0x4, scoped, tag = 'scoped memory for question_generator_forward.1']
    #allocation4 [shape = 'u8[65536]{0}', space=vmem, size = 0x10000, scoped, tag = 'input window, operand 2, single buffered']
    #allocation5 [shape = 's32[1]{0}', space=sflag, size = 0x4, scoped, tag = 'scoped memory for question_generator_forward.1']
    #allocation6 [shape = 'u8[65536]{0}', space=vmem, size = 0x10000, scoped, tag = 'input window, operand 3, single buffered']
    #allocation7 [shape = 'u8[1048576]{0}', space=vmem, size = 0x100000, scoped, tag = 'input window, operand 4, single buffered']
    #allocation8 [shape = 's32[1]{0}', space=sflag, size = 0x4, scoped, tag = 'scoped memory for question_generator_forward.1']
    #allocation9 [shape = 'u8[65536]{0}', space=vmem, size = 0x10000, scoped, tag = 'input window, operand 5, single buffered']
    %12 = vsyncpa [#allocation3], 0
    %13 = vsyncpa [#allocation5], 0
    %14 = vsyncpa [#allocation8], 0
    // Predicated region
    $region2: #{question_generator_forward.1} parent=1 // pred_check
      _
    $region3: #{question_generator_forward.1} parent=1 // pred_check_branch
      %16 = sbr.rel (0) target = $region5
    $region4: #{question_generator_forward.1} parent=1 // pred_region
      _
    $region5: #{question_generator_forward.1} parent=1 // pred_fallthru
      _
    // Predicated region
    $region6: #{question_generator_forward.1} parent=1 // pred_check
      _
    $region7: #{question_generator_forward.1} parent=1 // pred_check_branch
      %18 = sbr.rel (0) target = $region9
    $region8: #{question_generator_forward.1} parent=1 // pred_region
      %s20 = ssub.s32 2048, 2048
      %21 = vsyncadd [#allocation3], %s20
      %s22 = sshll.u32 [#allocation2], 4
      %s23 = int_to_ptr.vmem [resolvable:$true] %s22
      %28 = dma.hbm_to_vmem [thread:$0]  %s1, 2048, %s23, [#allocation3], 128, 128, 8
    $region9: #{question_generator_forward.1} parent=1 // pred_fallthru
      _
    // Predicated region
    $region10: #{question_generator_forward.1} parent=1 // pred_check
      _
    $region11: #{question_generator_forward.1} parent=1 // pred_check_branch
      %30 = sbr.rel (0) target = $region13
    $region12: #{question_generator_forward.1} parent=1 // pred_region
      %s32 = ssub.s32 2048, 2048
      %33 = vsyncadd [#allocation5], %s32
      %s34 = sshll.u32 [#allocation4], 4
      %s35 = int_to_ptr.vmem [resolvable:$true] %s34
      %40 = dma.hbm_to_vmem [thread:$0]  %s2, 2048, %s35, [#allocation5], 128, 128, 8
    $region13: #{question_generator_forward.1} parent=1 // pred_fallthru
      _
    // Predicated region
    $region14: #{question_generator_forward.1} parent=1 // pred_check
      _
    $region15: #{question_generator_forward.1} parent=1 // pred_check_branch
      %42 = sbr.rel (0) target = $region17
    $region16: #{question_generator_forward.1} parent=1 // pred_region
      %s44 = ssub.s32 2048, 2048
      %45 = vsyncadd [#allocation5], %s44
      %s46 = sshll.u32 [#allocation6], 4
      %s47 = int_to_ptr.vmem [resolvable:$true] %s46
      %52 = dma.hbm_to_vmem [thread:$0]  %s3, 2048, %s47, [#allocation5], 128, 128, 8
    $region17: #{question_generator_forward.1} parent=1 // pred_fallthru
      _
    // Predicated region
    $region18: #{question_generator_forward.1} parent=1 // pred_check
      _
    $region19: #{question_generator_forward.1} parent=1 // pred_check_branch
      %54 = sbr.rel (0) target = $region21
    $region20: #{question_generator_forward.1} parent=1 // pred_region
      %s56 = ssub.s32 32768, 32768
      %57 = vsyncadd [#allocation8], %s56
      %s58 = sshll.u32 [#allocation7], 4
      %s59 = int_to_ptr.vmem [resolvable:$true] %s58
      %64 = dma.hbm_to_vmem [thread:$0]  %s4, 32768, %s59, [#allocation8], 512, 512, 32
    $region21: #{question_generator_forward.1} parent=1 // pred_fallthru
      _
    // Predicated region
    $region22: #{question_generator_forward.1} parent=1 // pred_check
      _
    $region23: #{question_generator_forward.1} parent=1 // pred_check_branch
      %66 = sbr.rel (0) target = $region25
    $region24: #{question_generator_forward.1} parent=1 // pred_region
      %s68 = ssub.s32 2048, 2048
      %69 = vsyncadd [#allocation8], %s68
      %s70 = sshll.u32 [#allocation9], 4
      %s71 = int_to_ptr.vmem [resolvable:$true] %s70
      %76 = dma.hbm_to_vmem [thread:$0]  %s5, 2048, %s71, [#allocation8], 128, 128, 8
    $region25: #{question_generator_forward.1} parent=1 // pred_fallthru
      _
    // Predicated region
    $region26: #{question_generator_forward.1} parent=1 // pred_check
      _
    $region27: #{question_generator_forward.1} parent=1 // pred_check_branch
      %78 = sbr.rel (0) target = $region29
    $region28: #{question_generator_forward.1} parent=1 // pred_region
      _
    $region29: #{question_generator_forward.1} parent=1 // pred_fallthru
      _
    // Predicated region
    $region30: #{question_generator_forward.1} parent=1 // pred_check
      _
    $region31: #{question_generator_forward.1} parent=1 // pred_check_branch
      %80 = sbr.rel (0) target = $region33
    $region32: #{question_generator_forward.1} parent=1 // pred_region
      %81 = dma.done [#allocation3], 2048
    $region33: #{question_generator_forward.1} parent=1 // pred_fallthru
      _
    // Predicated region
    $region34: #{question_generator_forward.1} parent=1 // pred_check
      _
    $region35: #{question_generator_forward.1} parent=1 // pred_check_branch
      %83 = sbr.rel (0) target = $region37
    $region36: #{question_generator_forward.1} parent=1 // pred_region
      %84 = dma.done [#allocation5], 2048
    $region37: #{question_generator_forward.1} parent=1 // pred_fallthru
      _
    // Predicated region
    $region38: #{question_generator_forward.1} parent=1 // pred_check
      _
    $region39: #{question_generator_forward.1} parent=1 // pred_check_branch
      %86 = sbr.rel (0) target = $region41
    $region40: #{question_generator_forward.1} parent=1 // pred_region
      %87 = dma.done [#allocation5], 2048
    $region41: #{question_generator_forward.1} parent=1 // pred_fallthru
      _
    // Predicated region
    $region42: #{question_generator_forward.1} parent=1 // pred_check
      _
    $region43: #{question_generator_forward.1} parent=1 // pred_check_branch
      %89 = sbr.rel (0) target = $region45
    $region44: #{question_generator_forward.1} parent=1 // pred_region
      %90 = dma.done [#allocation8], 32768
    $region45: #{question_generator_forward.1} parent=1 // pred_fallthru
      _
    // Predicated region
    $region46: #{question_generator_forward.1} parent=1 // pred_check
      _
    $region47: #{question_generator_forward.1} parent=1 // pred_check_branch
      %92 = sbr.rel (0) target = $region49
    $region48: #{question_generator_forward.1} parent=1 // pred_region
      %93 = dma.done [#allocation8], 2048
    $region49: #{question_generator_forward.1} parent=1 // pred_fallthru
      _
    %v94 = vld [vmem:[%s6] sm:$0x1]
    %v95 = vld [vmem:[%s6 + $0x1] sm:$0x1]
    %v96 = vld [vmem:[%s6 + $0x2] sm:$0x1]
    %v97 = vld [vmem:[%s6 + $0x3] sm:$0xf]
    %v98 = vld [vmem:[%s6 + $0x7] sm:$0xf]
    %v99 = vld [vmem:[%s6 + $0xb] sm:$0x1]
    %v100 = vld [vmem:[%s0] sm:$0xff]
    %v101 = vld [vmem:[#allocation2] sm:$0xff]
    %v102 = vld [vmem:[#allocation2 + $0x8] sm:$0xff]
    %v103 = vld [vmem:[#allocation2 + $0x10] sm:$0xff]
    %v104 = vld [vmem:[#allocation2 + $0x18] sm:$0xff]
    %v105 = vld [vmem:[#allocation2 + $0x20] sm:$0xff]
    %v106 = vld [vmem:[#allocation2 + $0x28] sm:$0xff]
    %v107 = vld [vmem:[#allocation2 + $0x30] sm:$0xff]
    %v108 = vld [vmem:[#allocation2 + $0x38] sm:$0xff]
    %v109 = vld [vmem:[#allocation2 + $0x40] sm:$0xff]
    %v110 = vld [vmem:[#allocation2 + $0x48] sm:$0xff]
    %v111 = vld [vmem:[#allocation2 + $0x50] sm:$0xff]
    %v112 = vld [vmem:[#allocation2 + $0x58] sm:$0xff]
    %v113 = vld [vmem:[#allocation2 + $0x60] sm:$0xff]
    %v114 = vld [vmem:[#allocation2 + $0x68] sm:$0xff]
    %v115 = vld [vmem:[#allocation2 + $0x70] sm:$0xff]
    %v116 = vld [vmem:[#allocation2 + $0x78] sm:$0xff]
    %v118 = vlaneseq
    %v119 = vshrl.u32 %v118, 7
    %v120 = vsub.s32 0, %v119
    %v121 = vrot.slane %v94, %v120
    %123 = vmatprep.subr.mxu0 0.0
    %124 = vmatpush1.msra.mxu0 %v101
    %125 = vmatprep.subr.mxu0 0.0
    %126 = vmatpush1.msra.mxu0 %v102
    %127 = vmatprep.subr.mxu0 0.0
    %128 = vmatpush1.msra.mxu0 %v103
    %129 = vmatprep.subr.mxu0 0.0
    %130 = vmatpush1.msra.mxu0 %v104
    %131 = vmatprep.subr.mxu0 0.0
    %132 = vmatpush1.msra.mxu0 %v105
    %133 = vmatprep.subr.mxu0 0.0
    %134 = vmatpush1.msra.mxu0 %v106
    %135 = vmatprep.subr.mxu0 0.0
    %136 = vmatpush1.msra.mxu0 %v107
    %137 = vmatprep.subr.mxu0 0.0
    %138 = vmatpush1.msra.mxu0 %v108
    %139 = vmatprep.subr.mxu0 0.0
    %140 = vmatpush1.msra.mxu0 %v109
    %141 = vmatprep.subr.mxu0 0.0
    %142 = vmatpush1.msra.mxu0 %v110
    %143 = vmatprep.subr.mxu0 0.0
    %144 = vmatpush1.msra.mxu0 %v111
    %145 = vmatprep.subr.mxu0 0.0
    %146 = vmatpush1.msra.mxu0 %v112
    %147 = vmatprep.subr.mxu0 0.0
    %148 = vmatpush1.msra.mxu0 %v113
    %149 = vmatprep.subr.mxu0 0.0
    %150 = vmatpush1.msra.mxu0 %v114
    %151 = vmatprep.subr.mxu0 0.0
    %152 = vmatpush1.msra.mxu0 %v115
    %153 = vmatprep.subr.mxu0 0.0
    %154 = vmatpush1.msra.mxu0 %v116
    %155 = vmatprep.subr.mxu0 0.0
    %156 = vmatpush1.msra.mxu0 0.0
    %157 = vmatprep.subr.mxu0 0.0
    %158 = vmatpush1.msra.mxu0 0.0
    %159 = vmatprep.subr.mxu0 0.0
    %160 = vmatpush1.msra.mxu0 0.0
    %161 = vmatprep.subr.mxu0 0.0
    %162 = vmatpush1.msra.mxu0 0.0
    %163 = vmatprep.subr.mxu0 0.0
    %164 = vmatpush1.msra.mxu0 0.0
    %165 = vmatprep.subr.mxu0 0.0
    %166 = vmatpush1.msra.mxu0 0.0
    %167 = vmatprep.subr.mxu0 0.0
    %168 = vmatpush1.msra.mxu0 0.0
    %169 = vmatprep.subr.mxu0 0.0
    %170 = vmatpush1.msra.mxu0 0.0
    %171 = vmatprep.subr.mxu0 0.0
    %172 = vmatpush1.msra.mxu0 0.0
    %173 = vmatprep.subr.mxu0 0.0
    %174 = vmatpush1.msra.mxu0 0.0
    %175 = vmatprep.subr.mxu0 0.0
    %176 = vmatpush1.msra.mxu0 0.0
    %177 = vmatprep.subr.mxu0 0.0
    %178 = vmatpush1.msra.mxu0 0.0
    %179 = vmatprep.subr.mxu0 0.0
    %180 = vmatpush1.msra.mxu0 0.0
    %181 = vmatprep.subr.mxu0 0.0
    %182 = vmatpush1.msra.mxu0 0.0
    %183 = vmatprep.subr.mxu0 0.0
    %184 = vmatpush1.msra.mxu0 0.0
    %185 = vmatprep.subr.mxu0 0.0
    %186 = vmatpush1.msra.mxu0 0.0
    %187 = vmatprep.mubr.f32.mxu0 0.0
    %188 = vmatmul.mubr.f32.gmra.mrb[0].mxu0 %v100
    %v189 = vpop.f32.mrb[0].mxu0
    %v190 = vadd.f32 %v121, %v189
    %v191 = vpop.f32.mrb[0].mxu0
    %192 = vdwg.mxu0
    %v193 = vmax.f32 %v190, 0.0
    %v194 = vld [vmem:[#allocation4] sm:$0xff]
    %v195 = vld [vmem:[#allocation4 + $0x8] sm:$0xff]
    %v196 = vld [vmem:[#allocation4 + $0x10] sm:$0xff]
    %v197 = vld [vmem:[#allocation4 + $0x18] sm:$0xff]
    %v198 = vld [vmem:[#allocation4 + $0x20] sm:$0xff]
    %v199 = vld [vmem:[#allocation4 + $0x28] sm:$0xff]
    %v200 = vld [vmem:[#allocation4 + $0x30] sm:$0xff]
    %v201 = vld [vmem:[#allocation4 + $0x38] sm:$0xff]
    %v202 = vld [vmem:[#allocation4 + $0x40] sm:$0xff]
    %v203 = vld [vmem:[#allocation4 + $0x48] sm:$0xff]
    %v204 = vld [vmem:[#allocation4 + $0x50] sm:$0xff]
    %v205 = vld [vmem:[#allocation4 + $0x58] sm:$0xff]
    %v206 = vld [vmem:[#allocation4 + $0x60] sm:$0xff]
    %v207 = vld [vmem:[#allocation4 + $0x68] sm:$0xff]
    %v208 = vld [vmem:[#allocation4 + $0x70] sm:$0xff]
    %v209 = vld [vmem:[#allocation4 + $0x78] sm:$0xff]
    %v211 = vlaneseq
    %v212 = vshrl.u32 %v211, 7
    %v213 = vsub.s32 0, %v212
    %v214 = vrot.slane %v95, %v213
    %216 = vmatprep.subr.mxu0 0.0
    %217 = vmatpush1.msra.mxu0 %v194
    %218 = vmatprep.subr.mxu0 0.0
    %219 = vmatpush1.msra.mxu0 %v195
    %220 = vmatprep.subr.mxu0 0.0
    %221 = vmatpush1.msra.mxu0 %v196
    %222 = vmatprep.subr.mxu0 0.0
    %223 = vmatpush1.msra.mxu0 %v197
    %224 = vmatprep.subr.mxu0 0.0
    %225 = vmatpush1.msra.mxu0 %v198
    %226 = vmatprep.subr.mxu0 0.0
    %227 = vmatpush1.msra.mxu0 %v199
    %228 = vmatprep.subr.mxu0 0.0
    %229 = vmatpush1.msra.mxu0 %v200
    %230 = vmatprep.subr.mxu0 0.0
    %231 = vmatpush1.msra.mxu0 %v201
    %232 = vmatprep.subr.mxu0 0.0
    %233 = vmatpush1.msra.mxu0 %v202
    %234 = vmatprep.subr.mxu0 0.0
    %235 = vmatpush1.msra.mxu0 %v203
    %236 = vmatprep.subr.mxu0 0.0
    %237 = vmatpush1.msra.mxu0 %v204
    %238 = vmatprep.subr.mxu0 0.0
    %239 = vmatpush1.msra.mxu0 %v205
    %240 = vmatprep.subr.mxu0 0.0
    %241 = vmatpush1.msra.mxu0 %v206
    %242 = vmatprep.subr.mxu0 0.0
    %243 = vmatpush1.msra.mxu0 %v207
    %244 = vmatprep.subr.mxu0 0.0
    %245 = vmatpush1.msra.mxu0 %v208
    %246 = vmatprep.subr.mxu0 0.0
    %247 = vmatpush1.msra.mxu0 %v209
    %248 = vmatprep.subr.mxu0 0.0
    %249 = vmatpush1.msra.mxu0 0.0
    %250 = vmatprep.subr.mxu0 0.0
    %251 = vmatpush1.msra.mxu0 0.0
    %252 = vmatprep.subr.mxu0 0.0
    %253 = vmatpush1.msra.mxu0 0.0
    %254 = vmatprep.subr.mxu0 0.0
    %255 = vmatpush1.msra.mxu0 0.0
    %256 = vmatprep.subr.mxu0 0.0
    %257 = vmatpush1.msra.mxu0 0.0
    %258 = vmatprep.subr.mxu0 0.0
    %259 = vmatpush1.msra.mxu0 0.0
    %260 = vmatprep.subr.mxu0 0.0
    %261 = vmatpush1.msra.mxu0 0.0
    %262 = vmatprep.subr.mxu0 0.0
    %263 = vmatpush1.msra.mxu0 0.0
    %264 = vmatprep.subr.mxu0 0.0
    %265 = vmatpush1.msra.mxu0 0.0
    %266 = vmatprep.subr.mxu0 0.0
    %267 = vmatpush1.msra.mxu0 0.0
    %268 = vmatprep.subr.mxu0 0.0
    %269 = vmatpush1.msra.mxu0 0.0
    %270 = vmatprep.subr.mxu0 0.0
    %271 = vmatpush1.msra.mxu0 0.0
    %272 = vmatprep.subr.mxu0 0.0
    %273 = vmatpush1.msra.mxu0 0.0
    %274 = vmatprep.subr.mxu0 0.0
    %275 = vmatpush1.msra.mxu0 0.0
    %276 = vmatprep.subr.mxu0 0.0
    %277 = vmatpush1.msra.mxu0 0.0
    %278 = vmatprep.subr.mxu0 0.0
    %279 = vmatpush1.msra.mxu0 0.0
    %280 = vmatprep.mubr.f32.mxu0 0.0
    %281 = vmatmul.mubr.f32.gmra.mrb[0].mxu0 %v193
    %v282 = vpop.f32.mrb[0].mxu0
    %v283 = vadd.f32 %v214, %v282
    %v284 = vpop.f32.mrb[0].mxu0
    %285 = vdwg.mxu0
    %v286 = vmax.f32 %v283, 0.0
    %v287 = vld [vmem:[#allocation6] sm:$0xff]
    %v288 = vld [vmem:[#allocation6 + $0x8] sm:$0xff]
    %v289 = vld [vmem:[#allocation6 + $0x10] sm:$0xff]
    %v290 = vld [vmem:[#allocation6 + $0x18] sm:$0xff]
    %v291 = vld [vmem:[#allocation6 + $0x20] sm:$0xff]
    %v292 = vld [vmem:[#allocation6 + $0x28] sm:$0xff]
    %v293 = vld [vmem:[#allocation6 + $0x30] sm:$0xff]
    %v294 = vld [vmem:[#allocation6 + $0x38] sm:$0xff]
    %v295 = vld [vmem:[#allocation6 + $0x40] sm:$0xff]
    %v296 = vld [vmem:[#allocation6 + $0x48] sm:$0xff]
    %v297 = vld [vmem:[#allocation6 + $0x50] sm:$0xff]
    %v298 = vld [vmem:[#allocation6 + $0x58] sm:$0xff]
    %v299 = vld [vmem:[#allocation6 + $0x60] sm:$0xff]
    %v300 = vld [vmem:[#allocation6 + $0x68] sm:$0xff]
    %v301 = vld [vmem:[#allocation6 + $0x70] sm:$0xff]
    %v302 = vld [vmem:[#allocation6 + $0x78] sm:$0xff]
    %v304 = vlaneseq
    %v305 = vshrl.u32 %v304, 7
    %v306 = vsub.s32 0, %v305
    %v307 = vrot.slane %v96, %v306
    %309 = vmatprep.subr.mxu0 0.0
    %310 = vmatpush1.msra.mxu0 %v287
    %311 = vmatprep.subr.mxu0 0.0
    %312 = vmatpush1.msra.mxu0 %v288
    %313 = vmatprep.subr.mxu0 0.0
    %314 = vmatpush1.msra.mxu0 %v289
    %315 = vmatprep.subr.mxu0 0.0
    %316 = vmatpush1.msra.mxu0 %v290
    %317 = vmatprep.subr.mxu0 0.0
    %318 = vmatpush1.msra.mxu0 %v291
    %319 = vmatprep.subr.mxu0 0.0
    %320 = vmatpush1.msra.mxu0 %v292
    %321 = vmatprep.subr.mxu0 0.0
    %322 = vmatpush1.msra.mxu0 %v293
    %323 = vmatprep.subr.mxu0 0.0
    %324 = vmatpush1.msra.mxu0 %v294
    %325 = vmatprep.subr.mxu0 0.0
    %326 = vmatpush1.msra.mxu0 %v295
    %327 = vmatprep.subr.mxu0 0.0
    %328 = vmatpush1.msra.mxu0 %v296
    %329 = vmatprep.subr.mxu0 0.0
    %330 = vmatpush1.msra.mxu0 %v297
    %331 = vmatprep.subr.mxu0 0.0
    %332 = vmatpush1.msra.mxu0 %v298
    %333 = vmatprep.subr.mxu0 0.0
    %334 = vmatpush1.msra.mxu0 %v299
    %335 = vmatprep.subr.mxu0 0.0
    %336 = vmatpush1.msra.mxu0 %v300
    %337 = vmatprep.subr.mxu0 0.0
    %338 = vmatpush1.msra.mxu0 %v301
    %339 = vmatprep.subr.mxu0 0.0
    %340 = vmatpush1.msra.mxu0 %v302
    %341 = vmatprep.subr.mxu0 0.0
    %342 = vmatpush1.msra.mxu0 0.0
    %343 = vmatprep.subr.mxu0 0.0
    %344 = vmatpush1.msra.mxu0 0.0
    %345 = vmatprep.subr.mxu0 0.0
    %346 = vmatpush1.msra.mxu0 0.0
    %347 = vmatprep.subr.mxu0 0.0
    %348 = vmatpush1.msra.mxu0 0.0
    %349 = vmatprep.subr.mxu0 0.0
    %350 = vmatpush1.msra.mxu0 0.0
    %351 = vmatprep.subr.mxu0 0.0
    %352 = vmatpush1.msra.mxu0 0.0
    %353 = vmatprep.subr.mxu0 0.0
    %354 = vmatpush1.msra.mxu0 0.0
    %355 = vmatprep.subr.mxu0 0.0
    %356 = vmatpush1.msra.mxu0 0.0
    %357 = vmatprep.subr.mxu0 0.0
    %358 = vmatpush1.msra.mxu0 0.0
    %359 = vmatprep.subr.mxu0 0.0
    %360 = vmatpush1.msra.mxu0 0.0
    %361 = vmatprep.subr.mxu0 0.0
    %362 = vmatpush1.msra.mxu0 0.0
    %363 = vmatprep.subr.mxu0 0.0
    %364 = vmatpush1.msra.mxu0 0.0
    %365 = vmatprep.subr.mxu0 0.0
    %366 = vmatpush1.msra.mxu0 0.0
    %367 = vmatprep.subr.mxu0 0.0
    %368 = vmatpush1.msra.mxu0 0.0
    %369 = vmatprep.subr.mxu0 0.0
    %370 = vmatpush1.msra.mxu0 0.0
    %371 = vmatprep.subr.mxu0 0.0
    %372 = vmatpush1.msra.mxu0 0.0
    %373 = vmatprep.mubr.f32.mxu0 0.0
    %374 = vmatmul.mubr.f32.gmra.mrb[0].mxu0 %v286
    %v375 = vpop.f32.mrb[0].mxu0
    %v376 = vadd.f32 %v307, %v375
    %v377 = vpop.f32.mrb[0].mxu0
    %378 = vdwg.mxu0
    %v379 = vld [vmem:[#allocation7] sm:$0xff]
    %v380 = vld [vmem:[#allocation7 + $0x8] sm:$0xff]
    %v381 = vld [vmem:[#allocation7 + $0x10] sm:$0xff]
    %v382 = vld [vmem:[#allocation7 + $0x18] sm:$0xff]
    %v383 = vld [vmem:[#allocation7 + $0x20] sm:$0xff]
    %v384 = vld [vmem:[#allocation7 + $0x28] sm:$0xff]
    %v385 = vld [vmem:[#allocation7 + $0x30] sm:$0xff]
    %v386 = vld [vmem:[#allocation7 + $0x38] sm:$0xff]
    %v387 = vld [vmem:[#allocation7 + $0x40] sm:$0xff]
    %v388 = vld [vmem:[#allocation7 + $0x48] sm:$0xff]
    %v389 = vld [vmem:[#allocation7 + $0x50] sm:$0xff]
    %v390 = vld [vmem:[#allocation7 + $0x58] sm:$0xff]
    %v391 = vld [vmem:[#allocation7 + $0x60] sm:$0xff]
    %v392 = vld [vmem:[#allocation7 + $0x68] sm:$0xff]
    %v393 = vld [vmem:[#allocation7 + $0x70] sm:$0xff]
    %v394 = vld [vmem:[#allocation7 + $0x78] sm:$0xff]
    %v395 = vld [vmem:[#allocation7 + $0x80] sm:$0xff]
    %v396 = vld [vmem:[#allocation7 + $0x88] sm:$0xff]
    %v397 = vld [vmem:[#allocation7 + $0x90] sm:$0xff]
    %v398 = vld [vmem:[#allocation7 + $0x98] sm:$0xff]
    %v399 = vld [vmem:[#allocation7 + $0xa0] sm:$0xff]
    %v400 = vld [vmem:[#allocation7 + $0xa8] sm:$0xff]
    %v401 = vld [vmem:[#allocation7 + $0xb0] sm:$0xff]
    %v402 = vld [vmem:[#allocation7 + $0xb8] sm:$0xff]
    %v403 = vld [vmem:[#allocation7 + $0xc0] sm:$0xff]
    %v404 = vld [vmem:[#allocation7 + $0xc8] sm:$0xff]
    %v405 = vld [vmem:[#allocation7 + $0xd0] sm:$0xff]
    %v406 = vld [vmem:[#allocation7 + $0xd8] sm:$0xff]
    %v407 = vld [vmem:[#allocation7 + $0xe0] sm:$0xff]
    %v408 = vld [vmem:[#allocation7 + $0xe8] sm:$0xff]
    %v409 = vld [vmem:[#allocation7 + $0xf0] sm:$0xff]
    %v410 = vld [vmem:[#allocation7 + $0xf8] sm:$0xff]
    %v411 = vld [vmem:[#allocation7 + $0x100] sm:$0xff]
    %v412 = vld [vmem:[#allocation7 + $0x108] sm:$0xff]
    %v413 = vld [vmem:[#allocation7 + $0x110] sm:$0xff]
    %v414 = vld [vmem:[#allocation7 + $0x118] sm:$0xff]
    %v415 = vld [vmem:[#allocation7 + $0x120] sm:$0xff]
    %v416 = vld [vmem:[#allocation7 + $0x128] sm:$0xff]
    %v417 = vld [vmem:[#allocation7 + $0x130] sm:$0xff]
    %v418 = vld [vmem:[#allocation7 + $0x138] sm:$0xff]
    %v419 = vld [vmem:[#allocation7 + $0x140] sm:$0xff]
    %v420 = vld [vmem:[#allocation7 + $0x148] sm:$0xff]
    %v421 = vld [vmem:[#allocation7 + $0x150] sm:$0xff]
    %v422 = vld [vmem:[#allocation7 + $0x158] sm:$0xff]
    %v423 = vld [vmem:[#allocation7 + $0x160] sm:$0xff]
    %v424 = vld [vmem:[#allocation7 + $0x168] sm:$0xff]
    %v425 = vld [vmem:[#allocation7 + $0x170] sm:$0xff]
    %v426 = vld [vmem:[#allocation7 + $0x178] sm:$0xff]
    %v427 = vld [vmem:[#allocation7 + $0x180] sm:$0xff]
    %v428 = vld [vmem:[#allocation7 + $0x188] sm:$0xff]
    %v429 = vld [vmem:[#allocation7 + $0x190] sm:$0xff]
    %v430 = vld [vmem:[#allocation7 + $0x198] sm:$0xff]
    %v431 = vld [vmem:[#allocation7 + $0x1a0] sm:$0xff]
    %v432 = vld [vmem:[#allocation7 + $0x1a8] sm:$0xff]
    %v433 = vld [vmem:[#allocation7 + $0x1b0] sm:$0xff]
    %v434 = vld [vmem:[#allocation7 + $0x1b8] sm:$0xff]
    %v435 = vld [vmem:[#allocation7 + $0x1c0] sm:$0xff]
    %v436 = vld [vmem:[#allocation7 + $0x1c8] sm:$0xff]
    %v437 = vld [vmem:[#allocation7 + $0x1d0] sm:$0xff]
    %v438 = vld [vmem:[#allocation7 + $0x1d8] sm:$0xff]
    %v439 = vld [vmem:[#allocation7 + $0x1e0] sm:$0xff]
    %v440 = vld [vmem:[#allocation7 + $0x1e8] sm:$0xff]
    %v441 = vld [vmem:[#allocation7 + $0x1f0] sm:$0xff]
    %v442 = vld [vmem:[#allocation7 + $0x1f8] sm:$0xff]
    %v443 = vld [vmem:[#allocation7 + $0x200] sm:$0xff]
    %v444 = vld [vmem:[#allocation7 + $0x208] sm:$0xff]
    %v445 = vld [vmem:[#allocation7 + $0x210] sm:$0xff]
    %v446 = vld [vmem:[#allocation7 + $0x218] sm:$0xff]
    %v447 = vld [vmem:[#allocation7 + $0x220] sm:$0xff]
    %v448 = vld [vmem:[#allocation7 + $0x228] sm:$0xff]
    %v449 = vld [vmem:[#allocation7 + $0x230] sm:$0xff]
    %v450 = vld [vmem:[#allocation7 + $0x238] sm:$0xff]
    %v451 = vld [vmem:[#allocation7 + $0x240] sm:$0xff]
    %v452 = vld [vmem:[#allocation7 + $0x248] sm:$0xff]
    %v453 = vld [vmem:[#allocation7 + $0x250] sm:$0xff]
    %v454 = vld [vmem:[#allocation7 + $0x258] sm:$0xff]
    %v455 = vld [vmem:[#allocation7 + $0x260] sm:$0xff]
    %v456 = vld [vmem:[#allocation7 + $0x268] sm:$0xff]
    %v457 = vld [vmem:[#allocation7 + $0x270] sm:$0xff]
    %v458 = vld [vmem:[#allocation7 + $0x278] sm:$0xff]
    %v459 = vld [vmem:[#allocation7 + $0x280] sm:$0xff]
    %v460 = vld [vmem:[#allocation7 + $0x288] sm:$0xff]
    %v461 = vld [vmem:[#allocation7 + $0x290] sm:$0xff]
    %v462 = vld [vmem:[#allocation7 + $0x298] sm:$0xff]
    %v463 = vld [vmem:[#allocation7 + $0x2a0] sm:$0xff]
    %v464 = vld [vmem:[#allocation7 + $0x2a8] sm:$0xff]
    %v465 = vld [vmem:[#allocation7 + $0x2b0] sm:$0xff]
    %v466 = vld [vmem:[#allocation7 + $0x2b8] sm:$0xff]
    %v467 = vld [vmem:[#allocation7 + $0x2c0] sm:$0xff]
    %v468 = vld [vmem:[#allocation7 + $0x2c8] sm:$0xff]
    %v469 = vld [vmem:[#allocation7 + $0x2d0] sm:$0xff]
    %v470 = vld [vmem:[#allocation7 + $0x2d8] sm:$0xff]
    %v471 = vld [vmem:[#allocation7 + $0x2e0] sm:$0xff]
    %v472 = vld [vmem:[#allocation7 + $0x2e8] sm:$0xff]
    %v473 = vld [vmem:[#allocation7 + $0x2f0] sm:$0xff]
    %v474 = vld [vmem:[#allocation7 + $0x2f8] sm:$0xff]
    %v475 = vld [vmem:[#allocation7 + $0x300] sm:$0xff]
    %v476 = vld [vmem:[#allocation7 + $0x308] sm:$0xff]
    %v477 = vld [vmem:[#allocation7 + $0x310] sm:$0xff]
    %v478 = vld [vmem:[#allocation7 + $0x318] sm:$0xff]
    %v479 = vld [vmem:[#allocation7 + $0x320] sm:$0xff]
    %v480 = vld [vmem:[#allocation7 + $0x328] sm:$0xff]
    %v481 = vld [vmem:[#allocation7 + $0x330] sm:$0xff]
    %v482 = vld [vmem:[#allocation7 + $0x338] sm:$0xff]
    %v483 = vld [vmem:[#allocation7 + $0x340] sm:$0xff]
    %v484 = vld [vmem:[#allocation7 + $0x348] sm:$0xff]
    %v485 = vld [vmem:[#allocation7 + $0x350] sm:$0xff]
    %v486 = vld [vmem:[#allocation7 + $0x358] sm:$0xff]
    %v487 = vld [vmem:[#allocation7 + $0x360] sm:$0xff]
    %v488 = vld [vmem:[#allocation7 + $0x368] sm:$0xff]
    %v489 = vld [vmem:[#allocation7 + $0x370] sm:$0xff]
    %v490 = vld [vmem:[#allocation7 + $0x378] sm:$0xff]
    %v491 = vld [vmem:[#allocation7 + $0x380] sm:$0xff]
    %v492 = vld [vmem:[#allocation7 + $0x388] sm:$0xff]
    %v493 = vld [vmem:[#allocation7 + $0x390] sm:$0xff]
    %v494 = vld [vmem:[#allocation7 + $0x398] sm:$0xff]
    %v495 = vld [vmem:[#allocation7 + $0x3a0] sm:$0xff]
    %v496 = vld [vmem:[#allocation7 + $0x3a8] sm:$0xff]
    %v497 = vld [vmem:[#allocation7 + $0x3b0] sm:$0xff]
    %v498 = vld [vmem:[#allocation7 + $0x3b8] sm:$0xff]
    %v499 = vld [vmem:[#allocation7 + $0x3c0] sm:$0xff]
    %v500 = vld [vmem:[#allocation7 + $0x3c8] sm:$0xff]
    %v501 = vld [vmem:[#allocation7 + $0x3d0] sm:$0xff]
    %v502 = vld [vmem:[#allocation7 + $0x3d8] sm:$0xff]
    %v503 = vld [vmem:[#allocation7 + $0x3e0] sm:$0xff]
    %v504 = vld [vmem:[#allocation7 + $0x3e8] sm:$0xff]
    %v505 = vld [vmem:[#allocation7 + $0x3f0] sm:$0xff]
    %v506 = vld [vmem:[#allocation7 + $0x3f8] sm:$0xff]
    %v507 = vld [vmem:[#allocation7 + $0x400] sm:$0xff]
    %v508 = vld [vmem:[#allocation7 + $0x408] sm:$0xff]
    %v509 = vld [vmem:[#allocation7 + $0x410] sm:$0xff]
    %v510 = vld [vmem:[#allocation7 + $0x418] sm:$0xff]
    %v511 = vld [vmem:[#allocation7 + $0x420] sm:$0xff]
    %v512 = vld [vmem:[#allocation7 + $0x428] sm:$0xff]
    %v513 = vld [vmem:[#allocation7 + $0x430] sm:$0xff]
    %v514 = vld [vmem:[#allocation7 + $0x438] sm:$0xff]
    %v515 = vld [vmem:[#allocation7 + $0x440] sm:$0xff]
    %v516 = vld [vmem:[#allocation7 + $0x448] sm:$0xff]
    %v517 = vld [vmem:[#allocation7 + $0x450] sm:$0xff]
    %v518 = vld [vmem:[#allocation7 + $0x458] sm:$0xff]
    %v519 = vld [vmem:[#allocation7 + $0x460] sm:$0xff]
    %v520 = vld [vmem:[#allocation7 + $0x468] sm:$0xff]
    %v521 = vld [vmem:[#allocation7 + $0x470] sm:$0xff]
    %v522 = vld [vmem:[#allocation7 + $0x478] sm:$0xff]
    %v523 = vld [vmem:[#allocation7 + $0x480] sm:$0xff]
    %v524 = vld [vmem:[#allocation7 + $0x488] sm:$0xff]
    %v525 = vld [vmem:[#allocation7 + $0x490] sm:$0xff]
    %v526 = vld [vmem:[#allocation7 + $0x498] sm:$0xff]
    %v527 = vld [vmem:[#allocation7 + $0x4a0] sm:$0xff]
    %v528 = vld [vmem:[#allocation7 + $0x4a8] sm:$0xff]
    %v529 = vld [vmem:[#allocation7 + $0x4b0] sm:$0xff]
    %v530 = vld [vmem:[#allocation7 + $0x4b8] sm:$0xff]
    %v531 = vld [vmem:[#allocation7 + $0x4c0] sm:$0xff]
    %v532 = vld [vmem:[#allocation7 + $0x4c8] sm:$0xff]
    %v533 = vld [vmem:[#allocation7 + $0x4d0] sm:$0xff]
    %v534 = vld [vmem:[#allocation7 + $0x4d8] sm:$0xff]
    %v535 = vld [vmem:[#allocation7 + $0x4e0] sm:$0xff]
    %v536 = vld [vmem:[#allocation7 + $0x4e8] sm:$0xff]
    %v537 = vld [vmem:[#allocation7 + $0x4f0] sm:$0xff]
    %v538 = vld [vmem:[#allocation7 + $0x4f8] sm:$0xff]
    %v539 = vld [vmem:[#allocation7 + $0x500] sm:$0xff]
    %v540 = vld [vmem:[#allocation7 + $0x508] sm:$0xff]
    %v541 = vld [vmem:[#allocation7 + $0x510] sm:$0xff]
    %v542 = vld [vmem:[#allocation7 + $0x518] sm:$0xff]
    %v543 = vld [vmem:[#allocation7 + $0x520] sm:$0xff]
    %v544 = vld [vmem:[#allocation7 + $0x528] sm:$0xff]
    %v545 = vld [vmem:[#allocation7 + $0x530] sm:$0xff]
    %v546 = vld [vmem:[#allocation7 + $0x538] sm:$0xff]
    %v547 = vld [vmem:[#allocation7 + $0x540] sm:$0xff]
    %v548 = vld [vmem:[#allocation7 + $0x548] sm:$0xff]
    %v549 = vld [vmem:[#allocation7 + $0x550] sm:$0xff]
    %v550 = vld [vmem:[#allocation7 + $0x558] sm:$0xff]
    %v551 = vld [vmem:[#allocation7 + $0x560] sm:$0xff]
    %v552 = vld [vmem:[#allocation7 + $0x568] sm:$0xff]
    %v553 = vld [vmem:[#allocation7 + $0x570] sm:$0xff]
    %v554 = vld [vmem:[#allocation7 + $0x578] sm:$0xff]
    %v555 = vld [vmem:[#allocation7 + $0x580] sm:$0xff]
    %v556 = vld [vmem:[#allocation7 + $0x588] sm:$0xff]
    %v557 = vld [vmem:[#allocation7 + $0x590] sm:$0xff]
    %v558 = vld [vmem:[#allocation7 + $0x598] sm:$0xff]
    %v559 = vld [vmem:[#allocation7 + $0x5a0] sm:$0xff]
    %v560 = vld [vmem:[#allocation7 + $0x5a8] sm:$0xff]
    %v561 = vld [vmem:[#allocation7 + $0x5b0] sm:$0xff]
    %v562 = vld [vmem:[#allocation7 + $0x5b8] sm:$0xff]
    %v563 = vld [vmem:[#allocation7 + $0x5c0] sm:$0xff]
    %v564 = vld [vmem:[#allocation7 + $0x5c8] sm:$0xff]
    %v565 = vld [vmem:[#allocation7 + $0x5d0] sm:$0xff]
    %v566 = vld [vmem:[#allocation7 + $0x5d8] sm:$0xff]
    %v567 = vld [vmem:[#allocation7 + $0x5e0] sm:$0xff]
    %v568 = vld [vmem:[#allocation7 + $0x5e8] sm:$0xff]
    %v569 = vld [vmem:[#allocation7 + $0x5f0] sm:$0xff]
    %v570 = vld [vmem:[#allocation7 + $0x5f8] sm:$0xff]
    %v571 = vld [vmem:[#allocation7 + $0x600] sm:$0xff]
    %v572 = vld [vmem:[#allocation7 + $0x608] sm:$0xff]
    %v573 = vld [vmem:[#allocation7 + $0x610] sm:$0xff]
    %v574 = vld [vmem:[#allocation7 + $0x618] sm:$0xff]
    %v575 = vld [vmem:[#allocation7 + $0x620] sm:$0xff]
    %v576 = vld [vmem:[#allocation7 + $0x628] sm:$0xff]
    %v577 = vld [vmem:[#allocation7 + $0x630] sm:$0xff]
    %v578 = vld [vmem:[#allocation7 + $0x638] sm:$0xff]
    %v579 = vld [vmem:[#allocation7 + $0x640] sm:$0xff]
    %v580 = vld [vmem:[#allocation7 + $0x648] sm:$0xff]
    %v581 = vld [vmem:[#allocation7 + $0x650] sm:$0xff]
    %v582 = vld [vmem:[#allocation7 + $0x658] sm:$0xff]
    %v583 = vld [vmem:[#allocation7 + $0x660] sm:$0xff]
    %v584 = vld [vmem:[#allocation7 + $0x668] sm:$0xff]
    %v585 = vld [vmem:[#allocation7 + $0x670] sm:$0xff]
    %v586 = vld [vmem:[#allocation7 + $0x678] sm:$0xff]
    %v587 = vld [vmem:[#allocation7 + $0x680] sm:$0xff]
    %v588 = vld [vmem:[#allocation7 + $0x688] sm:$0xff]
    %v589 = vld [vmem:[#allocation7 + $0x690] sm:$0xff]
    %v590 = vld [vmem:[#allocation7 + $0x698] sm:$0xff]
    %v591 = vld [vmem:[#allocation7 + $0x6a0] sm:$0xff]
    %v592 = vld [vmem:[#allocation7 + $0x6a8] sm:$0xff]
    %v593 = vld [vmem:[#allocation7 + $0x6b0] sm:$0xff]
    %v594 = vld [vmem:[#allocation7 + $0x6b8] sm:$0xff]
    %v595 = vld [vmem:[#allocation7 + $0x6c0] sm:$0xff]
    %v596 = vld [vmem:[#allocation7 + $0x6c8] sm:$0xff]
    %v597 = vld [vmem:[#allocation7 + $0x6d0] sm:$0xff]
    %v598 = vld [vmem:[#allocation7 + $0x6d8] sm:$0xff]
    %v599 = vld [vmem:[#allocation7 + $0x6e0] sm:$0xff]
    %v600 = vld [vmem:[#allocation7 + $0x6e8] sm:$0xff]
    %v601 = vld [vmem:[#allocation7 + $0x6f0] sm:$0xff]
    %v602 = vld [vmem:[#allocation7 + $0x6f8] sm:$0xff]
    %v603 = vld [vmem:[#allocation7 + $0x700] sm:$0xff]
    %v604 = vld [vmem:[#allocation7 + $0x708] sm:$0xff]
    %v605 = vld [vmem:[#allocation7 + $0x710] sm:$0xff]
    %v606 = vld [vmem:[#allocation7 + $0x718] sm:$0xff]
    %v607 = vld [vmem:[#allocation7 + $0x720] sm:$0xff]
    %v608 = vld [vmem:[#allocation7 + $0x728] sm:$0xff]
    %v609 = vld [vmem:[#allocation7 + $0x730] sm:$0xff]
    %v610 = vld [vmem:[#allocation7 + $0x738] sm:$0xff]
    %v611 = vld [vmem:[#allocation7 + $0x740] sm:$0xff]
    %v612 = vld [vmem:[#allocation7 + $0x748] sm:$0xff]
    %v613 = vld [vmem:[#allocation7 + $0x750] sm:$0xff]
    %v614 = vld [vmem:[#allocation7 + $0x758] sm:$0xff]
    %v615 = vld [vmem:[#allocation7 + $0x760] sm:$0xff]
    %v616 = vld [vmem:[#allocation7 + $0x768] sm:$0xff]
    %v617 = vld [vmem:[#allocation7 + $0x770] sm:$0xff]
    %v618 = vld [vmem:[#allocation7 + $0x778] sm:$0xff]
    %v619 = vld [vmem:[#allocation7 + $0x780] sm:$0xff]
    %v620 = vld [vmem:[#allocation7 + $0x788] sm:$0xff]
    %v621 = vld [vmem:[#allocation7 + $0x790] sm:$0xff]
    %v622 = vld [vmem:[#allocation7 + $0x798] sm:$0xff]
    %v623 = vld [vmem:[#allocation7 + $0x7a0] sm:$0xff]
    %v624 = vld [vmem:[#allocation7 + $0x7a8] sm:$0xff]
    %v625 = vld [vmem:[#allocation7 + $0x7b0] sm:$0xff]
    %v626 = vld [vmem:[#allocation7 + $0x7b8] sm:$0xff]
    %v627 = vld [vmem:[#allocation7 + $0x7c0] sm:$0xff]
    %v628 = vld [vmem:[#allocation7 + $0x7c8] sm:$0xff]
    %v629 = vld [vmem:[#allocation7 + $0x7d0] sm:$0xff]
    %v630 = vld [vmem:[#allocation7 + $0x7d8] sm:$0xff]
    %v631 = vld [vmem:[#allocation7 + $0x7e0] sm:$0xff]
    %v632 = vld [vmem:[#allocation7 + $0x7e8] sm:$0xff]
    %v633 = vld [vmem:[#allocation7 + $0x7f0] sm:$0xff]
    %v634 = vld [vmem:[#allocation7 + $0x7f8] sm:$0xff]
    %v635 = vld [vmem:[#allocation9] sm:$0xff]
    %v636 = vld [vmem:[#allocation9 + $0x8] sm:$0xff]
    %v637 = vld [vmem:[#allocation9 + $0x10] sm:$0xff]
    %v638 = vld [vmem:[#allocation9 + $0x18] sm:$0xff]
    %v639 = vld [vmem:[#allocation9 + $0x20] sm:$0xff]
    %v640 = vld [vmem:[#allocation9 + $0x28] sm:$0xff]
    %v641 = vld [vmem:[#allocation9 + $0x30] sm:$0xff]
    %v642 = vld [vmem:[#allocation9 + $0x38] sm:$0xff]
    %v643 = vld [vmem:[#allocation9 + $0x40] sm:$0xff]
    %v644 = vld [vmem:[#allocation9 + $0x48] sm:$0xff]
    %v645 = vld [vmem:[#allocation9 + $0x50] sm:$0xff]
    %v646 = vld [vmem:[#allocation9 + $0x58] sm:$0xff]
    %v647 = vld [vmem:[#allocation9 + $0x60] sm:$0xff]
    %v648 = vld [vmem:[#allocation9 + $0x68] sm:$0xff]
    %v649 = vld [vmem:[#allocation9 + $0x70] sm:$0xff]
    %v650 = vld [vmem:[#allocation9 + $0x78] sm:$0xff]
    %v651 = vlaneseq
    %v652 = vand.u32 %v651, 127
    %v654 = vlaneseq
    %v655 = vshrl.u32 %v654, 7
    %v656 = vsub.s32 0, %v655
    %v657 = vrot.slane %v97, %v656
    %v658 = vlaneseq
    %v659 = vshrl.u32 %v658, 7
    %v660 = vsub.s32 1, %v659
    %v661 = vrot.slane %v97, %v660
    %v662 = vlaneseq
    %v663 = vshrl.u32 %v662, 7
    %v664 = vsub.s32 2, %v663
    %v665 = vrot.slane %v97, %v664
    %v666 = vlaneseq
    %v667 = vshrl.u32 %v666, 7
    %v668 = vsub.s32 3, %v667
    %v669 = vrot.slane %v97, %v668
    %674 = vmatprep.subr.mxu0 %v380
    %675 = vmatpush1.msra.mxu0 %v379
    %676 = vmatprep.subr.mxu0 %v384
    %677 = vmatpush1.msra.mxu0 %v383
    %678 = vmatprep.subr.mxu0 %v388
    %679 = vmatpush1.msra.mxu0 %v387
    %680 = vmatprep.subr.mxu0 %v392
    %681 = vmatpush1.msra.mxu0 %v391
    %682 = vmatprep.subr.mxu0 %v396
    %683 = vmatpush1.msra.mxu0 %v395
    %684 = vmatprep.subr.mxu0 %v400
    %685 = vmatpush1.msra.mxu0 %v399
    %686 = vmatprep.subr.mxu0 %v404
    %687 = vmatpush1.msra.mxu0 %v403
    %688 = vmatprep.subr.mxu0 %v408
    %689 = vmatpush1.msra.mxu0 %v407
    %690 = vmatprep.subr.mxu0 %v412
    %691 = vmatpush1.msra.mxu0 %v411
    %692 = vmatprep.subr.mxu0 %v416
    %693 = vmatpush1.msra.mxu0 %v415
    %694 = vmatprep.subr.mxu0 %v420
    %695 = vmatpush1.msra.mxu0 %v419
    %696 = vmatprep.subr.mxu0 %v424
    %697 = vmatpush1.msra.mxu0 %v423
    %698 = vmatprep.subr.mxu0 %v428
    %699 = vmatpush1.msra.mxu0 %v427
    %700 = vmatprep.subr.mxu0 %v432
    %701 = vmatpush1.msra.mxu0 %v431
    %702 = vmatprep.subr.mxu0 %v436
    %703 = vmatpush1.msra.mxu0 %v435
    %704 = vmatprep.subr.mxu0 %v440
    %705 = vmatpush1.msra.mxu0 %v439
    %706 = vmatprep.subr.mxu0 %v444
    %707 = vmatpush1.msra.mxu0 %v443
    %708 = vmatprep.subr.mxu0 %v448
    %709 = vmatpush1.msra.mxu0 %v447
    %710 = vmatprep.subr.mxu0 %v452
    %711 = vmatpush1.msra.mxu0 %v451
    %712 = vmatprep.subr.mxu0 %v456
    %713 = vmatpush1.msra.mxu0 %v455
    %714 = vmatprep.subr.mxu0 %v460
    %715 = vmatpush1.msra.mxu0 %v459
    %716 = vmatprep.subr.mxu0 %v464
    %717 = vmatpush1.msra.mxu0 %v463
    %718 = vmatprep.subr.mxu0 %v468
    %719 = vmatpush1.msra.mxu0 %v467
    %720 = vmatprep.subr.mxu0 %v472
    %721 = vmatpush1.msra.mxu0 %v471
    %722 = vmatprep.subr.mxu0 %v476
    %723 = vmatpush1.msra.mxu0 %v475
    %724 = vmatprep.subr.mxu0 %v480
    %725 = vmatpush1.msra.mxu0 %v479
    %726 = vmatprep.subr.mxu0 %v484
    %727 = vmatpush1.msra.mxu0 %v483
    %728 = vmatprep.subr.mxu0 %v488
    %729 = vmatpush1.msra.mxu0 %v487
    %730 = vmatprep.subr.mxu0 %v492
    %731 = vmatpush1.msra.mxu0 %v491
    %732 = vmatprep.subr.mxu0 %v496
    %733 = vmatpush1.msra.mxu0 %v495
    %734 = vmatprep.subr.mxu0 %v500
    %735 = vmatpush1.msra.mxu0 %v499
    %736 = vmatprep.subr.mxu0 %v504
    %737 = vmatpush1.msra.mxu0 %v503
    %738 = vmatprep.mubr.f32.mxu0 %v376
    %739 = vmatmul.mubr.f32.gmra.mrb[0].mxu0 1.0
    %v740 = vpop.f32.mrb[0].mxu0
    %v741 = vadd.f32 %v657, %v740
    %v742 = vpop.f32.mrb[0].mxu0
    %v743 = vadd.f32 %v661, %v742
    %744 = vdwg.mxu0
    %745 = vmatprep.subr.mxu0 %v382
    %746 = vmatpush1.msra.mxu0 %v381
    %747 = vmatprep.subr.mxu0 %v386
    %748 = vmatpush1.msra.mxu0 %v385
    %749 = vmatprep.subr.mxu0 %v390
    %750 = vmatpush1.msra.mxu0 %v389
    %751 = vmatprep.subr.mxu0 %v394
    %752 = vmatpush1.msra.mxu0 %v393
    %753 = vmatprep.subr.mxu0 %v398
    %754 = vmatpush1.msra.mxu0 %v397
    %755 = vmatprep.subr.mxu0 %v402
    %756 = vmatpush1.msra.mxu0 %v401
    %757 = vmatprep.subr.mxu0 %v406
    %758 = vmatpush1.msra.mxu0 %v405
    %759 = vmatprep.subr.mxu0 %v410
    %760 = vmatpush1.msra.mxu0 %v409
    %761 = vmatprep.subr.mxu0 %v414
    %762 = vmatpush1.msra.mxu0 %v413
    %763 = vmatprep.subr.mxu0 %v418
    %764 = vmatpush1.msra.mxu0 %v417
    %765 = vmatprep.subr.mxu0 %v422
    %766 = vmatpush1.msra.mxu0 %v421
    %767 = vmatprep.subr.mxu0 %v426
    %768 = vmatpush1.msra.mxu0 %v425
    %769 = vmatprep.subr.mxu0 %v430
    %770 = vmatpush1.msra.mxu0 %v429
    %771 = vmatprep.subr.mxu0 %v434
    %772 = vmatpush1.msra.mxu0 %v433
    %773 = vmatprep.subr.mxu0 %v438
    %774 = vmatpush1.msra.mxu0 %v437
    %775 = vmatprep.subr.mxu0 %v442
    %776 = vmatpush1.msra.mxu0 %v441
    %777 = vmatprep.subr.mxu0 %v446
    %778 = vmatpush1.msra.mxu0 %v445
    %779 = vmatprep.subr.mxu0 %v450
    %780 = vmatpush1.msra.mxu0 %v449
    %781 = vmatprep.subr.mxu0 %v454
    %782 = vmatpush1.msra.mxu0 %v453
    %783 = vmatprep.subr.mxu0 %v458
    %784 = vmatpush1.msra.mxu0 %v457
    %785 = vmatprep.subr.mxu0 %v462
    %786 = vmatpush1.msra.mxu0 %v461
    %787 = vmatprep.subr.mxu0 %v466
    %788 = vmatpush1.msra.mxu0 %v465
    %789 = vmatprep.subr.mxu0 %v470
    %790 = vmatpush1.msra.mxu0 %v469
    %791 = vmatprep.subr.mxu0 %v474
    %792 = vmatpush1.msra.mxu0 %v473
    %793 = vmatprep.subr.mxu0 %v478
    %794 = vmatpush1.msra.mxu0 %v477
    %795 = vmatprep.subr.mxu0 %v482
    %796 = vmatpush1.msra.mxu0 %v481
    %797 = vmatprep.subr.mxu0 %v486
    %798 = vmatpush1.msra.mxu0 %v485
    %799 = vmatprep.subr.mxu0 %v490
    %800 = vmatpush1.msra.mxu0 %v489
    %801 = vmatprep.subr.mxu0 %v494
    %802 = vmatpush1.msra.mxu0 %v493
    %803 = vmatprep.subr.mxu0 %v498
    %804 = vmatpush1.msra.mxu0 %v497
    %805 = vmatprep.subr.mxu0 %v502
    %806 = vmatpush1.msra.mxu0 %v501
    %807 = vmatprep.subr.mxu0 %v506
    %808 = vmatpush1.msra.mxu0 %v505
    %809 = vmatprep.mubr.f32.mxu0 %v376
    %810 = vmatmul.mubr.f32.gmra.mrb[0].mxu0 1.0
    %v811 = vpop.f32.mrb[0].mxu0
    %v812 = vadd.f32 %v665, %v811
    %v813 = vpop.f32.mrb[0].mxu0
    %v814 = vadd.f32 %v669, %v813
    %815 = vdwg.mxu0
    %v816 = vxor.u32 %v741, 2147483648
    %v817 = vmul.f32 %v816, 1.442695
    %v818 = vpow.pop %v817
    %v819 = vadd.f32 %v818, 1.0
    %v820 = vrcp.pop %v819
    %v821 = vmul.f32 1.0, %v820
    %v822 = vxor.u32 %v743, 2147483648
    %v823 = vmul.f32 %v822, 1.442695
    %v824 = vpow.pop %v823
    %v825 = vadd.f32 %v824, 1.0
    %v826 = vrcp.pop %v825
    %v827 = vmul.f32 1.0, %v826
    %v828 = vtanh.pop %v812
    %v829 = vxor.u32 %v814, 2147483648
    %v830 = vmul.f32 %v829, 1.442695
    %v831 = vpow.pop %v830
    %v832 = vadd.f32 %v831, 1.0
    %v833 = vrcp.pop %v832
    %v834 = vmul.f32 1.0, %v833
    %v835 = vmul.f32 %v827, 0.0
    %v836 = vmul.f32 %v821, %v828
    %v837 = vadd.f32 %v835, %v836
    %v838 = vtanh.pop %v837
    %v839 = vmul.f32 %v834, %v838
    %v841 = vlaneseq
    %v842 = vshrl.u32 %v841, 7
    %v843 = vsub.s32 0, %v842
    %v844 = vrot.slane %v98, %v843
    %v845 = vlaneseq
    %v846 = vshrl.u32 %v845, 7
    %v847 = vsub.s32 1, %v846
    %v848 = vrot.slane %v98, %v847
    %v849 = vlaneseq
    %v850 = vshrl.u32 %v849, 7
    %v851 = vsub.s32 2, %v850
    %v852 = vrot.slane %v98, %v851
    %v853 = vlaneseq
    %v854 = vshrl.u32 %v853, 7
    %v855 = vsub.s32 3, %v854
    %v856 = vrot.slane %v98, %v855
    %861 = vmatprep.subr.mxu0 %v508
    %862 = vmatpush1.msra.mxu0 %v507
    %863 = vmatprep.subr.mxu0 %v512
    %864 = vmatpush1.msra.mxu0 %v511
    %865 = vmatprep.subr.mxu0 %v516
    %866 = vmatpush1.msra.mxu0 %v515
    %867 = vmatprep.subr.mxu0 %v520
    %868 = vmatpush1.msra.mxu0 %v519
    %869 = vmatprep.subr.mxu0 %v524
    %870 = vmatpush1.msra.mxu0 %v523
    %871 = vmatprep.subr.mxu0 %v528
    %872 = vmatpush1.msra.mxu0 %v527
    %873 = vmatprep.subr.mxu0 %v532
    %874 = vmatpush1.msra.mxu0 %v531
    %875 = vmatprep.subr.mxu0 %v536
    %876 = vmatpush1.msra.mxu0 %v535
    %877 = vmatprep.subr.mxu0 %v540
    %878 = vmatpush1.msra.mxu0 %v539
    %879 = vmatprep.subr.mxu0 %v544
    %880 = vmatpush1.msra.mxu0 %v543
    %881 = vmatprep.subr.mxu0 %v548
    %882 = vmatpush1.msra.mxu0 %v547
    %883 = vmatprep.subr.mxu0 %v552
    %884 = vmatpush1.msra.mxu0 %v551
    %885 = vmatprep.subr.mxu0 %v556
    %886 = vmatpush1.msra.mxu0 %v555
    %887 = vmatprep.subr.mxu0 %v560
    %888 = vmatpush1.msra.mxu0 %v559
    %889 = vmatprep.subr.mxu0 %v564
    %890 = vmatpush1.msra.mxu0 %v563
    %891 = vmatprep.subr.mxu0 %v568
    %892 = vmatpush1.msra.mxu0 %v567
    %893 = vmatprep.subr.mxu0 %v572
    %894 = vmatpush1.msra.mxu0 %v571
    %895 = vmatprep.subr.mxu0 %v576
    %896 = vmatpush1.msra.mxu0 %v575
    %897 = vmatprep.subr.mxu0 %v580
    %898 = vmatpush1.msra.mxu0 %v579
    %899 = vmatprep.subr.mxu0 %v584
    %900 = vmatpush1.msra.mxu0 %v583
    %901 = vmatprep.subr.mxu0 %v588
    %902 = vmatpush1.msra.mxu0 %v587
    %903 = vmatprep.subr.mxu0 %v592
    %904 = vmatpush1.msra.mxu0 %v591
    %905 = vmatprep.subr.mxu0 %v596
    %906 = vmatpush1.msra.mxu0 %v595
    %907 = vmatprep.subr.mxu0 %v600
    %908 = vmatpush1.msra.mxu0 %v599
    %909 = vmatprep.subr.mxu0 %v604
    %910 = vmatpush1.msra.mxu0 %v603
    %911 = vmatprep.subr.mxu0 %v608
    %912 = vmatpush1.msra.mxu0 %v607
    %913 = vmatprep.subr.mxu0 %v612
    %914 = vmatpush1.msra.mxu0 %v611
    %915 = vmatprep.subr.mxu0 %v616
    %916 = vmatpush1.msra.mxu0 %v615
    %917 = vmatprep.subr.mxu0 %v620
    %918 = vmatpush1.msra.mxu0 %v619
    %919 = vmatprep.subr.mxu0 %v624
    %920 = vmatpush1.msra.mxu0 %v623
    %921 = vmatprep.subr.mxu0 %v628
    %922 = vmatpush1.msra.mxu0 %v627
    %923 = vmatprep.subr.mxu0 %v632
    %924 = vmatpush1.msra.mxu0 %v631
    %925 = vmatprep.mubr.f32.mxu0 %v376
    %926 = vmatmul.mubr.f32.gmra.mrb[0].mxu0 %v839
    %v927 = vpop.f32.mrb[0].mxu0
    %v928 = vadd.f32 %v844, %v927
    %v929 = vpop.f32.mrb[0].mxu0
    %v930 = vadd.f32 %v848, %v929
    %931 = vdwg.mxu0
    %932 = vmatprep.subr.mxu0 %v510
    %933 = vmatpush1.msra.mxu0 %v509
    %934 = vmatprep.subr.mxu0 %v514
    %935 = vmatpush1.msra.mxu0 %v513
    %936 = vmatprep.subr.mxu0 %v518
    %937 = vmatpush1.msra.mxu0 %v517
    %938 = vmatprep.subr.mxu0 %v522
    %939 = vmatpush1.msra.mxu0 %v521
    %940 = vmatprep.subr.mxu0 %v526
    %941 = vmatpush1.msra.mxu0 %v525
    %942 = vmatprep.subr.mxu0 %v530
    %943 = vmatpush1.msra.mxu0 %v529
    %944 = vmatprep.subr.mxu0 %v534
    %945 = vmatpush1.msra.mxu0 %v533
    %946 = vmatprep.subr.mxu0 %v538
    %947 = vmatpush1.msra.mxu0 %v537
    %948 = vmatprep.subr.mxu0 %v542
    %949 = vmatpush1.msra.mxu0 %v541
    %950 = vmatprep.subr.mxu0 %v546
    %951 = vmatpush1.msra.mxu0 %v545
    %952 = vmatprep.subr.mxu0 %v550
    %953 = vmatpush1.msra.mxu0 %v549
    %954 = vmatprep.subr.mxu0 %v554
    %955 = vmatpush1.msra.mxu0 %v553
    %956 = vmatprep.subr.mxu0 %v558
    %957 = vmatpush1.msra.mxu0 %v557
    %958 = vmatprep.subr.mxu0 %v562
    %959 = vmatpush1.msra.mxu0 %v561
    %960 = vmatprep.subr.mxu0 %v566
    %961 = vmatpush1.msra.mxu0 %v565
    %962 = vmatprep.subr.mxu0 %v570
    %963 = vmatpush1.msra.mxu0 %v569
    %964 = vmatprep.subr.mxu0 %v574
    %965 = vmatpush1.msra.mxu0 %v573
    %966 = vmatprep.subr.mxu0 %v578
    %967 = vmatpush1.msra.mxu0 %v577
    %968 = vmatprep.subr.mxu0 %v582
    %969 = vmatpush1.msra.mxu0 %v581
    %970 = vmatprep.subr.mxu0 %v586
    %971 = vmatpush1.msra.mxu0 %v585
    %972 = vmatprep.subr.mxu0 %v590
    %973 = vmatpush1.msra.mxu0 %v589
    %974 = vmatprep.subr.mxu0 %v594
    %975 = vmatpush1.msra.mxu0 %v593
    %976 = vmatprep.subr.mxu0 %v598
    %977 = vmatpush1.msra.mxu0 %v597
    %978 = vmatprep.subr.mxu0 %v602
    %979 = vmatpush1.msra.mxu0 %v601
    %980 = vmatprep.subr.mxu0 %v606
    %981 = vmatpush1.msra.mxu0 %v605
    %982 = vmatprep.subr.mxu0 %v610
    %983 = vmatpush1.msra.mxu0 %v609
    %984 = vmatprep.subr.mxu0 %v614
    %985 = vmatpush1.msra.mxu0 %v613
    %986 = vmatprep.subr.mxu0 %v618
    %987 = vmatpush1.msra.mxu0 %v617
    %988 = vmatprep.subr.mxu0 %v622
    %989 = vmatpush1.msra.mxu0 %v621
    %990 = vmatprep.subr.mxu0 %v626
    %991 = vmatpush1.msra.mxu0 %v625
    %992 = vmatprep.subr.mxu0 %v630
    %993 = vmatpush1.msra.mxu0 %v629
    %994 = vmatprep.subr.mxu0 %v634
    %995 = vmatpush1.msra.mxu0 %v633
    %996 = vmatprep.mubr.f32.mxu0 %v376
    %997 = vmatmul.mubr.f32.gmra.mrb[0].mxu0 %v839
    %v998 = vpop.f32.mrb[0].mxu0
    %v999 = vadd.f32 %v852, %v998
    %v1000 = vpop.f32.mrb[0].mxu0
    %v1001 = vadd.f32 %v856, %v1000
    %1002 = vdwg.mxu0
    %v1003 = vxor.u32 %v928, 2147483648
    %v1004 = vmul.f32 %v1003, 1.442695
    %v1005 = vpow.pop %v1004
    %v1006 = vadd.f32 %v1005, 1.0
    %v1007 = vrcp.pop %v1006
    %v1008 = vmul.f32 1.0, %v1007
    %v1009 = vxor.u32 %v930, 2147483648
    %v1010 = vmul.f32 %v1009, 1.442695
    %v1011 = vpow.pop %v1010
    %v1012 = vadd.f32 %v1011, 1.0
    %v1013 = vrcp.pop %v1012
    %v1014 = vmul.f32 1.0, %v1013
    %v1015 = vtanh.pop %v999
    %v1016 = vxor.u32 %v1001, 2147483648
    %v1017 = vmul.f32 %v1016, 1.442695
    %v1018 = vpow.pop %v1017
    %v1019 = vadd.f32 %v1018, 1.0
    %v1020 = vrcp.pop %v1019
    %v1021 = vmul.f32 1.0, %v1020
    %v1022 = vmul.f32 %v1014, 0.0
    %v1023 = vmul.f32 %v1008, %v1015
    %v1024 = vadd.f32 %v1022, %v1023
    %v1025 = vtanh.pop %v1024
    %v1026 = vmul.f32 %v1021, %v1025
    %v1028 = vlaneseq
    %v1029 = vshrl.u32 %v1028, 7
    %v1030 = vsub.s32 0, %v1029
    %v1031 = vrot.slane %v99, %v1030
    %1033 = vmatprep.subr.mxu0 0.0
    %1034 = vmatpush1.msra.mxu0 %v635
    %1035 = vmatprep.subr.mxu0 0.0
    %1036 = vmatpush1.msra.mxu0 %v636
    %1037 = vmatprep.subr.mxu0 0.0
    %1038 = vmatpush1.msra.mxu0 %v637
    %1039 = vmatprep.subr.mxu0 0.0
    %1040 = vmatpush1.msra.mxu0 %v638
    %1041 = vmatprep.subr.mxu0 0.0
    %1042 = vmatpush1.msra.mxu0 %v639
    %1043 = vmatprep.subr.mxu0 0.0
    %1044 = vmatpush1.msra.mxu0 %v640
    %1045 = vmatprep.subr.mxu0 0.0
    %1046 = vmatpush1.msra.mxu0 %v641
    %1047 = vmatprep.subr.mxu0 0.0
    %1048 = vmatpush1.msra.mxu0 %v642
    %1049 = vmatprep.subr.mxu0 0.0
    %1050 = vmatpush1.msra.mxu0 %v643
    %1051 = vmatprep.subr.mxu0 0.0
    %1052 = vmatpush1.msra.mxu0 %v644
    %1053 = vmatprep.subr.mxu0 0.0
    %1054 = vmatpush1.msra.mxu0 %v645
    %1055 = vmatprep.subr.mxu0 0.0
    %1056 = vmatpush1.msra.mxu0 %v646
    %1057 = vmatprep.subr.mxu0 0.0
    %1058 = vmatpush1.msra.mxu0 %v647
    %1059 = vmatprep.subr.mxu0 0.0
    %1060 = vmatpush1.msra.mxu0 %v648
    %1061 = vmatprep.subr.mxu0 0.0
    %1062 = vmatpush1.msra.mxu0 %v649
    %1063 = vmatprep.subr.mxu0 0.0
    %1064 = vmatpush1.msra.mxu0 %v650
    %1065 = vmatprep.subr.mxu0 0.0
    %1066 = vmatpush1.msra.mxu0 0.0
    %1067 = vmatprep.subr.mxu0 0.0
    %1068 = vmatpush1.msra.mxu0 0.0
    %1069 = vmatprep.subr.mxu0 0.0
    %1070 = vmatpush1.msra.mxu0 0.0
    %1071 = vmatprep.subr.mxu0 0.0
    %1072 = vmatpush1.msra.mxu0 0.0
    %1073 = vmatprep.subr.mxu0 0.0
    %1074 = vmatpush1.msra.mxu0 0.0
    %1075 = vmatprep.subr.mxu0 0.0
    %1076 = vmatpush1.msra.mxu0 0.0
    %1077 = vmatprep.subr.mxu0 0.0
    %1078 = vmatpush1.msra.mxu0 0.0
    %1079 = vmatprep.subr.mxu0 0.0
    %1080 = vmatpush1.msra.mxu0 0.0
    %1081 = vmatprep.subr.mxu0 0.0
    %1082 = vmatpush1.msra.mxu0 0.0
    %1083 = vmatprep.subr.mxu0 0.0
    %1084 = vmatpush1.msra.mxu0 0.0
    %1085 = vmatprep.subr.mxu0 0.0
    %1086 = vmatpush1.msra.mxu0 0.0
    %1087 = vmatprep.subr.mxu0 0.0
    %1088 = vmatpush1.msra.mxu0 0.0
    %1089 = vmatprep.subr.mxu0 0.0
    %1090 = vmatpush1.msra.mxu0 0.0
    %1091 = vmatprep.subr.mxu0 0.0
    %1092 = vmatpush1.msra.mxu0 0.0
    %1093 = vmatprep.subr.mxu0 0.0
    %1094 = vmatpush1.msra.mxu0 0.0
    %1095 = vmatprep.subr.mxu0 0.0
    %1096 = vmatpush1.msra.mxu0 0.0
    %1097 = vmatprep.mubr.f32.mxu0 0.0
    %1098 = vmatmul.mubr.f32.gmra.mrb[0].mxu0 %v1026
    %v1099 = vpop.f32.mrb[0].mxu0
    %v1100 = vadd.f32 %v1031, %v1099
    %v1101 = vpop.f32.mrb[0].mxu0
    %1102 = vdwg.mxu0
    %v1104 = vcombine.high %v1100, %v1100
    %v1106 = vunpack.c.l.s4 1966171168
    %v1107 = vunpack.c.0.s8 %v1106
    %v1108 = vlaneseq
    %v1109 = vshrl.u32 %v1108, 7
    %v1110 = vsub.s32 %v1107, %v1109
    %v1111 = vrot.slane %v1100, %v1110
    %v1113 = vunpack.c.l.s4 1966171168
    %v1114 = vunpack.c.0.s8 %v1113
    %v1115 = vlaneseq
    %v1116 = vshrl.u32 %v1115, 7
    %v1117 = vsub.s32 %v1114, %v1116
    %v1118 = vrot.slane %v1104, %v1117
    %v1119 = vcombine.high %v1111, %v1111
    %v1120 = vcombine.high %v1118, %v1118
    %v1122 = vunpack.c.l.s4 1966171168
    %v1123 = vunpack.c.0.s8 %v1122
    %v1124 = vlaneseq
    %v1125 = vshrl.u32 %v1124, 7
    %v1126 = vsub.s32 %v1123, %v1125
    %v1127 = vrot.slane %v1111, %v1126
    %v1129 = vunpack.c.l.s4 1966171168
    %v1130 = vunpack.c.0.s8 %v1129
    %v1131 = vlaneseq
    %v1132 = vshrl.u32 %v1131, 7
    %v1133 = vsub.s32 %v1130, %v1132
    %v1134 = vrot.slane %v1118, %v1133
    %v1136 = vunpack.c.l.s4 1966171168
    %v1137 = vunpack.c.0.s8 %v1136
    %v1138 = vlaneseq
    %v1139 = vshrl.u32 %v1138, 7
    %v1140 = vsub.s32 %v1137, %v1139
    %v1141 = vrot.slane %v1119, %v1140
    %v1143 = vunpack.c.l.s4 1966171168
    %v1144 = vunpack.c.0.s8 %v1143
    %v1145 = vlaneseq
    %v1146 = vshrl.u32 %v1145, 7
    %v1147 = vsub.s32 %v1144, %v1146
    %v1148 = vrot.slane %v1120, %v1147
    %v1149 = vcombine.high %v1127, %v1127
    %v1150 = vcombine.high %v1134, %v1134
    %v1151 = vcombine.high %v1141, %v1141
    %v1152 = vcombine.high %v1148, %v1148
    %1161 = vst [vmem:[%s7] sm:$0x1] %v1127
    %1162 = vst [vmem:[%s7 + $0x8] sm:$0x1] %v1141
    %1163 = vst [vmem:[%s7 + $0x10] sm:$0x1] %v1149
    %1164 = vst [vmem:[%s7 + $0x18] sm:$0x1] %v1151
    %1165 = vst [vmem:[%s7 + $0x20] sm:$0x1] %v1134
    %1166 = vst [vmem:[%s7 + $0x28] sm:$0x1] %v1148
    %1167 = vst [vmem:[%s7 + $0x30] sm:$0x1] %v1150
    %1168 = vst [vmem:[%s7 + $0x38] sm:$0x1] %v1152
    %1169 = vmax.xlane.f32.xlu0 %v1100
    %v1170 = vpop.xlane.xlu0 %1169
    %vm1171 = vcmp.eq.f32.partialorder %v1100, %v1170
    %v1172 = vsel %vm1171, %v652, 128
    %v1173 = vand.u32 %v1172, 65535
    %v1174 = vshra.s32 %v1172, 16
    %v1175 = vcvt.s32.f32 %v1173
    %v1176 = vcvt.s32.f32 %v1174
    %1177 = vmin.xlane.f32.xlu0 %v1176
    %v1178 = vpop.xlane.xlu0 %1177
    %vm1179 = vcmp.eq.f32.partialorder %v1176, %v1178
    %v1180 = vsel %vm1179, %v1175, inf
    %1181 = vmin.xlane.f32.xlu0 %v1180
    %v1182 = vpop.xlane.xlu0 %1181
    %v1183 = vcvt.f32.s32 %v1182
    %v1184 = vcvt.f32.s32 %v1178
    %v1185 = vshll.u32 %v1184, 16
    %v1186 = vadd.s32 %v1185, %v1183
    %vm1187 = vcmp.eq.s32.totalorder %v652, %v1186
    %v1188 = vsel %vm1187, 1, 0
    %v1189 = vcvt.s32.f32 %v1188
    %1190 = vmatprep.subr.mxu0 %v380
    %1191 = vmatpush1.msra.mxu0 %v379
    %1192 = vmatprep.subr.mxu0 %v384
    %1193 = vmatpush1.msra.mxu0 %v383
    %1194 = vmatprep.subr.mxu0 %v388
    %1195 = vmatpush1.msra.mxu0 %v387
    %1196 = vmatprep.subr.mxu0 %v392
    %1197 = vmatpush1.msra.mxu0 %v391
    %1198 = vmatprep.subr.mxu0 %v396
    %1199 = vmatpush1.msra.mxu0 %v395
    %1200 = vmatprep.subr.mxu0 %v400
    %1201 = vmatpush1.msra.mxu0 %v399
    %1202 = vmatprep.subr.mxu0 %v404
    %1203 = vmatpush1.msra.mxu0 %v403
    %1204 = vmatprep.subr.mxu0 %v408
    %1205 = vmatpush1.msra.mxu0 %v407
    %1206 = vmatprep.subr.mxu0 %v412
    %1207 = vmatpush1.msra.mxu0 %v411
    %1208 = vmatprep.subr.mxu0 %v416
    %1209 = vmatpush1.msra.mxu0 %v415
    %1210 = vmatprep.subr.mxu0 %v420
    %1211 = vmatpush1.msra.mxu0 %v419
    %1212 = vmatprep.subr.mxu0 %v424
    %1213 = vmatpush1.msra.mxu0 %v423
    %1214 = vmatprep.subr.mxu0 %v428
    %1215 = vmatpush1.msra.mxu0 %v427
    %1216 = vmatprep.subr.mxu0 %v432
    %1217 = vmatpush1.msra.mxu0 %v431
    %1218 = vmatprep.subr.mxu0 %v436
    %1219 = vmatpush1.msra.mxu0 %v435
    %1220 = vmatprep.subr.mxu0 %v440
    %1221 = vmatpush1.msra.mxu0 %v439
    %1222 = vmatprep.subr.mxu0 %v444
    %1223 = vmatpush1.msra.mxu0 %v443
    %1224 = vmatprep.subr.mxu0 %v448
    %1225 = vmatpush1.msra.mxu0 %v447
    %1226 = vmatprep.subr.mxu0 %v452
    %1227 = vmatpush1.msra.mxu0 %v451
    %1228 = vmatprep.subr.mxu0 %v456
    %1229 = vmatpush1.msra.mxu0 %v455
    %1230 = vmatprep.subr.mxu0 %v460
    %1231 = vmatpush1.msra.mxu0 %v459
    %1232 = vmatprep.subr.mxu0 %v464
    %1233 = vmatpush1.msra.mxu0 %v463
    %1234 = vmatprep.subr.mxu0 %v468
    %1235 = vmatpush1.msra.mxu0 %v467
    %1236 = vmatprep.subr.mxu0 %v472
    %1237 = vmatpush1.msra.mxu0 %v471
    %1238 = vmatprep.subr.mxu0 %v476
    %1239 = vmatpush1.msra.mxu0 %v475
    %1240 = vmatprep.subr.mxu0 %v480
    %1241 = vmatpush1.msra.mxu0 %v479
    %1242 = vmatprep.subr.mxu0 %v484
    %1243 = vmatpush1.msra.mxu0 %v483
    %1244 = vmatprep.subr.mxu0 %v488
    %1245 = vmatpush1.msra.mxu0 %v487
    %1246 = vmatprep.subr.mxu0 %v492
    %1247 = vmatpush1.msra.mxu0 %v491
    %1248 = vmatprep.subr.mxu0 %v496
    %1249 = vmatpush1.msra.mxu0 %v495
    %1250 = vmatprep.subr.mxu0 %v500
    %1251 = vmatpush1.msra.mxu0 %v499
    %1252 = vmatprep.subr.mxu0 %v504
    %1253 = vmatpush1.msra.mxu0 %v503
    %1254 = vmatprep.mubr.f32.mxu0 %v839
    %1255 = vmatmul.mubr.f32.gmra.mrb[0].mxu0 %v1189
    %v1256 = vpop.f32.mrb[0].mxu0
    %v1257 = vadd.f32 %v657, %v1256
    %v1258 = vpop.f32.mrb[0].mxu0
    %v1259 = vadd.f32 %v661, %v1258
    %1260 = vdwg.mxu0
    %1261 = vmatprep.subr.mxu0 %v382
    %1262 = vmatpush1.msra.mxu0 %v381
    %1263 = vmatprep.subr.mxu0 %v386
    %1264 = vmatpush1.msra.mxu0 %v385
    %1265 = vmatprep.subr.mxu0 %v390
    %1266 = vmatpush1.msra.mxu0 %v389
    %1267 = vmatprep.subr.mxu0 %v394
    %1268 = vmatpush1.msra.mxu0 %v393
    %1269 = vmatprep.subr.mxu0 %v398
    %1270 = vmatpush1.msra.mxu0 %v397
    %1271 = vmatprep.subr.mxu0 %v402
    %1272 = vmatpush1.msra.mxu0 %v401
    %1273 = vmatprep.subr.mxu0 %v406
    %1274 = vmatpush1.msra.mxu0 %v405
    %1275 = vmatprep.subr.mxu0 %v410
    %1276 = vmatpush1.msra.mxu0 %v409
    %1277 = vmatprep.subr.mxu0 %v414
    %1278 = vmatpush1.msra.mxu0 %v413
    %1279 = vmatprep.subr.mxu0 %v418
    %1280 = vmatpush1.msra.mxu0 %v417
    %1281 = vmatprep.subr.mxu0 %v422
    %1282 = vmatpush1.msra.mxu0 %v421
    %1283 = vmatprep.subr.mxu0 %v426
    %1284 = vmatpush1.msra.mxu0 %v425
    %1285 = vmatprep.subr.mxu0 %v430
    %1286 = vmatpush1.msra.mxu0 %v429
    %1287 = vmatprep.subr.mxu0 %v434
    %1288 = vmatpush1.msra.mxu0 %v433
    %1289 = vmatprep.subr.mxu0 %v438
    %1290 = vmatpush1.msra.mxu0 %v437
    %1291 = vmatprep.subr.mxu0 %v442
    %1292 = vmatpush1.msra.mxu0 %v441
    %1293 = vmatprep.subr.mxu0 %v446
    %1294 = vmatpush1.msra.mxu0 %v445
    %1295 = vmatprep.subr.mxu0 %v450
    %1296 = vmatpush1.msra.mxu0 %v449
    %1297 = vmatprep.subr.mxu0 %v454
    %1298 = vmatpush1.msra.mxu0 %v453
    %1299 = vmatprep.subr.mxu0 %v458
    %1300 = vmatpush1.msra.mxu0 %v457
    %1301 = vmatprep.subr.mxu0 %v462
    %1302 = vmatpush1.msra.mxu0 %v461
    %1303 = vmatprep.subr.mxu0 %v466
    %1304 = vmatpush1.msra.mxu0 %v465
    %1305 = vmatprep.subr.mxu0 %v470
    %1306 = vmatpush1.msra.mxu0 %v469
    %1307 = vmatprep.subr.mxu0 %v474
    %1308 = vmatpush1.msra.mxu0 %v473
    %1309 = vmatprep.subr.mxu0 %v478
    %1310 = vmatpush1.msra.mxu0 %v477
    %1311 = vmatprep.subr.mxu0 %v482
    %1312 = vmatpush1.msra.mxu0 %v481
    %1313 = vmatprep.subr.mxu0 %v486
    %1314 = vmatpush1.msra.mxu0 %v485
    %1315 = vmatprep.subr.mxu0 %v490
    %1316 = vmatpush1.msra.mxu0 %v489
    %1317 = vmatprep.subr.mxu0 %v494
    %1318 = vmatpush1.msra.mxu0 %v493
    %1319 = vmatprep.subr.mxu0 %v498
    %1320 = vmatpush1.msra.mxu0 %v497
    %1321 = vmatprep.subr.mxu0 %v502
    %1322 = vmatpush1.msra.mxu0 %v501
    %1323 = vmatprep.subr.mxu0 %v506
    %1324 = vmatpush1.msra.mxu0 %v505
    %1325 = vmatprep.mubr.f32.mxu0 %v839
    %1326 = vmatmul.mubr.f32.gmra.mrb[0].mxu0 %v1189
    %v1327 = vpop.f32.mrb[0].mxu0
    %v1328 = vadd.f32 %v665, %v1327
    %v1329 = vpop.f32.mrb[0].mxu0
    %v1330 = vadd.f32 %v669, %v1329
    %1331 = vdwg.mxu0
    %v1332 = vxor.u32 %v1257, 2147483648
    %v1333 = vmul.f32 %v1332, 1.442695
    %v1334 = vpow.pop %v1333
    %v1335 = vadd.f32 %v1334, 1.0
    %v1336 = vrcp.pop %v1335
    %v1337 = vmul.f32 1.0, %v1336
    %v1338 = vxor.u32 %v1259, 2147483648
    %v1339 = vmul.f32 %v1338, 1.442695
    %v1340 = vpow.pop %v1339
    %v1341 = vadd.f32 %v1340, 1.0
    %v1342 = vrcp.pop %v1341
    %v1343 = vmul.f32 1.0, %v1342
    %v1344 = vtanh.pop %v1328
    %v1345 = vxor.u32 %v1330, 2147483648
    %v1346 = vmul.f32 %v1345, 1.442695
    %v1347 = vpow.pop %v1346
    %v1348 = vadd.f32 %v1347, 1.0
    %v1349 = vrcp.pop %v1348
    %v1350 = vmul.f32 1.0, %v1349
    %v1351 = vmul.f32 %v1343, %v837
    %v1352 = vmul.f32 %v1337, %v1344
    %v1353 = vadd.f32 %v1351, %v1352
    %v1354 = vtanh.pop %v1353
    %v1355 = vmul.f32 %v1350, %v1354
    %1356 = vmatprep.subr.mxu0 %v508
    %1357 = vmatpush1.msra.mxu0 %v507
    %1358 = vmatprep.subr.mxu0 %v512
    %1359 = vmatpush1.msra.mxu0 %v511
    %1360 = vmatprep.subr.mxu0 %v516
    %1361 = vmatpush1.msra.mxu0 %v515
    %1362 = vmatprep.subr.mxu0 %v520
    %1363 = vmatpush1.msra.mxu0 %v519
    %1364 = vmatprep.subr.mxu0 %v524
    %1365 = vmatpush1.msra.mxu0 %v523
    %1366 = vmatprep.subr.mxu0 %v528
    %1367 = vmatpush1.msra.mxu0 %v527
    %1368 = vmatprep.subr.mxu0 %v532
    %1369 = vmatpush1.msra.mxu0 %v531
    %1370 = vmatprep.subr.mxu0 %v536
    %1371 = vmatpush1.msra.mxu0 %v535
    %1372 = vmatprep.subr.mxu0 %v540
    %1373 = vmatpush1.msra.mxu0 %v539
    %1374 = vmatprep.subr.mxu0 %v544
    %1375 = vmatpush1.msra.mxu0 %v543
    %1376 = vmatprep.subr.mxu0 %v548
    %1377 = vmatpush1.msra.mxu0 %v547
    %1378 = vmatprep.subr.mxu0 %v552
    %1379 = vmatpush1.msra.mxu0 %v551
    %1380 = vmatprep.subr.mxu0 %v556
    %1381 = vmatpush1.msra.mxu0 %v555
    %1382 = vmatprep.subr.mxu0 %v560
    %1383 = vmatpush1.msra.mxu0 %v559
    %1384 = vmatprep.subr.mxu0 %v564
    %1385 = vmatpush1.msra.mxu0 %v563
    %1386 = vmatprep.subr.mxu0 %v568
    %1387 = vmatpush1.msra.mxu0 %v567
    %1388 = vmatprep.subr.mxu0 %v572
    %1389 = vmatpush1.msra.mxu0 %v571
    %1390 = vmatprep.subr.mxu0 %v576
    %1391 = vmatpush1.msra.mxu0 %v575
    %1392 = vmatprep.subr.mxu0 %v580
    %1393 = vmatpush1.msra.mxu0 %v579
    %1394 = vmatprep.subr.mxu0 %v584
    %1395 = vmatpush1.msra.mxu0 %v583
    %1396 = vmatprep.subr.mxu0 %v588
    %1397 = vmatpush1.msra.mxu0 %v587
    %1398 = vmatprep.subr.mxu0 %v592
    %1399 = vmatpush1.msra.mxu0 %v591
    %1400 = vmatprep.subr.mxu0 %v596
    %1401 = vmatpush1.msra.mxu0 %v595
    %1402 = vmatprep.subr.mxu0 %v600
    %1403 = vmatpush1.msra.mxu0 %v599
    %1404 = vmatprep.subr.mxu0 %v604
    %1405 = vmatpush1.msra.mxu0 %v603
    %1406 = vmatprep.subr.mxu0 %v608
    %1407 = vmatpush1.msra.mxu0 %v607
    %1408 = vmatprep.subr.mxu0 %v612
    %1409 = vmatpush1.msra.mxu0 %v611
    %1410 = vmatprep.subr.mxu0 %v616
    %1411 = vmatpush1.msra.mxu0 %v615
    %1412 = vmatprep.subr.mxu0 %v620
    %1413 = vmatpush1.msra.mxu0 %v619
    %1414 = vmatprep.subr.mxu0 %v624
    %1415 = vmatpush1.msra.mxu0 %v623
    %1416 = vmatprep.subr.mxu0 %v628
    %1417 = vmatpush1.msra.mxu0 %v627
    %1418 = vmatprep.subr.mxu0 %v632
    %1419 = vmatpush1.msra.mxu0 %v631
    %1420 = vmatprep.mubr.f32.mxu0 %v1026
    %1421 = vmatmul.mubr.f32.gmra.mrb[0].mxu0 %v1355
    %v1422 = vpop.f32.mrb[0].mxu0
    %v1423 = vadd.f32 %v844, %v1422
    %v1424 = vpop.f32.mrb[0].mxu0
    %v1425 = vadd.f32 %v848, %v1424
    %1426 = vdwg.mxu0
    %1427 = vmatprep.subr.mxu0 %v510
    %1428 = vmatpush1.msra.mxu0 %v509
    %1429 = vmatprep.subr.mxu0 %v514
    %1430 = vmatpush1.msra.mxu0 %v513
    %1431 = vmatprep.subr.mxu0 %v518
    %1432 = vmatpush1.msra.mxu0 %v517
    %1433 = vmatprep.subr.mxu0 %v522
    %1434 = vmatpush1.msra.mxu0 %v521
    %1435 = vmatprep.subr.mxu0 %v526
    %1436 = vmatpush1.msra.mxu0 %v525
    %1437 = vmatprep.subr.mxu0 %v530
    %1438 = vmatpush1.msra.mxu0 %v529
    %1439 = vmatprep.subr.mxu0 %v534
    %1440 = vmatpush1.msra.mxu0 %v533
    %1441 = vmatprep.subr.mxu0 %v538
    %1442 = vmatpush1.msra.mxu0 %v537
    %1443 = vmatprep.subr.mxu0 %v542
    %1444 = vmatpush1.msra.mxu0 %v541
    %1445 = vmatprep.subr.mxu0 %v546
    %1446 = vmatpush1.msra.mxu0 %v545
    %1447 = vmatprep.subr.mxu0 %v550
    %1448 = vmatpush1.msra.mxu0 %v549
    %1449 = vmatprep.subr.mxu0 %v554
    %1450 = vmatpush1.msra.mxu0 %v553
    %1451 = vmatprep.subr.mxu0 %v558
    %1452 = vmatpush1.msra.mxu0 %v557
    %1453 = vmatprep.subr.mxu0 %v562
    %1454 = vmatpush1.msra.mxu0 %v561
    %1455 = vmatprep.subr.mxu0 %v566
    %1456 = vmatpush1.msra.mxu0 %v565
    %1457 = vmatprep.subr.mxu0 %v570
    %1458 = vmatpush1.msra.mxu0 %v569
    %1459 = vmatprep.subr.mxu0 %v574
    %1460 = vmatpush1.msra.mxu0 %v573
    %1461 = vmatprep.subr.mxu0 %v578
    %1462 = vmatpush1.msra.mxu0 %v577
    %1463 = vmatprep.subr.mxu0 %v582
    %1464 = vmatpush1.msra.mxu0 %v581
    %1465 = vmatprep.subr.mxu0 %v586
    %1466 = vmatpush1.msra.mxu0 %v585
    %1467 = vmatprep.subr.mxu0 %v590
    %1468 = vmatpush1.msra.mxu0 %v589
    %1469 = vmatprep.subr.mxu0 %v594
    %1470 = vmatpush1.msra.mxu0 %v593
    %1471 = vmatprep.subr.mxu0 %v598
    %1472 = vmatpush1.msra.mxu0 %v597
    %1473 = vmatprep.subr.mxu0 %v602
    %1474 = vmatpush1.msra.mxu0 %v601
    %1475 = vmatprep.subr.mxu0 %v606
    %1476 = vmatpush1.msra.mxu0 %v605
    %1477 = vmatprep.subr.mxu0 %v610
    %1478 = vmatpush1.msra.mxu0 %v609
    %1479 = vmatprep.subr.mxu0 %v614
    %1480 = vmatpush1.msra.mxu0 %v613
    %1481 = vmatprep.subr.mxu0 %v618
    %1482 = vmatpush1.msra.mxu0 %v617
    %1483 = vmatprep.subr.mxu0 %v622
    %1484 = vmatpush1.msra.mxu0 %v621
    %1485 = vmatprep.subr.mxu0 %v626
    %1486 = vmatpush1.msra.mxu0 %v625
    %1487 = vmatprep.subr.mxu0 %v630
    %1488 = vmatpush1.msra.mxu0 %v629
    %1489 = vmatprep.subr.mxu0 %v634
    %1490 = vmatpush1.msra.mxu0 %v633
    %1491 = vmatprep.mubr.f32.mxu0 %v1026
    %1492 = vmatmul.mubr.f32.gmra.mrb[0].mxu0 %v1355
    %v1493 = vpop.f32.mrb[0].mxu0
    %v1494 = vadd.f32 %v852, %v1493
    %v1495 = vpop.f32.mrb[0].mxu0
    %v1496 = vadd.f32 %v856, %v1495
    %1497 = vdwg.mxu0
    %v1498 = vxor.u32 %v1423, 2147483648
    %v1499 = vmul.f32 %v1498, 1.442695
    %v1500 = vpow.pop %v1499
    %v1501 = vadd.f32 %v1500, 1.0
    %v1502 = vrcp.pop %v1501
    %v1503 = vmul.f32 1.0, %v1502
    %v1504 = vxor.u32 %v1425, 2147483648
    %v1505 = vmul.f32 %v1504, 1.442695
    %v1506 = vpow.pop %v1505
    %v1507 = vadd.f32 %v1506, 1.0
    %v1508 = vrcp.pop %v1507
    %v1509 = vmul.f32 1.0, %v1508
    %v1510 = vtanh.pop %v1494
    %v1511 = vxor.u32 %v1496, 2147483648
    %v1512 = vmul.f32 %v1511, 1.442695
    %v1513 = vpow.pop %v1512
    %v1514 = vadd.f32 %v1513, 1.0
    %v1515 = vrcp.pop %v1514
    %v1516 = vmul.f32 1.0, %v1515
    %v1517 = vmul.f32 %v1509, %v1024
    %v1518 = vmul.f32 %v1503, %v1510
    %v1519 = vadd.f32 %v1517, %v1518
    %v1520 = vtanh.pop %v1519
    %v1521 = vmul.f32 %v1516, %v1520
    %1522 = vmatprep.subr.mxu0 0.0
    %1523 = vmatpush1.msra.mxu0 %v635
    %1524 = vmatprep.subr.mxu0 0.0
    %1525 = vmatpush1.msra.mxu0 %v636
    %1526 = vmatprep.subr.mxu0 0.0
    %1527 = vmatpush1.msra.mxu0 %v637
    %1528 = vmatprep.subr.mxu0 0.0
    %1529 = vmatpush1.msra.mxu0 %v638
    %1530 = vmatprep.subr.mxu0 0.0
    %1531 = vmatpush1.msra.mxu0 %v639
    %1532 = vmatprep.subr.mxu0 0.0
    %1533 = vmatpush1.msra.mxu0 %v640
    %1534 = vmatprep.subr.mxu0 0.0
    %1535 = vmatpush1.msra.mxu0 %v641
    %1536 = vmatprep.subr.mxu0 0.0
    %1537 = vmatpush1.msra.mxu0 %v642
    %1538 = vmatprep.subr.mxu0 0.0
    %1539 = vmatpush1.msra.mxu0 %v643
    %1540 = vmatprep.subr.mxu0 0.0
    %1541 = vmatpush1.msra.mxu0 %v644
    %1542 = vmatprep.subr.mxu0 0.0
    %1543 = vmatpush1.msra.mxu0 %v645
    %1544 = vmatprep.subr.mxu0 0.0
    %1545 = vmatpush1.msra.mxu0 %v646
    %1546 = vmatprep.subr.mxu0 0.0
    %1547 = vmatpush1.msra.mxu0 %v647
    %1548 = vmatprep.subr.mxu0 0.0
    %1549 = vmatpush1.msra.mxu0 %v648
    %1550 = vmatprep.subr.mxu0 0.0
    %1551 = vmatpush1.msra.mxu0 %v649
    %1552 = vmatprep.subr.mxu0 0.0
    %1553 = vmatpush1.msra.mxu0 %v650
    %1554 = vmatprep.subr.mxu0 0.0
    %1555 = vmatpush1.msra.mxu0 0.0
    %1556 = vmatprep.subr.mxu0 0.0
    %1557 = vmatpush1.msra.mxu0 0.0
    %1558 = vmatprep.subr.mxu0 0.0
    %1559 = vmatpush1.msra.mxu0 0.0
    %1560 = vmatprep.subr.mxu0 0.0
    %1561 = vmatpush1.msra.mxu0 0.0
    %1562 = vmatprep.subr.mxu0 0.0
    %1563 = vmatpush1.msra.mxu0 0.0
    %1564 = vmatprep.subr.mxu0 0.0
    %1565 = vmatpush1.msra.mxu0 0.0
    %1566 = vmatprep.subr.mxu0 0.0
    %1567 = vmatpush1.msra.mxu0 0.0
    %1568 = vmatprep.subr.mxu0 0.0
    %1569 = vmatpush1.msra.mxu0 0.0
    %1570 = vmatprep.subr.mxu0 0.0
    %1571 = vmatpush1.msra.mxu0 0.0
    %1572 = vmatprep.subr.mxu0 0.0
    %1573 = vmatpush1.msra.mxu0 0.0
    %1574 = vmatprep.subr.mxu0 0.0
    %1575 = vmatpush1.msra.mxu0 0.0
    %1576 = vmatprep.subr.mxu0 0.0
    %1577 = vmatpush1.msra.mxu0 0.0
    %1578 = vmatprep.subr.mxu0 0.0
    %1579 = vmatpush1.msra.mxu0 0.0
    %1580 = vmatprep.subr.mxu0 0.0
    %1581 = vmatpush1.msra.mxu0 0.0
    %1582 = vmatprep.subr.mxu0 0.0
    %1583 = vmatpush1.msra.mxu0 0.0
    %1584 = vmatprep.subr.mxu0 0.0
    %1585 = vmatpush1.msra.mxu0 0.0
    %1586 = vmatprep.mubr.f32.mxu0 0.0
    %1587 = vmatmul.mubr.f32.gmra.mrb[0].mxu0 %v1521
    %v1588 = vpop.f32.mrb[0].mxu0
    %v1589 = vadd.f32 %v1031, %v1588
    %v1590 = vpop.f32.mrb[0].mxu0
    %1591 = vdwg.mxu0
    %v1593 = vcombine.high %v1589, %v1589
    %v1595 = vunpack.c.l.s4 1966171168
    %v1596 = vunpack.c.0.s8 %v1595
    %v1597 = vlaneseq
    %v1598 = vshrl.u32 %v1597, 7
    %v1599 = vsub.s32 %v1596, %v1598
    %v1600 = vrot.slane %v1589, %v1599
    %v1602 = vunpack.c.l.s4 1966171168
    %v1603 = vunpack.c.0.s8 %v1602
    %v1604 = vlaneseq
    %v1605 = vshrl.u32 %v1604, 7
    %v1606 = vsub.s32 %v1603, %v1605
    %v1607 = vrot.slane %v1593, %v1606
    %v1608 = vcombine.high %v1600, %v1600
    %v1609 = vcombine.high %v1607, %v1607
    %v1611 = vunpack.c.l.s4 1966171168
    %v1612 = vunpack.c.0.s8 %v1611
    %v1613 = vlaneseq
    %v1614 = vshrl.u32 %v1613, 7
    %v1615 = vsub.s32 %v1612, %v1614
    %v1616 = vrot.slane %v1600, %v1615
    %v1618 = vunpack.c.l.s4 1966171168
    %v1619 = vunpack.c.0.s8 %v1618
    %v1620 = vlaneseq
    %v1621 = vshrl.u32 %v1620, 7
    %v1622 = vsub.s32 %v1619, %v1621
    %v1623 = vrot.slane %v1607, %v1622
    %v1625 = vunpack.c.l.s4 1966171168
    %v1626 = vunpack.c.0.s8 %v1625
    %v1627 = vlaneseq
    %v1628 = vshrl.u32 %v1627, 7
    %v1629 = vsub.s32 %v1626, %v1628
    %v1630 = vrot.slane %v1608, %v1629
    %v1632 = vunpack.c.l.s4 1966171168
    %v1633 = vunpack.c.0.s8 %v1632
    %v1634 = vlaneseq
    %v1635 = vshrl.u32 %v1634, 7
    %v1636 = vsub.s32 %v1633, %v1635
    %v1637 = vrot.slane %v1609, %v1636
    %v1638 = vcombine.high %v1616, %v1616
    %v1639 = vcombine.high %v1623, %v1623
    %v1640 = vcombine.high %v1630, %v1630
    %v1641 = vcombine.high %v1637, %v1637
    %1650 = vst [vmem:[%s7 + $0x1] sm:$0x1] %v1616
    %1651 = vst [vmem:[%s7 + $0x9] sm:$0x1] %v1630
    %1652 = vst [vmem:[%s7 + $0x11] sm:$0x1] %v1638
    %1653 = vst [vmem:[%s7 + $0x19] sm:$0x1] %v1640
    %1654 = vst [vmem:[%s7 + $0x21] sm:$0x1] %v1623
    %1655 = vst [vmem:[%s7 + $0x29] sm:$0x1] %v1637
    %1656 = vst [vmem:[%s7 + $0x31] sm:$0x1] %v1639
    %1657 = vst [vmem:[%s7 + $0x39] sm:$0x1] %v1641
    %1658 = vmax.xlane.f32.xlu0 %v1589
    %v1659 = vpop.xlane.xlu0 %1658
    %vm1660 = vcmp.eq.f32.partialorder %v1589, %v1659
    %v1661 = vsel %vm1660, %v652, 128
    %v1662 = vand.u32 %v1661, 65535
    %v1663 = vshra.s32 %v1661, 16
    %v1664 = vcvt.s32.f32 %v1662
    %v1665 = vcvt.s32.f32 %v1663
    %1666 = vmin.xlane.f32.xlu0 %v1665
    %v1667 = vpop.xlane.xlu0 %1666
    %vm1668 = vcmp.eq.f32.partialorder %v1665, %v1667
    %v1669 = vsel %vm1668, %v1664, inf
    %1670 = vmin.xlane.f32.xlu0 %v1669
    %v1671 = vpop.xlane.xlu0 %1670
    %v1672 = vcvt.f32.s32 %v1671
    %v1673 = vcvt.f32.s32 %v1667
    %v1674 = vshll.u32 %v1673, 16
    %v1675 = vadd.s32 %v1674, %v1672
    %vm1676 = vcmp.eq.s32.totalorder %v652, %v1675
    %v1677 = vsel %vm1676, 1, 0
    %v1678 = vcvt.s32.f32 %v1677
    %1679 = vmatprep.subr.mxu0 %v380
    %1680 = vmatpush1.msra.mxu0 %v379
    %1681 = vmatprep.subr.mxu0 %v384
    %1682 = vmatpush1.msra.mxu0 %v383
    %1683 = vmatprep.subr.mxu0 %v388
    %1684 = vmatpush1.msra.mxu0 %v387
    %1685 = vmatprep.subr.mxu0 %v392
    %1686 = vmatpush1.msra.mxu0 %v391
    %1687 = vmatprep.subr.mxu0 %v396
    %1688 = vmatpush1.msra.mxu0 %v395
    %1689 = vmatprep.subr.mxu0 %v400
    %1690 = vmatpush1.msra.mxu0 %v399
    %1691 = vmatprep.subr.mxu0 %v404
    %1692 = vmatpush1.msra.mxu0 %v403
    %1693 = vmatprep.subr.mxu0 %v408
    %1694 = vmatpush1.msra.mxu0 %v407
    %1695 = vmatprep.subr.mxu0 %v412
    %1696 = vmatpush1.msra.mxu0 %v411
    %1697 = vmatprep.subr.mxu0 %v416
    %1698 = vmatpush1.msra.mxu0 %v415
    %1699 = vmatprep.subr.mxu0 %v420
    %1700 = vmatpush1.msra.mxu0 %v419
    %1701 = vmatprep.subr.mxu0 %v424
    %1702 = vmatpush1.msra.mxu0 %v423
    %1703 = vmatprep.subr.mxu0 %v428
    %1704 = vmatpush1.msra.mxu0 %v427
    %1705 = vmatprep.subr.mxu0 %v432
    %1706 = vmatpush1.msra.mxu0 %v431
    %1707 = vmatprep.subr.mxu0 %v436
    %1708 = vmatpush1.msra.mxu0 %v435
    %1709 = vmatprep.subr.mxu0 %v440
    %1710 = vmatpush1.msra.mxu0 %v439
    %1711 = vmatprep.subr.mxu0 %v444
    %1712 = vmatpush1.msra.mxu0 %v443
    %1713 = vmatprep.subr.mxu0 %v448
    %1714 = vmatpush1.msra.mxu0 %v447
    %1715 = vmatprep.subr.mxu0 %v452
    %1716 = vmatpush1.msra.mxu0 %v451
    %1717 = vmatprep.subr.mxu0 %v456
    %1718 = vmatpush1.msra.mxu0 %v455
    %1719 = vmatprep.subr.mxu0 %v460
    %1720 = vmatpush1.msra.mxu0 %v459
    %1721 = vmatprep.subr.mxu0 %v464
    %1722 = vmatpush1.msra.mxu0 %v463
    %1723 = vmatprep.subr.mxu0 %v468
    %1724 = vmatpush1.msra.mxu0 %v467
    %1725 = vmatprep.subr.mxu0 %v472
    %1726 = vmatpush1.msra.mxu0 %v471
    %1727 = vmatprep.subr.mxu0 %v476
    %1728 = vmatpush1.msra.mxu0 %v475
    %1729 = vmatprep.subr.mxu0 %v480
    %1730 = vmatpush1.msra.mxu0 %v479
    %1731 = vmatprep.subr.mxu0 %v484
    %1732 = vmatpush1.msra.mxu0 %v483
    %1733 = vmatprep.subr.mxu0 %v488
    %1734 = vmatpush1.msra.mxu0 %v487
    %1735 = vmatprep.subr.mxu0 %v492
    %1736 = vmatpush1.msra.mxu0 %v491
    %1737 = vmatprep.subr.mxu0 %v496
    %1738 = vmatpush1.msra.mxu0 %v495
    %1739 = vmatprep.subr.mxu0 %v500
    %1740 = vmatpush1.msra.mxu0 %v499
    %1741 = vmatprep.subr.mxu0 %v504
    %1742 = vmatpush1.msra.mxu0 %v503
    %1743 = vmatprep.mubr.f32.mxu0 %v1355
    %1744 = vmatmul.mubr.f32.gmra.mrb[0].mxu0 %v1678
    %v1745 = vpop.f32.mrb[0].mxu0
    %v1746 = vadd.f32 %v657, %v1745
    %v1747 = vpop.f32.mrb[0].mxu0
    %v1748 = vadd.f32 %v661, %v1747
    %1749 = vdwg.mxu0
    %1750 = vmatprep.subr.mxu0 %v382
    %1751 = vmatpush1.msra.mxu0 %v381
    %1752 = vmatprep.subr.mxu0 %v386
    %1753 = vmatpush1.msra.mxu0 %v385
    %1754 = vmatprep.subr.mxu0 %v390
    %1755 = vmatpush1.msra.mxu0 %v389
    %1756 = vmatprep.subr.mxu0 %v394
    %1757 = vmatpush1.msra.mxu0 %v393
    %1758 = vmatprep.subr.mxu0 %v398
    %1759 = vmatpush1.msra.mxu0 %v397
    %1760 = vmatprep.subr.mxu0 %v402
    %1761 = vmatpush1.msra.mxu0 %v401
    %1762 = vmatprep.subr.mxu0 %v406
    %1763 = vmatpush1.msra.mxu0 %v405
    %1764 = vmatprep.subr.mxu0 %v410
    %1765 = vmatpush1.msra.mxu0 %v409
    %1766 = vmatprep.subr.mxu0 %v414
    %1767 = vmatpush1.msra.mxu0 %v413
    %1768 = vmatprep.subr.mxu0 %v418
    %1769 = vmatpush1.msra.mxu0 %v417
    %1770 = vmatprep.subr.mxu0 %v422
    %1771 = vmatpush1.msra.mxu0 %v421
    %1772 = vmatprep.subr.mxu0 %v426
    %1773 = vmatpush1.msra.mxu0 %v425
    %1774 = vmatprep.subr.mxu0 %v430
    %1775 = vmatpush1.msra.mxu0 %v429
    %1776 = vmatprep.subr.mxu0 %v434
    %1777 = vmatpush1.msra.mxu0 %v433
    %1778 = vmatprep.subr.mxu0 %v438
    %1779 = vmatpush1.msra.mxu0 %v437
    %1780 = vmatprep.subr.mxu0 %v442
    %1781 = vmatpush1.msra.mxu0 %v441
    %1782 = vmatprep.subr.mxu0 %v446
    %1783 = vmatpush1.msra.mxu0 %v445
    %1784 = vmatprep.subr.mxu0 %v450
    %1785 = vmatpush1.msra.mxu0 %v449
    %1786 = vmatprep.subr.mxu0 %v454
    %1787 = vmatpush1.msra.mxu0 %v453
    %1788 = vmatprep.subr.mxu0 %v458
    %1789 = vmatpush1.msra.mxu0 %v457
    %1790 = vmatprep.subr.mxu0 %v462
    %1791 = vmatpush1.msra.mxu0 %v461
    %1792 = vmatprep.subr.mxu0 %v466
    %1793 = vmatpush1.msra.mxu0 %v465
    %1794 = vmatprep.subr.mxu0 %v470
    %1795 = vmatpush1.msra.mxu0 %v469
    %1796 = vmatprep.subr.mxu0 %v474
    %1797 = vmatpush1.msra.mxu0 %v473
    %1798 = vmatprep.subr.mxu0 %v478
    %1799 = vmatpush1.msra.mxu0 %v477
    %1800 = vmatprep.subr.mxu0 %v482
    %1801 = vmatpush1.msra.mxu0 %v481
    %1802 = vmatprep.subr.mxu0 %v486
    %1803 = vmatpush1.msra.mxu0 %v485
    %1804 = vmatprep.subr.mxu0 %v490
    %1805 = vmatpush1.msra.mxu0 %v489
    %1806 = vmatprep.subr.mxu0 %v494
    %1807 = vmatpush1.msra.mxu0 %v493
    %1808 = vmatprep.subr.mxu0 %v498
    %1809 = vmatpush1.msra.mxu0 %v497
    %1810 = vmatprep.subr.mxu0 %v502
    %1811 = vmatpush1.msra.mxu0 %v501
    %1812 = vmatprep.subr.mxu0 %v506
    %1813 = vmatpush1.msra.mxu0 %v505
    %1814 = vmatprep.mubr.f32.mxu0 %v1355
    %1815 = vmatmul.mubr.f32.gmra.mrb[0].mxu0 %v1678
    %v1816 = vpop.f32.mrb[0].mxu0
    %v1817 = vadd.f32 %v665, %v1816
    %v1818 = vpop.f32.mrb[0].mxu0
    %v1819 = vadd.f32 %v669, %v1818
    %1820 = vdwg.mxu0
    %v1821 = vxor.u32 %v1746, 2147483648
    %v1822 = vmul.f32 %v1821, 1.442695
    %v1823 = vpow.pop %v1822
    %v1824 = vadd.f32 %v1823, 1.0
    %v1825 = vrcp.pop %v1824
    %v1826 = vmul.f32 1.0, %v1825
    %v1827 = vxor.u32 %v1748, 2147483648
    %v1828 = vmul.f32 %v1827, 1.442695
    %v1829 = vpow.pop %v1828
    %v1830 = vadd.f32 %v1829, 1.0
    %v1831 = vrcp.pop %v1830
    %v1832 = vmul.f32 1.0, %v1831
    %v1833 = vtanh.pop %v1817
    %v1834 = vxor.u32 %v1819, 2147483648
    %v1835 = vmul.f32 %v1834, 1.442695
    %v1836 = vpow.pop %v1835
    %v1837 = vadd.f32 %v1836, 1.0
    %v1838 = vrcp.pop %v1837
    %v1839 = vmul.f32 1.0, %v1838
    %v1840 = vmul.f32 %v1832, %v1353
    %v1841 = vmul.f32 %v1826, %v1833
    %v1842 = vadd.f32 %v1840, %v1841
    %v1843 = vtanh.pop %v1842
    %v1844 = vmul.f32 %v1839, %v1843
    %1845 = vmatprep.subr.mxu0 %v508
    %1846 = vmatpush1.msra.mxu0 %v507
    %1847 = vmatprep.subr.mxu0 %v512
    %1848 = vmatpush1.msra.mxu0 %v511
    %1849 = vmatprep.subr.mxu0 %v516
    %1850 = vmatpush1.msra.mxu0 %v515
    %1851 = vmatprep.subr.mxu0 %v520
    %1852 = vmatpush1.msra.mxu0 %v519
    %1853 = vmatprep.subr.mxu0 %v524
    %1854 = vmatpush1.msra.mxu0 %v523
    %1855 = vmatprep.subr.mxu0 %v528
    %1856 = vmatpush1.msra.mxu0 %v527
    %1857 = vmatprep.subr.mxu0 %v532
    %1858 = vmatpush1.msra.mxu0 %v531
    %1859 = vmatprep.subr.mxu0 %v536
    %1860 = vmatpush1.msra.mxu0 %v535
    %1861 = vmatprep.subr.mxu0 %v540
    %1862 = vmatpush1.msra.mxu0 %v539
    %1863 = vmatprep.subr.mxu0 %v544
    %1864 = vmatpush1.msra.mxu0 %v543
    %1865 = vmatprep.subr.mxu0 %v548
    %1866 = vmatpush1.msra.mxu0 %v547
    %1867 = vmatprep.subr.mxu0 %v552
    %1868 = vmatpush1.msra.mxu0 %v551
    %1869 = vmatprep.subr.mxu0 %v556
    %1870 = vmatpush1.msra.mxu0 %v555
    %1871 = vmatprep.subr.mxu0 %v560
    %1872 = vmatpush1.msra.mxu0 %v559
    %1873 = vmatprep.subr.mxu0 %v564
    %1874 = vmatpush1.msra.mxu0 %v563
    %1875 = vmatprep.subr.mxu0 %v568
    %1876 = vmatpush1.msra.mxu0 %v567
    %1877 = vmatprep.subr.mxu0 %v572
    %1878 = vmatpush1.msra.mxu0 %v571
    %1879 = vmatprep.subr.mxu0 %v576
    %1880 = vmatpush1.msra.mxu0 %v575
    %1881 = vmatprep.subr.mxu0 %v580
    %1882 = vmatpush1.msra.mxu0 %v579
    %1883 = vmatprep.subr.mxu0 %v584
    %1884 = vmatpush1.msra.mxu0 %v583
    %1885 = vmatprep.subr.mxu0 %v588
    %1886 = vmatpush1.msra.mxu0 %v587
    %1887 = vmatprep.subr.mxu0 %v592
    %1888 = vmatpush1.msra.mxu0 %v591
    %1889 = vmatprep.subr.mxu0 %v596
    %1890 = vmatpush1.msra.mxu0 %v595
    %1891 = vmatprep.subr.mxu0 %v600
    %1892 = vmatpush1.msra.mxu0 %v599
    %1893 = vmatprep.subr.mxu0 %v604
    %1894 = vmatpush1.msra.mxu0 %v603
    %1895 = vmatprep.subr.mxu0 %v608
    %1896 = vmatpush1.msra.mxu0 %v607
    %1897 = vmatprep.subr.mxu0 %v612
    %1898 = vmatpush1.msra.mxu0 %v611
    %1899 = vmatprep.subr.mxu0 %v616
    %1900 = vmatpush1.msra.mxu0 %v615
    %1901 = vmatprep.subr.mxu0 %v620
    %1902 = vmatpush1.msra.mxu0 %v619
    %1903 = vmatprep.subr.mxu0 %v624
    %1904 = vmatpush1.msra.mxu0 %v623
    %1905 = vmatprep.subr.mxu0 %v628
    %1906 = vmatpush1.msra.mxu0 %v627
    %1907 = vmatprep.subr.mxu0 %v632
    %1908 = vmatpush1.msra.mxu0 %v631
    %1909 = vmatprep.mubr.f32.mxu0 %v1521
    %1910 = vmatmul.mubr.f32.gmra.mrb[0].mxu0 %v1844
    %v1911 = vpop.f32.mrb[0].mxu0
    %v1912 = vadd.f32 %v844, %v1911
    %v1913 = vpop.f32.mrb[0].mxu0
    %v1914 = vadd.f32 %v848, %v1913
    %1915 = vdwg.mxu0
    %1916 = vmatprep.subr.mxu0 %v510
    %1917 = vmatpush1.msra.mxu0 %v509
    %1918 = vmatprep.subr.mxu0 %v514
    %1919 = vmatpush1.msra.mxu0 %v513
    %1920 = vmatprep.subr.mxu0 %v518
    %1921 = vmatpush1.msra.mxu0 %v517
    %1922 = vmatprep.subr.mxu0 %v522
    %1923 = vmatpush1.msra.mxu0 %v521
    %1924 = vmatprep.subr.mxu0 %v526
    %1925 = vmatpush1.msra.mxu0 %v525
    %1926 = vmatprep.subr.mxu0 %v530
    %1927 = vmatpush1.msra.mxu0 %v529
    %1928 = vmatprep.subr.mxu0 %v534
    %1929 = vmatpush1.msra.mxu0 %v533
    %1930 = vmatprep.subr.mxu0 %v538
    %1931 = vmatpush1.msra.mxu0 %v537
    %1932 = vmatprep.subr.mxu0 %v542
    %1933 = vmatpush1.msra.mxu0 %v541
    %1934 = vmatprep.subr.mxu0 %v546
    %1935 = vmatpush1.msra.mxu0 %v545
    %1936 = vmatprep.subr.mxu0 %v550
    %1937 = vmatpush1.msra.mxu0 %v549
    %1938 = vmatprep.subr.mxu0 %v554
    %1939 = vmatpush1.msra.mxu0 %v553
    %1940 = vmatprep.subr.mxu0 %v558
    %1941 = vmatpush1.msra.mxu0 %v557
    %1942 = vmatprep.subr.mxu0 %v562
    %1943 = vmatpush1.msra.mxu0 %v561
    %1944 = vmatprep.subr.mxu0 %v566
    %1945 = vmatpush1.msra.mxu0 %v565
    %1946 = vmatprep.subr.mxu0 %v570
    %1947 = vmatpush1.msra.mxu0 %v569
    %1948 = vmatprep.subr.mxu0 %v574
    %1949 = vmatpush1.msra.mxu0 %v573
    %1950 = vmatprep.subr.mxu0 %v578
    %1951 = vmatpush1.msra.mxu0 %v577
    %1952 = vmatprep.subr.mxu0 %v582
    %1953 = vmatpush1.msra.mxu0 %v581
    %1954 = vmatprep.subr.mxu0 %v586
    %1955 = vmatpush1.msra.mxu0 %v585
    %1956 = vmatprep.subr.mxu0 %v590
    %1957 = vmatpush1.msra.mxu0 %v589
    %1958 = vmatprep.subr.mxu0 %v594
    %1959 = vmatpush1.msra.mxu0 %v593
    %1960 = vmatprep.subr.mxu0 %v598
    %1961 = vmatpush1.msra.mxu0 %v597
    %1962 = vmatprep.subr.mxu0 %v602
    %1963 = vmatpush1.msra.mxu0 %v601
    %1964 = vmatprep.subr.mxu0 %v606
    %1965 = vmatpush1.msra.mxu0 %v605
    %1966 = vmatprep.subr.mxu0 %v610
    %1967 = vmatpush1.msra.mxu0 %v609
    %1968 = vmatprep.subr.mxu0 %v614
    %1969 = vmatpush1.msra.mxu0 %v613
    %1970 = vmatprep.subr.mxu0 %v618
    %1971 = vmatpush1.msra.mxu0 %v617
    %1972 = vmatprep.subr.mxu0 %v622
    %1973 = vmatpush1.msra.mxu0 %v621
    %1974 = vmatprep.subr.mxu0 %v626
    %1975 = vmatpush1.msra.mxu0 %v625
    %1976 = vmatprep.subr.mxu0 %v630
    %1977 = vmatpush1.msra.mxu0 %v629
    %1978 = vmatprep.subr.mxu0 %v634
    %1979 = vmatpush1.msra.mxu0 %v633
    %1980 = vmatprep.mubr.f32.mxu0 %v1521
    %1981 = vmatmul.mubr.f32.gmra.mrb[0].mxu0 %v1844
    %v1982 = vpop.f32.mrb[0].mxu0
    %v1983 = vadd.f32 %v852, %v1982
    %v1984 = vpop.f32.mrb[0].mxu0
    %v1985 = vadd.f32 %v856, %v1984
    %1986 = vdwg.mxu0
    %v1987 = vxor.u32 %v1912, 2147483648
    %v1988 = vmul.f32 %v1987, 1.442695
    %v1989 = vpow.pop %v1988
    %v1990 = vadd.f32 %v1989, 1.0
    %v1991 = vrcp.pop %v1990
    %v1992 = vmul.f32 1.0, %v1991
    %v1993 = vxor.u32 %v1914, 2147483648
    %v1994 = vmul.f32 %v1993, 1.442695
    %v1995 = vpow.pop %v1994
    %v1996 = vadd.f32 %v1995, 1.0
    %v1997 = vrcp.pop %v1996
    %v1998 = vmul.f32 1.0, %v1997
    %v1999 = vtanh.pop %v1983
    %v2000 = vxor.u32 %v1985, 2147483648
    %v2001 = vmul.f32 %v2000, 1.442695
    %v2002 = vpow.pop %v2001
    %v2003 = vadd.f32 %v2002, 1.0
    %v2004 = vrcp.pop %v2003
    %v2005 = vmul.f32 1.0, %v2004
    %v2006 = vmul.f32 %v1998, %v1519
    %v2007 = vmul.f32 %v1992, %v1999
    %v2008 = vadd.f32 %v2006, %v2007
    %v2009 = vtanh.pop %v2008
    %v2010 = vmul.f32 %v2005, %v2009
    %2011 = vmatprep.subr.mxu0 0.0
    %2012 = vmatpush1.msra.mxu0 %v635
    %2013 = vmatprep.subr.mxu0 0.0
    %2014 = vmatpush1.msra.mxu0 %v636
    %2015 = vmatprep.subr.mxu0 0.0
    %2016 = vmatpush1.msra.mxu0 %v637
    %2017 = vmatprep.subr.mxu0 0.0
    %2018 = vmatpush1.msra.mxu0 %v638
    %2019 = vmatprep.subr.mxu0 0.0
    %2020 = vmatpush1.msra.mxu0 %v639
    %2021 = vmatprep.subr.mxu0 0.0
    %2022 = vmatpush1.msra.mxu0 %v640
    %2023 = vmatprep.subr.mxu0 0.0
    %2024 = vmatpush1.msra.mxu0 %v641
    %2025 = vmatprep.subr.mxu0 0.0
    %2026 = vmatpush1.msra.mxu0 %v642
    %2027 = vmatprep.subr.mxu0 0.0
    %2028 = vmatpush1.msra.mxu0 %v643
    %2029 = vmatprep.subr.mxu0 0.0
    %2030 = vmatpush1.msra.mxu0 %v644
    %2031 = vmatprep.subr.mxu0 0.0
    %2032 = vmatpush1.msra.mxu0 %v645
    %2033 = vmatprep.subr.mxu0 0.0
    %2034 = vmatpush1.msra.mxu0 %v646
    %2035 = vmatprep.subr.mxu0 0.0
    %2036 = vmatpush1.msra.mxu0 %v647
    %2037 = vmatprep.subr.mxu0 0.0
    %2038 = vmatpush1.msra.mxu0 %v648
    %2039 = vmatprep.subr.mxu0 0.0
    %2040 = vmatpush1.msra.mxu0 %v649
    %2041 = vmatprep.subr.mxu0 0.0
    %2042 = vmatpush1.msra.mxu0 %v650
    %2043 = vmatprep.subr.mxu0 0.0
    %2044 = vmatpush1.msra.mxu0 0.0
    %2045 = vmatprep.subr.mxu0 0.0
    %2046 = vmatpush1.msra.mxu0 0.0
    %2047 = vmatprep.subr.mxu0 0.0
    %2048 = vmatpush1.msra.mxu0 0.0
    %2049 = vmatprep.subr.mxu0 0.0
    %2050 = vmatpush1.msra.mxu0 0.0
    %2051 = vmatprep.subr.mxu0 0.0
    %2052 = vmatpush1.msra.mxu0 0.0
    %2053 = vmatprep.subr.mxu0 0.0
    %2054 = vmatpush1.msra.mxu0 0.0
    %2055 = vmatprep.subr.mxu0 0.0
    %2056 = vmatpush1.msra.mxu0 0.0
    %2057 = vmatprep.subr.mxu0 0.0
    %2058 = vmatpush1.msra.mxu0 0.0
    %2059 = vmatprep.subr.mxu0 0.0
    %2060 = vmatpush1.msra.mxu0 0.0
    %2061 = vmatprep.subr.mxu0 0.0
    %2062 = vmatpush1.msra.mxu0 0.0
    %2063 = vmatprep.subr.mxu0 0.0
    %2064 = vmatpush1.msra.mxu0 0.0
    %2065 = vmatprep.subr.mxu0 0.0
    %2066 = vmatpush1.msra.mxu0 0.0
    %2067 = vmatprep.subr.mxu0 0.0
    %2068 = vmatpush1.msra.mxu0 0.0
    %2069 = vmatprep.subr.mxu0 0.0
    %2070 = vmatpush1.msra.mxu0 0.0
    %2071 = vmatprep.subr.mxu0 0.0
    %2072 = vmatpush1.msra.mxu0 0.0
    %2073 = vmatprep.subr.mxu0 0.0
    %2074 = vmatpush1.msra.mxu0 0.0
    %2075 = vmatprep.mubr.f32.mxu0 0.0
    %2076 = vmatmul.mubr.f32.gmra.mrb[0].mxu0 %v2010
    %v2077 = vpop.f32.mrb[0].mxu0
    %v2078 = vadd.f32 %v1031, %v2077
    %v2079 = vpop.f32.mrb[0].mxu0
    %2080 = vdwg.mxu0
    %v2082 = vcombine.high %v2078, %v2078
    %v2084 = vunpack.c.l.s4 1966171168
    %v2085 = vunpack.c.0.s8 %v2084
    %v2086 = vlaneseq
    %v2087 = vshrl.u32 %v2086, 7
    %v2088 = vsub.s32 %v2085, %v2087
    %v2089 = vrot.slane %v2078, %v2088
    %v2091 = vunpack.c.l.s4 1966171168
    %v2092 = vunpack.c.0.s8 %v2091
    %v2093 = vlaneseq
    %v2094 = vshrl.u32 %v2093, 7
    %v2095 = vsub.s32 %v2092, %v2094
    %v2096 = vrot.slane %v2082, %v2095
    %v2097 = vcombine.high %v2089, %v2089
    %v2098 = vcombine.high %v2096, %v2096
    %v2100 = vunpack.c.l.s4 1966171168
    %v2101 = vunpack.c.0.s8 %v2100
    %v2102 = vlaneseq
    %v2103 = vshrl.u32 %v2102, 7
    %v2104 = vsub.s32 %v2101, %v2103
    %v2105 = vrot.slane %v2089, %v2104
    %v2107 = vunpack.c.l.s4 1966171168
    %v2108 = vunpack.c.0.s8 %v2107
    %v2109 = vlaneseq
    %v2110 = vshrl.u32 %v2109, 7
    %v2111 = vsub.s32 %v2108, %v2110
    %v2112 = vrot.slane %v2096, %v2111
    %v2114 = vunpack.c.l.s4 1966171168
    %v2115 = vunpack.c.0.s8 %v2114
    %v2116 = vlaneseq
    %v2117 = vshrl.u32 %v2116, 7
    %v2118 = vsub.s32 %v2115, %v2117
    %v2119 = vrot.slane %v2097, %v2118
    %v2121 = vunpack.c.l.s4 1966171168
    %v2122 = vunpack.c.0.s8 %v2121
    %v2123 = vlaneseq
    %v2124 = vshrl.u32 %v2123, 7
    %v2125 = vsub.s32 %v2122, %v2124
    %v2126 = vrot.slane %v2098, %v2125
    %v2127 = vcombine.high %v2105, %v2105
    %v2128 = vcombine.high %v2112, %v2112
    %v2129 = vcombine.high %v2119, %v2119
    %v2130 = vcombine.high %v2126, %v2126
    %2139 = vst [vmem:[%s7 + $0x2] sm:$0x1] %v2105
    %2140 = vst [vmem:[%s7 + $0xa] sm:$0x1] %v2119
    %2141 = vst [vmem:[%s7 + $0x12] sm:$0x1] %v2127
    %2142 = vst [vmem:[%s7 + $0x1a] sm:$0x1] %v2129
    %2143 = vst [vmem:[%s7 + $0x22] sm:$0x1] %v2112
    %2144 = vst [vmem:[%s7 + $0x2a] sm:$0x1] %v2126
    %2145 = vst [vmem:[%s7 + $0x32] sm:$0x1] %v2128
    %2146 = vst [vmem:[%s7 + $0x3a] sm:$0x1] %v2130
    %2147 = vmax.xlane.f32.xlu0 %v2078
    %v2148 = vpop.xlane.xlu0 %2147
    %vm2149 = vcmp.eq.f32.partialorder %v2078, %v2148
    %v2150 = vsel %vm2149, %v652, 128
    %v2151 = vand.u32 %v2150, 65535
    %v2152 = vshra.s32 %v2150, 16
    %v2153 = vcvt.s32.f32 %v2151
    %v2154 = vcvt.s32.f32 %v2152
    %2155 = vmin.xlane.f32.xlu0 %v2154
    %v2156 = vpop.xlane.xlu0 %2155
    %vm2157 = vcmp.eq.f32.partialorder %v2154, %v2156
    %v2158 = vsel %vm2157, %v2153, inf
    %2159 = vmin.xlane.f32.xlu0 %v2158
    %v2160 = vpop.xlane.xlu0 %2159
    %v2161 = vcvt.f32.s32 %v2160
    %v2162 = vcvt.f32.s32 %v2156
    %v2163 = vshll.u32 %v2162, 16
    %v2164 = vadd.s32 %v2163, %v2161
    %vm2165 = vcmp.eq.s32.totalorder %v652, %v2164
    %v2166 = vsel %vm2165, 1, 0
    %v2167 = vcvt.s32.f32 %v2166
    %2168 = vmatprep.subr.mxu0 %v380
    %2169 = vmatpush1.msra.mxu0 %v379
    %2170 = vmatprep.subr.mxu0 %v384
    %2171 = vmatpush1.msra.mxu0 %v383
    %2172 = vmatprep.subr.mxu0 %v388
    %2173 = vmatpush1.msra.mxu0 %v387
    %2174 = vmatprep.subr.mxu0 %v392
    %2175 = vmatpush1.msra.mxu0 %v391
    %2176 = vmatprep.subr.mxu0 %v396
    %2177 = vmatpush1.msra.mxu0 %v395
    %2178 = vmatprep.subr.mxu0 %v400
    %2179 = vmatpush1.msra.mxu0 %v399
    %2180 = vmatprep.subr.mxu0 %v404
    %2181 = vmatpush1.msra.mxu0 %v403
    %2182 = vmatprep.subr.mxu0 %v408
    %2183 = vmatpush1.msra.mxu0 %v407
    %2184 = vmatprep.subr.mxu0 %v412
    %2185 = vmatpush1.msra.mxu0 %v411
    %2186 = vmatprep.subr.mxu0 %v416
    %2187 = vmatpush1.msra.mxu0 %v415
    %2188 = vmatprep.subr.mxu0 %v420
    %2189 = vmatpush1.msra.mxu0 %v419
    %2190 = vmatprep.subr.mxu0 %v424
    %2191 = vmatpush1.msra.mxu0 %v423
    %2192 = vmatprep.subr.mxu0 %v428
    %2193 = vmatpush1.msra.mxu0 %v427
    %2194 = vmatprep.subr.mxu0 %v432
    %2195 = vmatpush1.msra.mxu0 %v431
    %2196 = vmatprep.subr.mxu0 %v436
    %2197 = vmatpush1.msra.mxu0 %v435
    %2198 = vmatprep.subr.mxu0 %v440
    %2199 = vmatpush1.msra.mxu0 %v439
    %2200 = vmatprep.subr.mxu0 %v444
    %2201 = vmatpush1.msra.mxu0 %v443
    %2202 = vmatprep.subr.mxu0 %v448
    %2203 = vmatpush1.msra.mxu0 %v447
    %2204 = vmatprep.subr.mxu0 %v452
    %2205 = vmatpush1.msra.mxu0 %v451
    %2206 = vmatprep.subr.mxu0 %v456
    %2207 = vmatpush1.msra.mxu0 %v455
    %2208 = vmatprep.subr.mxu0 %v460
    %2209 = vmatpush1.msra.mxu0 %v459
    %2210 = vmatprep.subr.mxu0 %v464
    %2211 = vmatpush1.msra.mxu0 %v463
    %2212 = vmatprep.subr.mxu0 %v468
    %2213 = vmatpush1.msra.mxu0 %v467
    %2214 = vmatprep.subr.mxu0 %v472
    %2215 = vmatpush1.msra.mxu0 %v471
    %2216 = vmatprep.subr.mxu0 %v476
    %2217 = vmatpush1.msra.mxu0 %v475
    %2218 = vmatprep.subr.mxu0 %v480
    %2219 = vmatpush1.msra.mxu0 %v479
    %2220 = vmatprep.subr.mxu0 %v484
    %2221 = vmatpush1.msra.mxu0 %v483
    %2222 = vmatprep.subr.mxu0 %v488
    %2223 = vmatpush1.msra.mxu0 %v487
    %2224 = vmatprep.subr.mxu0 %v492
    %2225 = vmatpush1.msra.mxu0 %v491
    %2226 = vmatprep.subr.mxu0 %v496
    %2227 = vmatpush1.msra.mxu0 %v495
    %2228 = vmatprep.subr.mxu0 %v500
    %2229 = vmatpush1.msra.mxu0 %v499
    %2230 = vmatprep.subr.mxu0 %v504
    %2231 = vmatpush1.msra.mxu0 %v503
    %2232 = vmatprep.mubr.f32.mxu0 %v1844
    %2233 = vmatmul.mubr.f32.gmra.mrb[0].mxu0 %v2167
    %v2234 = vpop.f32.mrb[0].mxu0
    %v2235 = vadd.f32 %v657, %v2234
    %v2236 = vpop.f32.mrb[0].mxu0
    %v2237 = vadd.f32 %v661, %v2236
    %2238 = vdwg.mxu0
    %2239 = vmatprep.subr.mxu0 %v382
    %2240 = vmatpush1.msra.mxu0 %v381
    %2241 = vmatprep.subr.mxu0 %v386
    %2242 = vmatpush1.msra.mxu0 %v385
    %2243 = vmatprep.subr.mxu0 %v390
    %2244 = vmatpush1.msra.mxu0 %v389
    %2245 = vmatprep.subr.mxu0 %v394
    %2246 = vmatpush1.msra.mxu0 %v393
    %2247 = vmatprep.subr.mxu0 %v398
    %2248 = vmatpush1.msra.mxu0 %v397
    %2249 = vmatprep.subr.mxu0 %v402
    %2250 = vmatpush1.msra.mxu0 %v401
    %2251 = vmatprep.subr.mxu0 %v406
    %2252 = vmatpush1.msra.mxu0 %v405
    %2253 = vmatprep.subr.mxu0 %v410
    %2254 = vmatpush1.msra.mxu0 %v409
    %2255 = vmatprep.subr.mxu0 %v414
    %2256 = vmatpush1.msra.mxu0 %v413
    %2257 = vmatprep.subr.mxu0 %v418
    %2258 = vmatpush1.msra.mxu0 %v417
    %2259 = vmatprep.subr.mxu0 %v422
    %2260 = vmatpush1.msra.mxu0 %v421
    %2261 = vmatprep.subr.mxu0 %v426
    %2262 = vmatpush1.msra.mxu0 %v425
    %2263 = vmatprep.subr.mxu0 %v430
    %2264 = vmatpush1.msra.mxu0 %v429
    %2265 = vmatprep.subr.mxu0 %v434
    %2266 = vmatpush1.msra.mxu0 %v433
    %2267 = vmatprep.subr.mxu0 %v438
    %2268 = vmatpush1.msra.mxu0 %v437
    %2269 = vmatprep.subr.mxu0 %v442
    %2270 = vmatpush1.msra.mxu0 %v441
    %2271 = vmatprep.subr.mxu0 %v446
    %2272 = vmatpush1.msra.mxu0 %v445
    %2273 = vmatprep.subr.mxu0 %v450
    %2274 = vmatpush1.msra.mxu0 %v449
    %2275 = vmatprep.subr.mxu0 %v454
    %2276 = vmatpush1.msra.mxu0 %v453
    %2277 = vmatprep.subr.mxu0 %v458
    %2278 = vmatpush1.msra.mxu0 %v457
    %2279 = vmatprep.subr.mxu0 %v462
    %2280 = vmatpush1.msra.mxu0 %v461
    %2281 = vmatprep.subr.mxu0 %v466
    %2282 = vmatpush1.msra.mxu0 %v465
    %2283 = vmatprep.subr.mxu0 %v470
    %2284 = vmatpush1.msra.mxu0 %v469
    %2285 = vmatprep.subr.mxu0 %v474
    %2286 = vmatpush1.msra.mxu0 %v473
    %2287 = vmatprep.subr.mxu0 %v478
    %2288 = vmatpush1.msra.mxu0 %v477
    %2289 = vmatprep.subr.mxu0 %v482
    %2290 = vmatpush1.msra.mxu0 %v481
    %2291 = vmatprep.subr.mxu0 %v486
    %2292 = vmatpush1.msra.mxu0 %v485
    %2293 = vmatprep.subr.mxu0 %v490
    %2294 = vmatpush1.msra.mxu0 %v489
    %2295 = vmatprep.subr.mxu0 %v494
    %2296 = vmatpush1.msra.mxu0 %v493
    %2297 = vmatprep.subr.mxu0 %v498
    %2298 = vmatpush1.msra.mxu0 %v497
    %2299 = vmatprep.subr.mxu0 %v502
    %2300 = vmatpush1.msra.mxu0 %v501
    %2301 = vmatprep.subr.mxu0 %v506
    %2302 = vmatpush1.msra.mxu0 %v505
    %2303 = vmatprep.mubr.f32.mxu0 %v1844
    %2304 = vmatmul.mubr.f32.gmra.mrb[0].mxu0 %v2167
    %v2305 = vpop.f32.mrb[0].mxu0
    %v2306 = vadd.f32 %v665, %v2305
    %v2307 = vpop.f32.mrb[0].mxu0
    %v2308 = vadd.f32 %v669, %v2307
    %2309 = vdwg.mxu0
    %v2310 = vxor.u32 %v2235, 2147483648
    %v2311 = vmul.f32 %v2310, 1.442695
    %v2312 = vpow.pop %v2311
    %v2313 = vadd.f32 %v2312, 1.0
    %v2314 = vrcp.pop %v2313
    %v2315 = vmul.f32 1.0, %v2314
    %v2316 = vxor.u32 %v2237, 2147483648
    %v2317 = vmul.f32 %v2316, 1.442695
    %v2318 = vpow.pop %v2317
    %v2319 = vadd.f32 %v2318, 1.0
    %v2320 = vrcp.pop %v2319
    %v2321 = vmul.f32 1.0, %v2320
    %v2322 = vtanh.pop %v2306
    %v2323 = vxor.u32 %v2308, 2147483648
    %v2324 = vmul.f32 %v2323, 1.442695
    %v2325 = vpow.pop %v2324
    %v2326 = vadd.f32 %v2325, 1.0
    %v2327 = vrcp.pop %v2326
    %v2328 = vmul.f32 1.0, %v2327
    %v2329 = vmul.f32 %v2321, %v1842
    %v2330 = vmul.f32 %v2315, %v2322
    %v2331 = vadd.f32 %v2329, %v2330
    %v2332 = vtanh.pop %v2331
    %v2333 = vmul.f32 %v2328, %v2332
    %2334 = vmatprep.subr.mxu0 %v508
    %2335 = vmatpush1.msra.mxu0 %v507
    %2336 = vmatprep.subr.mxu0 %v512
    %2337 = vmatpush1.msra.mxu0 %v511
    %2338 = vmatprep.subr.mxu0 %v516
    %2339 = vmatpush1.msra.mxu0 %v515
    %2340 = vmatprep.subr.mxu0 %v520
    %2341 = vmatpush1.msra.mxu0 %v519
    %2342 = vmatprep.subr.mxu0 %v524
    %2343 = vmatpush1.msra.mxu0 %v523
    %2344 = vmatprep.subr.mxu0 %v528
    %2345 = vmatpush1.msra.mxu0 %v527
    %2346 = vmatprep.subr.mxu0 %v532
    %2347 = vmatpush1.msra.mxu0 %v531
    %2348 = vmatprep.subr.mxu0 %v536
    %2349 = vmatpush1.msra.mxu0 %v535
    %2350 = vmatprep.subr.mxu0 %v540
    %2351 = vmatpush1.msra.mxu0 %v539
    %2352 = vmatprep.subr.mxu0 %v544
    %2353 = vmatpush1.msra.mxu0 %v543
    %2354 = vmatprep.subr.mxu0 %v548
    %2355 = vmatpush1.msra.mxu0 %v547
    %2356 = vmatprep.subr.mxu0 %v552
    %2357 = vmatpush1.msra.mxu0 %v551
    %2358 = vmatprep.subr.mxu0 %v556
    %2359 = vmatpush1.msra.mxu0 %v555
    %2360 = vmatprep.subr.mxu0 %v560
    %2361 = vmatpush1.msra.mxu0 %v559
    %2362 = vmatprep.subr.mxu0 %v564
    %2363 = vmatpush1.msra.mxu0 %v563
    %2364 = vmatprep.subr.mxu0 %v568
    %2365 = vmatpush1.msra.mxu0 %v567
    %2366 = vmatprep.subr.mxu0 %v572
    %2367 = vmatpush1.msra.mxu0 %v571
    %2368 = vmatprep.subr.mxu0 %v576
    %2369 = vmatpush1.msra.mxu0 %v575
    %2370 = vmatprep.subr.mxu0 %v580
    %2371 = vmatpush1.msra.mxu0 %v579
    %2372 = vmatprep.subr.mxu0 %v584
    %2373 = vmatpush1.msra.mxu0 %v583
    %2374 = vmatprep.subr.mxu0 %v588
    %2375 = vmatpush1.msra.mxu0 %v587
    %2376 = vmatprep.subr.mxu0 %v592
    %2377 = vmatpush1.msra.mxu0 %v591
    %2378 = vmatprep.subr.mxu0 %v596
    %2379 = vmatpush1.msra.mxu0 %v595
    %2380 = vmatprep.subr.mxu0 %v600
    %2381 = vmatpush1.msra.mxu0 %v599
    %2382 = vmatprep.subr.mxu0 %v604
    %2383 = vmatpush1.msra.mxu0 %v603
    %2384 = vmatprep.subr.mxu0 %v608
    %2385 = vmatpush1.msra.mxu0 %v607
    %2386 = vmatprep.subr.mxu0 %v612
    %2387 = vmatpush1.msra.mxu0 %v611
    %2388 = vmatprep.subr.mxu0 %v616
    %2389 = vmatpush1.msra.mxu0 %v615
    %2390 = vmatprep.subr.mxu0 %v620
    %2391 = vmatpush1.msra.mxu0 %v619
    %2392 = vmatprep.subr.mxu0 %v624
    %2393 = vmatpush1.msra.mxu0 %v623
    %2394 = vmatprep.subr.mxu0 %v628
    %2395 = vmatpush1.msra.mxu0 %v627
    %2396 = vmatprep.subr.mxu0 %v632
    %2397 = vmatpush1.msra.mxu0 %v631
    %2398 = vmatprep.mubr.f32.mxu0 %v2010
    %2399 = vmatmul.mubr.f32.gmra.mrb[0].mxu0 %v2333
    %v2400 = vpop.f32.mrb[0].mxu0
    %v2401 = vadd.f32 %v844, %v2400
    %v2402 = vpop.f32.mrb[0].mxu0
    %v2403 = vadd.f32 %v848, %v2402
    %2404 = vdwg.mxu0
    %2405 = vmatprep.subr.mxu0 %v510
    %2406 = vmatpush1.msra.mxu0 %v509
    %2407 = vmatprep.subr.mxu0 %v514
    %2408 = vmatpush1.msra.mxu0 %v513
    %2409 = vmatprep.subr.mxu0 %v518
    %2410 = vmatpush1.msra.mxu0 %v517
    %2411 = vmatprep.subr.mxu0 %v522
    %2412 = vmatpush1.msra.mxu0 %v521
    %2413 = vmatprep.subr.mxu0 %v526
    %2414 = vmatpush1.msra.mxu0 %v525
    %2415 = vmatprep.subr.mxu0 %v530
    %2416 = vmatpush1.msra.mxu0 %v529
    %2417 = vmatprep.subr.mxu0 %v534
    %2418 = vmatpush1.msra.mxu0 %v533
    %2419 = vmatprep.subr.mxu0 %v538
    %2420 = vmatpush1.msra.mxu0 %v537
    %2421 = vmatprep.subr.mxu0 %v542
    %2422 = vmatpush1.msra.mxu0 %v541
    %2423 = vmatprep.subr.mxu0 %v546
    %2424 = vmatpush1.msra.mxu0 %v545
    %2425 = vmatprep.subr.mxu0 %v550
    %2426 = vmatpush1.msra.mxu0 %v549
    %2427 = vmatprep.subr.mxu0 %v554
    %2428 = vmatpush1.msra.mxu0 %v553
    %2429 = vmatprep.subr.mxu0 %v558
    %2430 = vmatpush1.msra.mxu0 %v557
    %2431 = vmatprep.subr.mxu0 %v562
    %2432 = vmatpush1.msra.mxu0 %v561
    %2433 = vmatprep.subr.mxu0 %v566
    %2434 = vmatpush1.msra.mxu0 %v565
    %2435 = vmatprep.subr.mxu0 %v570
    %2436 = vmatpush1.msra.mxu0 %v569
    %2437 = vmatprep.subr.mxu0 %v574
    %2438 = vmatpush1.msra.mxu0 %v573
    %2439 = vmatprep.subr.mxu0 %v578
    %2440 = vmatpush1.msra.mxu0 %v577
    %2441 = vmatprep.subr.mxu0 %v582
    %2442 = vmatpush1.msra.mxu0 %v581
    %2443 = vmatprep.subr.mxu0 %v586
    %2444 = vmatpush1.msra.mxu0 %v585
    %2445 = vmatprep.subr.mxu0 %v590
    %2446 = vmatpush1.msra.mxu0 %v589
    %2447 = vmatprep.subr.mxu0 %v594
    %2448 = vmatpush1.msra.mxu0 %v593
    %2449 = vmatprep.subr.mxu0 %v598
    %2450 = vmatpush1.msra.mxu0 %v597
    %2451 = vmatprep.subr.mxu0 %v602
    %2452 = vmatpush1.msra.mxu0 %v601
    %2453 = vmatprep.subr.mxu0 %v606
    %2454 = vmatpush1.msra.mxu0 %v605
    %2455 = vmatprep.subr.mxu0 %v610
    %2456 = vmatpush1.msra.mxu0 %v609
    %2457 = vmatprep.subr.mxu0 %v614
    %2458 = vmatpush1.msra.mxu0 %v613
    %2459 = vmatprep.subr.mxu0 %v618
    %2460 = vmatpush1.msra.mxu0 %v617
    %2461 = vmatprep.subr.mxu0 %v622
    %2462 = vmatpush1.msra.mxu0 %v621
    %2463 = vmatprep.subr.mxu0 %v626
    %2464 = vmatpush1.msra.mxu0 %v625
    %2465 = vmatprep.subr.mxu0 %v630
    %2466 = vmatpush1.msra.mxu0 %v629
    %2467 = vmatprep.subr.mxu0 %v634
    %2468 = vmatpush1.msra.mxu0 %v633
    %2469 = vmatprep.mubr.f32.mxu0 %v2010
    %2470 = vmatmul.mubr.f32.gmra.mrb[0].mxu0 %v2333
    %v2471 = vpop.f32.mrb[0].mxu0
    %v2472 = vadd.f32 %v852, %v2471
    %v2473 = vpop.f32.mrb[0].mxu0
    %v2474 = vadd.f32 %v856, %v2473
    %2475 = vdwg.mxu0
    %v2476 = vxor.u32 %v2401, 2147483648
    %v2477 = vmul.f32 %v2476, 1.442695
    %v2478 = vpow.pop %v2477
    %v2479 = vadd.f32 %v2478, 1.0
    %v2480 = vrcp.pop %v2479
    %v2481 = vmul.f32 1.0, %v2480
    %v2482 = vxor.u32 %v2403, 2147483648
    %v2483 = vmul.f32 %v2482, 1.442695
    %v2484 = vpow.pop %v2483
    %v2485 = vadd.f32 %v2484, 1.0
    %v2486 = vrcp.pop %v2485
    %v2487 = vmul.f32 1.0, %v2486
    %v2488 = vtanh.pop %v2472
    %v2489 = vxor.u32 %v2474, 2147483648
    %v2490 = vmul.f32 %v2489, 1.442695
    %v2491 = vpow.pop %v2490
    %v2492 = vadd.f32 %v2491, 1.0
    %v2493 = vrcp.pop %v2492
    %v2494 = vmul.f32 1.0, %v2493
    %v2495 = vmul.f32 %v2487, %v2008
    %v2496 = vmul.f32 %v2481, %v2488
    %v2497 = vadd.f32 %v2495, %v2496
    %v2498 = vtanh.pop %v2497
    %v2499 = vmul.f32 %v2494, %v2498
    %2500 = vmatprep.subr.mxu0 0.0
    %2501 = vmatpush1.msra.mxu0 %v635
    %2502 = vmatprep.subr.mxu0 0.0
    %2503 = vmatpush1.msra.mxu0 %v636
    %2504 = vmatprep.subr.mxu0 0.0
    %2505 = vmatpush1.msra.mxu0 %v637
    %2506 = vmatprep.subr.mxu0 0.0
    %2507 = vmatpush1.msra.mxu0 %v638
    %2508 = vmatprep.subr.mxu0 0.0
    %2509 = vmatpush1.msra.mxu0 %v639
    %2510 = vmatprep.subr.mxu0 0.0
    %2511 = vmatpush1.msra.mxu0 %v640
    %2512 = vmatprep.subr.mxu0 0.0
    %2513 = vmatpush1.msra.mxu0 %v641
    %2514 = vmatprep.subr.mxu0 0.0
    %2515 = vmatpush1.msra.mxu0 %v642
    %2516 = vmatprep.subr.mxu0 0.0
    %2517 = vmatpush1.msra.mxu0 %v643
    %2518 = vmatprep.subr.mxu0 0.0
    %2519 = vmatpush1.msra.mxu0 %v644
    %2520 = vmatprep.subr.mxu0 0.0
    %2521 = vmatpush1.msra.mxu0 %v645
    %2522 = vmatprep.subr.mxu0 0.0
    %2523 = vmatpush1.msra.mxu0 %v646
    %2524 = vmatprep.subr.mxu0 0.0
    %2525 = vmatpush1.msra.mxu0 %v647
    %2526 = vmatprep.subr.mxu0 0.0
    %2527 = vmatpush1.msra.mxu0 %v648
    %2528 = vmatprep.subr.mxu0 0.0
    %2529 = vmatpush1.msra.mxu0 %v649
    %2530 = vmatprep.subr.mxu0 0.0
    %2531 = vmatpush1.msra.mxu0 %v650
    %2532 = vmatprep.subr.mxu0 0.0
    %2533 = vmatpush1.msra.mxu0 0.0
    %2534 = vmatprep.subr.mxu0 0.0
    %2535 = vmatpush1.msra.mxu0 0.0
    %2536 = vmatprep.subr.mxu0 0.0
    %2537 = vmatpush1.msra.mxu0 0.0
    %2538 = vmatprep.subr.mxu0 0.0
    %2539 = vmatpush1.msra.mxu0 0.0
    %2540 = vmatprep.subr.mxu0 0.0
    %2541 = vmatpush1.msra.mxu0 0.0
    %2542 = vmatprep.subr.mxu0 0.0
    %2543 = vmatpush1.msra.mxu0 0.0
    %2544 = vmatprep.subr.mxu0 0.0
    %2545 = vmatpush1.msra.mxu0 0.0
    %2546 = vmatprep.subr.mxu0 0.0
    %2547 = vmatpush1.msra.mxu0 0.0
    %2548 = vmatprep.subr.mxu0 0.0
    %2549 = vmatpush1.msra.mxu0 0.0
    %2550 = vmatprep.subr.mxu0 0.0
    %2551 = vmatpush1.msra.mxu0 0.0
    %2552 = vmatprep.subr.mxu0 0.0
    %2553 = vmatpush1.msra.mxu0 0.0
    %2554 = vmatprep.subr.mxu0 0.0
    %2555 = vmatpush1.msra.mxu0 0.0
    %2556 = vmatprep.subr.mxu0 0.0
    %2557 = vmatpush1.msra.mxu0 0.0
    %2558 = vmatprep.subr.mxu0 0.0
    %2559 = vmatpush1.msra.mxu0 0.0
    %2560 = vmatprep.subr.mxu0 0.0
    %2561 = vmatpush1.msra.mxu0 0.0
    %2562 = vmatprep.subr.mxu0 0.0
    %2563 = vmatpush1.msra.mxu0 0.0
    %2564 = vmatprep.mubr.f32.mxu0 0.0
    %2565 = vmatmul.mubr.f32.gmra.mrb[0].mxu0 %v2499
    %v2566 = vpop.f32.mrb[0].mxu0
    %v2567 = vadd.f32 %v1031, %v2566
    %v2568 = vpop.f32.mrb[0].mxu0
    %2569 = vdwg.mxu0
    %v2571 = vcombine.high %v2567, %v2567
    %v2573 = vunpack.c.l.s4 1966171168
    %v2574 = vunpack.c.0.s8 %v2573
    %v2575 = vlaneseq
    %v2576 = vshrl.u32 %v2575, 7
    %v2577 = vsub.s32 %v2574, %v2576
    %v2578 = vrot.slane %v2567, %v2577
    %v2580 = vunpack.c.l.s4 1966171168
    %v2581 = vunpack.c.0.s8 %v2580
    %v2582 = vlaneseq
    %v2583 = vshrl.u32 %v2582, 7
    %v2584 = vsub.s32 %v2581, %v2583
    %v2585 = vrot.slane %v2571, %v2584
    %v2586 = vcombine.high %v2578, %v2578
    %v2587 = vcombine.high %v2585, %v2585
    %v2589 = vunpack.c.l.s4 1966171168
    %v2590 = vunpack.c.0.s8 %v2589
    %v2591 = vlaneseq
    %v2592 = vshrl.u32 %v2591, 7
    %v2593 = vsub.s32 %v2590, %v2592
    %v2594 = vrot.slane %v2578, %v2593
    %v2596 = vunpack.c.l.s4 1966171168
    %v2597 = vunpack.c.0.s8 %v2596
    %v2598 = vlaneseq
    %v2599 = vshrl.u32 %v2598, 7
    %v2600 = vsub.s32 %v2597, %v2599
    %v2601 = vrot.slane %v2585, %v2600
    %v2603 = vunpack.c.l.s4 1966171168
    %v2604 = vunpack.c.0.s8 %v2603
    %v2605 = vlaneseq
    %v2606 = vshrl.u32 %v2605, 7
    %v2607 = vsub.s32 %v2604, %v2606
    %v2608 = vrot.slane %v2586, %v2607
    %v2610 = vunpack.c.l.s4 1966171168
    %v2611 = vunpack.c.0.s8 %v2610
    %v2612 = vlaneseq
    %v2613 = vshrl.u32 %v2612, 7
    %v2614 = vsub.s32 %v2611, %v2613
    %v2615 = vrot.slane %v2587, %v2614
    %v2616 = vcombine.high %v2594, %v2594
    %v2617 = vcombine.high %v2601, %v2601
    %v2618 = vcombine.high %v2608, %v2608
    %v2619 = vcombine.high %v2615, %v2615
    %2628 = vst [vmem:[%s7 + $0x3] sm:$0x1] %v2594
    %2629 = vst [vmem:[%s7 + $0xb] sm:$0x1] %v2608
    %2630 = vst [vmem:[%s7 + $0x13] sm:$0x1] %v2616
    %2631 = vst [vmem:[%s7 + $0x1b] sm:$0x1] %v2618
    %2632 = vst [vmem:[%s7 + $0x23] sm:$0x1] %v2601
    %2633 = vst [vmem:[%s7 + $0x2b] sm:$0x1] %v2615
    %2634 = vst [vmem:[%s7 + $0x33] sm:$0x1] %v2617
    %2635 = vst [vmem:[%s7 + $0x3b] sm:$0x1] %v2619
    %2636 = vmax.xlane.f32.xlu0 %v2567
    %v2637 = vpop.xlane.xlu0 %2636
    %vm2638 = vcmp.eq.f32.partialorder %v2567, %v2637
    %v2639 = vsel %vm2638, %v652, 128
    %v2640 = vand.u32 %v2639, 65535
    %v2641 = vshra.s32 %v2639, 16
    %v2642 = vcvt.s32.f32 %v2640
    %v2643 = vcvt.s32.f32 %v2641
    %2644 = vmin.xlane.f32.xlu0 %v2643
    %v2645 = vpop.xlane.xlu0 %2644
    %vm2646 = vcmp.eq.f32.partialorder %v2643, %v2645
    %v2647 = vsel %vm2646, %v2642, inf
    %2648 = vmin.xlane.f32.xlu0 %v2647
    %v2649 = vpop.xlane.xlu0 %2648
    %v2650 = vcvt.f32.s32 %v2649
    %v2651 = vcvt.f32.s32 %v2645
    %v2652 = vshll.u32 %v2651, 16
    %v2653 = vadd.s32 %v2652, %v2650
    %vm2654 = vcmp.eq.s32.totalorder %v652, %v2653
    %v2655 = vsel %vm2654, 1, 0
    %v2656 = vcvt.s32.f32 %v2655
    %2657 = vmatprep.subr.mxu0 %v380
    %2658 = vmatpush1.msra.mxu0 %v379
    %2659 = vmatprep.subr.mxu0 %v384
    %2660 = vmatpush1.msra.mxu0 %v383
    %2661 = vmatprep.subr.mxu0 %v388
    %2662 = vmatpush1.msra.mxu0 %v387
    %2663 = vmatprep.subr.mxu0 %v392
    %2664 = vmatpush1.msra.mxu0 %v391
    %2665 = vmatprep.subr.mxu0 %v396
    %2666 = vmatpush1.msra.mxu0 %v395
    %2667 = vmatprep.subr.mxu0 %v400
    %2668 = vmatpush1.msra.mxu0 %v399
    %2669 = vmatprep.subr.mxu0 %v404
    %2670 = vmatpush1.msra.mxu0 %v403
    %2671 = vmatprep.subr.mxu0 %v408
    %2672 = vmatpush1.msra.mxu0 %v407
    %2673 = vmatprep.subr.mxu0 %v412
    %2674 = vmatpush1.msra.mxu0 %v411
    %2675 = vmatprep.subr.mxu0 %v416
    %2676 = vmatpush1.msra.mxu0 %v415
    %2677 = vmatprep.subr.mxu0 %v420
    %2678 = vmatpush1.msra.mxu0 %v419
    %2679 = vmatprep.subr.mxu0 %v424
    %2680 = vmatpush1.msra.mxu0 %v423
    %2681 = vmatprep.subr.mxu0 %v428
    %2682 = vmatpush1.msra.mxu0 %v427
    %2683 = vmatprep.subr.mxu0 %v432
    %2684 = vmatpush1.msra.mxu0 %v431
    %2685 = vmatprep.subr.mxu0 %v436
    %2686 = vmatpush1.msra.mxu0 %v435
    %2687 = vmatprep.subr.mxu0 %v440
    %2688 = vmatpush1.msra.mxu0 %v439
    %2689 = vmatprep.subr.mxu0 %v444
    %2690 = vmatpush1.msra.mxu0 %v443
    %2691 = vmatprep.subr.mxu0 %v448
    %2692 = vmatpush1.msra.mxu0 %v447
    %2693 = vmatprep.subr.mxu0 %v452
    %2694 = vmatpush1.msra.mxu0 %v451
    %2695 = vmatprep.subr.mxu0 %v456
    %2696 = vmatpush1.msra.mxu0 %v455
    %2697 = vmatprep.subr.mxu0 %v460
    %2698 = vmatpush1.msra.mxu0 %v459
    %2699 = vmatprep.subr.mxu0 %v464
    %2700 = vmatpush1.msra.mxu0 %v463
    %2701 = vmatprep.subr.mxu0 %v468
    %2702 = vmatpush1.msra.mxu0 %v467
    %2703 = vmatprep.subr.mxu0 %v472
    %2704 = vmatpush1.msra.mxu0 %v471
    %2705 = vmatprep.subr.mxu0 %v476
    %2706 = vmatpush1.msra.mxu0 %v475
    %2707 = vmatprep.subr.mxu0 %v480
    %2708 = vmatpush1.msra.mxu0 %v479
    %2709 = vmatprep.subr.mxu0 %v484
    %2710 = vmatpush1.msra.mxu0 %v483
    %2711 = vmatprep.subr.mxu0 %v488
    %2712 = vmatpush1.msra.mxu0 %v487
    %2713 = vmatprep.subr.mxu0 %v492
    %2714 = vmatpush1.msra.mxu0 %v491
    %2715 = vmatprep.subr.mxu0 %v496
    %2716 = vmatpush1.msra.mxu0 %v495
    %2717 = vmatprep.subr.mxu0 %v500
    %2718 = vmatpush1.msra.mxu0 %v499
    %2719 = vmatprep.subr.mxu0 %v504
    %2720 = vmatpush1.msra.mxu0 %v503
    %2721 = vmatprep.mubr.f32.mxu0 %v2333
    %2722 = vmatmul.mubr.f32.gmra.mrb[0].mxu0 %v2656
    %v2723 = vpop.f32.mrb[0].mxu0
    %v2724 = vadd.f32 %v657, %v2723
    %v2725 = vpop.f32.mrb[0].mxu0
    %v2726 = vadd.f32 %v661, %v2725
    %2727 = vdwg.mxu0
    %2728 = vmatprep.subr.mxu0 %v382
    %2729 = vmatpush1.msra.mxu0 %v381
    %2730 = vmatprep.subr.mxu0 %v386
    %2731 = vmatpush1.msra.mxu0 %v385
    %2732 = vmatprep.subr.mxu0 %v390
    %2733 = vmatpush1.msra.mxu0 %v389
    %2734 = vmatprep.subr.mxu0 %v394
    %2735 = vmatpush1.msra.mxu0 %v393
    %2736 = vmatprep.subr.mxu0 %v398
    %2737 = vmatpush1.msra.mxu0 %v397
    %2738 = vmatprep.subr.mxu0 %v402
    %2739 = vmatpush1.msra.mxu0 %v401
    %2740 = vmatprep.subr.mxu0 %v406
    %2741 = vmatpush1.msra.mxu0 %v405
    %2742 = vmatprep.subr.mxu0 %v410
    %2743 = vmatpush1.msra.mxu0 %v409
    %2744 = vmatprep.subr.mxu0 %v414
    %2745 = vmatpush1.msra.mxu0 %v413
    %2746 = vmatprep.subr.mxu0 %v418
    %2747 = vmatpush1.msra.mxu0 %v417
    %2748 = vmatprep.subr.mxu0 %v422
    %2749 = vmatpush1.msra.mxu0 %v421
    %2750 = vmatprep.subr.mxu0 %v426
    %2751 = vmatpush1.msra.mxu0 %v425
    %2752 = vmatprep.subr.mxu0 %v430
    %2753 = vmatpush1.msra.mxu0 %v429
    %2754 = vmatprep.subr.mxu0 %v434
    %2755 = vmatpush1.msra.mxu0 %v433
    %2756 = vmatprep.subr.mxu0 %v438
    %2757 = vmatpush1.msra.mxu0 %v437
    %2758 = vmatprep.subr.mxu0 %v442
    %2759 = vmatpush1.msra.mxu0 %v441
    %2760 = vmatprep.subr.mxu0 %v446
    %2761 = vmatpush1.msra.mxu0 %v445
    %2762 = vmatprep.subr.mxu0 %v450
    %2763 = vmatpush1.msra.mxu0 %v449
    %2764 = vmatprep.subr.mxu0 %v454
    %2765 = vmatpush1.msra.mxu0 %v453
    %2766 = vmatprep.subr.mxu0 %v458
    %2767 = vmatpush1.msra.mxu0 %v457
    %2768 = vmatprep.subr.mxu0 %v462
    %2769 = vmatpush1.msra.mxu0 %v461
    %2770 = vmatprep.subr.mxu0 %v466
    %2771 = vmatpush1.msra.mxu0 %v465
    %2772 = vmatprep.subr.mxu0 %v470
    %2773 = vmatpush1.msra.mxu0 %v469
    %2774 = vmatprep.subr.mxu0 %v474
    %2775 = vmatpush1.msra.mxu0 %v473
    %2776 = vmatprep.subr.mxu0 %v478
    %2777 = vmatpush1.msra.mxu0 %v477
    %2778 = vmatprep.subr.mxu0 %v482
    %2779 = vmatpush1.msra.mxu0 %v481
    %2780 = vmatprep.subr.mxu0 %v486
    %2781 = vmatpush1.msra.mxu0 %v485
    %2782 = vmatprep.subr.mxu0 %v490
    %2783 = vmatpush1.msra.mxu0 %v489
    %2784 = vmatprep.subr.mxu0 %v494
    %2785 = vmatpush1.msra.mxu0 %v493
    %2786 = vmatprep.subr.mxu0 %v498
    %2787 = vmatpush1.msra.mxu0 %v497
    %2788 = vmatprep.subr.mxu0 %v502
    %2789 = vmatpush1.msra.mxu0 %v501
    %2790 = vmatprep.subr.mxu0 %v506
    %2791 = vmatpush1.msra.mxu0 %v505
    %2792 = vmatprep.mubr.f32.mxu0 %v2333
    %2793 = vmatmul.mubr.f32.gmra.mrb[0].mxu0 %v2656
    %v2794 = vpop.f32.mrb[0].mxu0
    %v2795 = vadd.f32 %v665, %v2794
    %v2796 = vpop.f32.mrb[0].mxu0
    %v2797 = vadd.f32 %v669, %v2796
    %2798 = vdwg.mxu0
    %v2799 = vxor.u32 %v2724, 2147483648
    %v2800 = vmul.f32 %v2799, 1.442695
    %v2801 = vpow.pop %v2800
    %v2802 = vadd.f32 %v2801, 1.0
    %v2803 = vrcp.pop %v2802
    %v2804 = vmul.f32 1.0, %v2803
    %v2805 = vxor.u32 %v2726, 2147483648
    %v2806 = vmul.f32 %v2805, 1.442695
    %v2807 = vpow.pop %v2806
    %v2808 = vadd.f32 %v2807, 1.0
    %v2809 = vrcp.pop %v2808
    %v2810 = vmul.f32 1.0, %v2809
    %v2811 = vtanh.pop %v2795
    %v2812 = vxor.u32 %v2797, 2147483648
    %v2813 = vmul.f32 %v2812, 1.442695
    %v2814 = vpow.pop %v2813
    %v2815 = vadd.f32 %v2814, 1.0
    %v2816 = vrcp.pop %v2815
    %v2817 = vmul.f32 1.0, %v2816
    %v2818 = vmul.f32 %v2810, %v2331
    %v2819 = vmul.f32 %v2804, %v2811
    %v2820 = vadd.f32 %v2818, %v2819
    %v2821 = vtanh.pop %v2820
    %v2822 = vmul.f32 %v2817, %v2821
    %2823 = vmatprep.subr.mxu0 %v508
    %2824 = vmatpush1.msra.mxu0 %v507
    %2825 = vmatprep.subr.mxu0 %v512
    %2826 = vmatpush1.msra.mxu0 %v511
    %2827 = vmatprep.subr.mxu0 %v516
    %2828 = vmatpush1.msra.mxu0 %v515
    %2829 = vmatprep.subr.mxu0 %v520
    %2830 = vmatpush1.msra.mxu0 %v519
    %2831 = vmatprep.subr.mxu0 %v524
    %2832 = vmatpush1.msra.mxu0 %v523
    %2833 = vmatprep.subr.mxu0 %v528
    %2834 = vmatpush1.msra.mxu0 %v527
    %2835 = vmatprep.subr.mxu0 %v532
    %2836 = vmatpush1.msra.mxu0 %v531
    %2837 = vmatprep.subr.mxu0 %v536
    %2838 = vmatpush1.msra.mxu0 %v535
    %2839 = vmatprep.subr.mxu0 %v540
    %2840 = vmatpush1.msra.mxu0 %v539
    %2841 = vmatprep.subr.mxu0 %v544
    %2842 = vmatpush1.msra.mxu0 %v543
    %2843 = vmatprep.subr.mxu0 %v548
    %2844 = vmatpush1.msra.mxu0 %v547
    %2845 = vmatprep.subr.mxu0 %v552
    %2846 = vmatpush1.msra.mxu0 %v551
    %2847 = vmatprep.subr.mxu0 %v556
    %2848 = vmatpush1.msra.mxu0 %v555
    %2849 = vmatprep.subr.mxu0 %v560
    %2850 = vmatpush1.msra.mxu0 %v559
    %2851 = vmatprep.subr.mxu0 %v564
    %2852 = vmatpush1.msra.mxu0 %v563
    %2853 = vmatprep.subr.mxu0 %v568
    %2854 = vmatpush1.msra.mxu0 %v567
    %2855 = vmatprep.subr.mxu0 %v572
    %2856 = vmatpush1.msra.mxu0 %v571
    %2857 = vmatprep.subr.mxu0 %v576
    %2858 = vmatpush1.msra.mxu0 %v575
    %2859 = vmatprep.subr.mxu0 %v580
    %2860 = vmatpush1.msra.mxu0 %v579
    %2861 = vmatprep.subr.mxu0 %v584
    %2862 = vmatpush1.msra.mxu0 %v583
    %2863 = vmatprep.subr.mxu0 %v588
    %2864 = vmatpush1.msra.mxu0 %v587
    %2865 = vmatprep.subr.mxu0 %v592
    %2866 = vmatpush1.msra.mxu0 %v591
    %2867 = vmatprep.subr.mxu0 %v596
    %2868 = vmatpush1.msra.mxu0 %v595
    %2869 = vmatprep.subr.mxu0 %v600
    %2870 = vmatpush1.msra.mxu0 %v599
    %2871 = vmatprep.subr.mxu0 %v604
    %2872 = vmatpush1.msra.mxu0 %v603
    %2873 = vmatprep.subr.mxu0 %v608
    %2874 = vmatpush1.msra.mxu0 %v607
    %2875 = vmatprep.subr.mxu0 %v612
    %2876 = vmatpush1.msra.mxu0 %v611
    %2877 = vmatprep.subr.mxu0 %v616
    %2878 = vmatpush1.msra.mxu0 %v615
    %2879 = vmatprep.subr.mxu0 %v620
    %2880 = vmatpush1.msra.mxu0 %v619
    %2881 = vmatprep.subr.mxu0 %v624
    %2882 = vmatpush1.msra.mxu0 %v623
    %2883 = vmatprep.subr.mxu0 %v628
    %2884 = vmatpush1.msra.mxu0 %v627
    %2885 = vmatprep.subr.mxu0 %v632
    %2886 = vmatpush1.msra.mxu0 %v631
    %2887 = vmatprep.mubr.f32.mxu0 %v2499
    %2888 = vmatmul.mubr.f32.gmra.mrb[0].mxu0 %v2822
    %v2889 = vpop.f32.mrb[0].mxu0
    %v2890 = vadd.f32 %v844, %v2889
    %v2891 = vpop.f32.mrb[0].mxu0
    %v2892 = vadd.f32 %v848, %v2891
    %2893 = vdwg.mxu0
    %2894 = vmatprep.subr.mxu0 %v510
    %2895 = vmatpush1.msra.mxu0 %v509
    %2896 = vmatprep.subr.mxu0 %v514
    %2897 = vmatpush1.msra.mxu0 %v513
    %2898 = vmatprep.subr.mxu0 %v518
    %2899 = vmatpush1.msra.mxu0 %v517
    %2900 = vmatprep.subr.mxu0 %v522
    %2901 = vmatpush1.msra.mxu0 %v521
    %2902 = vmatprep.subr.mxu0 %v526
    %2903 = vmatpush1.msra.mxu0 %v525
    %2904 = vmatprep.subr.mxu0 %v530
    %2905 = vmatpush1.msra.mxu0 %v529
    %2906 = vmatprep.subr.mxu0 %v534
    %2907 = vmatpush1.msra.mxu0 %v533
    %2908 = vmatprep.subr.mxu0 %v538
    %2909 = vmatpush1.msra.mxu0 %v537
    %2910 = vmatprep.subr.mxu0 %v542
    %2911 = vmatpush1.msra.mxu0 %v541
    %2912 = vmatprep.subr.mxu0 %v546
    %2913 = vmatpush1.msra.mxu0 %v545
    %2914 = vmatprep.subr.mxu0 %v550
    %2915 = vmatpush1.msra.mxu0 %v549
    %2916 = vmatprep.subr.mxu0 %v554
    %2917 = vmatpush1.msra.mxu0 %v553
    %2918 = vmatprep.subr.mxu0 %v558
    %2919 = vmatpush1.msra.mxu0 %v557
    %2920 = vmatprep.subr.mxu0 %v562
    %2921 = vmatpush1.msra.mxu0 %v561
    %2922 = vmatprep.subr.mxu0 %v566
    %2923 = vmatpush1.msra.mxu0 %v565
    %2924 = vmatprep.subr.mxu0 %v570
    %2925 = vmatpush1.msra.mxu0 %v569
    %2926 = vmatprep.subr.mxu0 %v574
    %2927 = vmatpush1.msra.mxu0 %v573
    %2928 = vmatprep.subr.mxu0 %v578
    %2929 = vmatpush1.msra.mxu0 %v577
    %2930 = vmatprep.subr.mxu0 %v582
    %2931 = vmatpush1.msra.mxu0 %v581
    %2932 = vmatprep.subr.mxu0 %v586
    %2933 = vmatpush1.msra.mxu0 %v585
    %2934 = vmatprep.subr.mxu0 %v590
    %2935 = vmatpush1.msra.mxu0 %v589
    %2936 = vmatprep.subr.mxu0 %v594
    %2937 = vmatpush1.msra.mxu0 %v593
    %2938 = vmatprep.subr.mxu0 %v598
    %2939 = vmatpush1.msra.mxu0 %v597
    %2940 = vmatprep.subr.mxu0 %v602
    %2941 = vmatpush1.msra.mxu0 %v601
    %2942 = vmatprep.subr.mxu0 %v606
    %2943 = vmatpush1.msra.mxu0 %v605
    %2944 = vmatprep.subr.mxu0 %v610
    %2945 = vmatpush1.msra.mxu0 %v609
    %2946 = vmatprep.subr.mxu0 %v614
    %2947 = vmatpush1.msra.mxu0 %v613
    %2948 = vmatprep.subr.mxu0 %v618
    %2949 = vmatpush1.msra.mxu0 %v617
    %2950 = vmatprep.subr.mxu0 %v622
    %2951 = vmatpush1.msra.mxu0 %v621
    %2952 = vmatprep.subr.mxu0 %v626
    %2953 = vmatpush1.msra.mxu0 %v625
    %2954 = vmatprep.subr.mxu0 %v630
    %2955 = vmatpush1.msra.mxu0 %v629
    %2956 = vmatprep.subr.mxu0 %v634
    %2957 = vmatpush1.msra.mxu0 %v633
    %2958 = vmatprep.mubr.f32.mxu0 %v2499
    %2959 = vmatmul.mubr.f32.gmra.mrb[0].mxu0 %v2822
    %v2960 = vpop.f32.mrb[0].mxu0
    %v2961 = vadd.f32 %v852, %v2960
    %v2962 = vpop.f32.mrb[0].mxu0
    %v2963 = vadd.f32 %v856, %v2962
    %2964 = vdwg.mxu0
    %v2965 = vxor.u32 %v2890, 2147483648
    %v2966 = vmul.f32 %v2965, 1.442695
    %v2967 = vpow.pop %v2966
    %v2968 = vadd.f32 %v2967, 1.0
    %v2969 = vrcp.pop %v2968
    %v2970 = vmul.f32 1.0, %v2969
    %v2971 = vxor.u32 %v2892, 2147483648
    %v2972 = vmul.f32 %v2971, 1.442695
    %v2973 = vpow.pop %v2972
    %v2974 = vadd.f32 %v2973, 1.0
    %v2975 = vrcp.pop %v2974
    %v2976 = vmul.f32 1.0, %v2975
    %v2977 = vtanh.pop %v2961
    %v2978 = vxor.u32 %v2963, 2147483648
    %v2979 = vmul.f32 %v2978, 1.442695
    %v2980 = vpow.pop %v2979
    %v2981 = vadd.f32 %v2980, 1.0
    %v2982 = vrcp.pop %v2981
    %v2983 = vmul.f32 1.0, %v2982
    %v2984 = vmul.f32 %v2976, %v2497
    %v2985 = vmul.f32 %v2970, %v2977
    %v2986 = vadd.f32 %v2984, %v2985
    %v2987 = vtanh.pop %v2986
    %v2988 = vmul.f32 %v2983, %v2987
    %2989 = vmatprep.subr.mxu0 0.0
    %2990 = vmatpush1.msra.mxu0 %v635
    %2991 = vmatprep.subr.mxu0 0.0
    %2992 = vmatpush1.msra.mxu0 %v636
    %2993 = vmatprep.subr.mxu0 0.0
    %2994 = vmatpush1.msra.mxu0 %v637
    %2995 = vmatprep.subr.mxu0 0.0
    %2996 = vmatpush1.msra.mxu0 %v638
    %2997 = vmatprep.subr.mxu0 0.0
    %2998 = vmatpush1.msra.mxu0 %v639
    %2999 = vmatprep.subr.mxu0 0.0
    %3000 = vmatpush1.msra.mxu0 %v640
    %3001 = vmatprep.subr.mxu0 0.0
    %3002 = vmatpush1.msra.mxu0 %v641
    %3003 = vmatprep.subr.mxu0 0.0
    %3004 = vmatpush1.msra.mxu0 %v642
    %3005 = vmatprep.subr.mxu0 0.0
    %3006 = vmatpush1.msra.mxu0 %v643
    %3007 = vmatprep.subr.mxu0 0.0
    %3008 = vmatpush1.msra.mxu0 %v644
    %3009 = vmatprep.subr.mxu0 0.0
    %3010 = vmatpush1.msra.mxu0 %v645
    %3011 = vmatprep.subr.mxu0 0.0
    %3012 = vmatpush1.msra.mxu0 %v646
    %3013 = vmatprep.subr.mxu0 0.0
    %3014 = vmatpush1.msra.mxu0 %v647
    %3015 = vmatprep.subr.mxu0 0.0
    %3016 = vmatpush1.msra.mxu0 %v648
    %3017 = vmatprep.subr.mxu0 0.0
    %3018 = vmatpush1.msra.mxu0 %v649
    %3019 = vmatprep.subr.mxu0 0.0
    %3020 = vmatpush1.msra.mxu0 %v650
    %3021 = vmatprep.subr.mxu0 0.0
    %3022 = vmatpush1.msra.mxu0 0.0
    %3023 = vmatprep.subr.mxu0 0.0
    %3024 = vmatpush1.msra.mxu0 0.0
    %3025 = vmatprep.subr.mxu0 0.0
    %3026 = vmatpush1.msra.mxu0 0.0
    %3027 = vmatprep.subr.mxu0 0.0
    %3028 = vmatpush1.msra.mxu0 0.0
    %3029 = vmatprep.subr.mxu0 0.0
    %3030 = vmatpush1.msra.mxu0 0.0
    %3031 = vmatprep.subr.mxu0 0.0
    %3032 = vmatpush1.msra.mxu0 0.0
    %3033 = vmatprep.subr.mxu0 0.0
    %3034 = vmatpush1.msra.mxu0 0.0
    %3035 = vmatprep.subr.mxu0 0.0
    %3036 = vmatpush1.msra.mxu0 0.0
    %3037 = vmatprep.subr.mxu0 0.0
    %3038 = vmatpush1.msra.mxu0 0.0
    %3039 = vmatprep.subr.mxu0 0.0
    %3040 = vmatpush1.msra.mxu0 0.0
    %3041 = vmatprep.subr.mxu0 0.0
    %3042 = vmatpush1.msra.mxu0 0.0
    %3043 = vmatprep.subr.mxu0 0.0
    %3044 = vmatpush1.msra.mxu0 0.0
    %3045 = vmatprep.subr.mxu0 0.0
    %3046 = vmatpush1.msra.mxu0 0.0
    %3047 = vmatprep.subr.mxu0 0.0
    %3048 = vmatpush1.msra.mxu0 0.0
    %3049 = vmatprep.subr.mxu0 0.0
    %3050 = vmatpush1.msra.mxu0 0.0
    %3051 = vmatprep.subr.mxu0 0.0
    %3052 = vmatpush1.msra.mxu0 0.0
    %3053 = vmatprep.mubr.f32.mxu0 0.0
    %3054 = vmatmul.mubr.f32.gmra.mrb[0].mxu0 %v2988
    %v3055 = vpop.f32.mrb[0].mxu0
    %v3056 = vadd.f32 %v1031, %v3055
    %v3057 = vpop.f32.mrb[0].mxu0
    %3058 = vdwg.mxu0
    %v3060 = vcombine.high %v3056, %v3056
    %v3062 = vunpack.c.l.s4 1966171168
    %v3063 = vunpack.c.0.s8 %v3062
    %v3064 = vlaneseq
    %v3065 = vshrl.u32 %v3064, 7
    %v3066 = vsub.s32 %v3063, %v3065
    %v3067 = vrot.slane %v3056, %v3066
    %v3069 = vunpack.c.l.s4 1966171168
    %v3070 = vunpack.c.0.s8 %v3069
    %v3071 = vlaneseq
    %v3072 = vshrl.u32 %v3071, 7
    %v3073 = vsub.s32 %v3070, %v3072
    %v3074 = vrot.slane %v3060, %v3073
    %v3075 = vcombine.high %v3067, %v3067
    %v3076 = vcombine.high %v3074, %v3074
    %v3078 = vunpack.c.l.s4 1966171168
    %v3079 = vunpack.c.0.s8 %v3078
    %v3080 = vlaneseq
    %v3081 = vshrl.u32 %v3080, 7
    %v3082 = vsub.s32 %v3079, %v3081
    %v3083 = vrot.slane %v3067, %v3082
    %v3085 = vunpack.c.l.s4 1966171168
    %v3086 = vunpack.c.0.s8 %v3085
    %v3087 = vlaneseq
    %v3088 = vshrl.u32 %v3087, 7
    %v3089 = vsub.s32 %v3086, %v3088
    %v3090 = vrot.slane %v3074, %v3089
    %v3092 = vunpack.c.l.s4 1966171168
    %v3093 = vunpack.c.0.s8 %v3092
    %v3094 = vlaneseq
    %v3095 = vshrl.u32 %v3094, 7
    %v3096 = vsub.s32 %v3093, %v3095
    %v3097 = vrot.slane %v3075, %v3096
    %v3099 = vunpack.c.l.s4 1966171168
    %v3100 = vunpack.c.0.s8 %v3099
    %v3101 = vlaneseq
    %v3102 = vshrl.u32 %v3101, 7
    %v3103 = vsub.s32 %v3100, %v3102
    %v3104 = vrot.slane %v3076, %v3103
    %v3105 = vcombine.high %v3083, %v3083
    %v3106 = vcombine.high %v3090, %v3090
    %v3107 = vcombine.high %v3097, %v3097
    %v3108 = vcombine.high %v3104, %v3104
    %3117 = vst [vmem:[%s7 + $0x4] sm:$0x1] %v3083
    %3118 = vst [vmem:[%s7 + $0xc] sm:$0x1] %v3097
    %3119 = vst [vmem:[%s7 + $0x14] sm:$0x1] %v3105
    %3120 = vst [vmem:[%s7 + $0x1c] sm:$0x1] %v3107
    %3121 = vst [vmem:[%s7 + $0x24] sm:$0x1] %v3090
    %3122 = vst [vmem:[%s7 + $0x2c] sm:$0x1] %v3104
    %3123 = vst [vmem:[%s7 + $0x34] sm:$0x1] %v3106
    %3124 = vst [vmem:[%s7 + $0x3c] sm:$0x1] %v3108
    %3125 = vmax.xlane.f32.xlu0 %v3056
    %v3126 = vpop.xlane.xlu0 %3125
    %vm3127 = vcmp.eq.f32.partialorder %v3056, %v3126
    %v3128 = vsel %vm3127, %v652, 128
    %v3129 = vand.u32 %v3128, 65535
    %v3130 = vshra.s32 %v3128, 16
    %v3131 = vcvt.s32.f32 %v3129
    %v3132 = vcvt.s32.f32 %v3130
    %3133 = vmin.xlane.f32.xlu0 %v3132
    %v3134 = vpop.xlane.xlu0 %3133
    %vm3135 = vcmp.eq.f32.partialorder %v3132, %v3134
    %v3136 = vsel %vm3135, %v3131, inf
    %3137 = vmin.xlane.f32.xlu0 %v3136
    %v3138 = vpop.xlane.xlu0 %3137
    %v3139 = vcvt.f32.s32 %v3138
    %v3140 = vcvt.f32.s32 %v3134
    %v3141 = vshll.u32 %v3140, 16
    %v3142 = vadd.s32 %v3141, %v3139
    %vm3143 = vcmp.eq.s32.totalorder %v652, %v3142
    %v3144 = vsel %vm3143, 1, 0
    %v3145 = vcvt.s32.f32 %v3144
    %3146 = vmatprep.subr.mxu0 %v380
    %3147 = vmatpush1.msra.mxu0 %v379
    %3148 = vmatprep.subr.mxu0 %v384
    %3149 = vmatpush1.msra.mxu0 %v383
    %3150 = vmatprep.subr.mxu0 %v388
    %3151 = vmatpush1.msra.mxu0 %v387
    %3152 = vmatprep.subr.mxu0 %v392
    %3153 = vmatpush1.msra.mxu0 %v391
    %3154 = vmatprep.subr.mxu0 %v396
    %3155 = vmatpush1.msra.mxu0 %v395
    %3156 = vmatprep.subr.mxu0 %v400
    %3157 = vmatpush1.msra.mxu0 %v399
    %3158 = vmatprep.subr.mxu0 %v404
    %3159 = vmatpush1.msra.mxu0 %v403
    %3160 = vmatprep.subr.mxu0 %v408
    %3161 = vmatpush1.msra.mxu0 %v407
    %3162 = vmatprep.subr.mxu0 %v412
    %3163 = vmatpush1.msra.mxu0 %v411
    %3164 = vmatprep.subr.mxu0 %v416
    %3165 = vmatpush1.msra.mxu0 %v415
    %3166 = vmatprep.subr.mxu0 %v420
    %3167 = vmatpush1.msra.mxu0 %v419
    %3168 = vmatprep.subr.mxu0 %v424
    %3169 = vmatpush1.msra.mxu0 %v423
    %3170 = vmatprep.subr.mxu0 %v428
    %3171 = vmatpush1.msra.mxu0 %v427
    %3172 = vmatprep.subr.mxu0 %v432
    %3173 = vmatpush1.msra.mxu0 %v431
    %3174 = vmatprep.subr.mxu0 %v436
    %3175 = vmatpush1.msra.mxu0 %v435
    %3176 = vmatprep.subr.mxu0 %v440
    %3177 = vmatpush1.msra.mxu0 %v439
    %3178 = vmatprep.subr.mxu0 %v444
    %3179 = vmatpush1.msra.mxu0 %v443
    %3180 = vmatprep.subr.mxu0 %v448
    %3181 = vmatpush1.msra.mxu0 %v447
    %3182 = vmatprep.subr.mxu0 %v452
    %3183 = vmatpush1.msra.mxu0 %v451
    %3184 = vmatprep.subr.mxu0 %v456
    %3185 = vmatpush1.msra.mxu0 %v455
    %3186 = vmatprep.subr.mxu0 %v460
    %3187 = vmatpush1.msra.mxu0 %v459
    %3188 = vmatprep.subr.mxu0 %v464
    %3189 = vmatpush1.msra.mxu0 %v463
    %3190 = vmatprep.subr.mxu0 %v468
    %3191 = vmatpush1.msra.mxu0 %v467
    %3192 = vmatprep.subr.mxu0 %v472
    %3193 = vmatpush1.msra.mxu0 %v471
    %3194 = vmatprep.subr.mxu0 %v476
    %3195 = vmatpush1.msra.mxu0 %v475
    %3196 = vmatprep.subr.mxu0 %v480
    %3197 = vmatpush1.msra.mxu0 %v479
    %3198 = vmatprep.subr.mxu0 %v484
    %3199 = vmatpush1.msra.mxu0 %v483
    %3200 = vmatprep.subr.mxu0 %v488
    %3201 = vmatpush1.msra.mxu0 %v487
    %3202 = vmatprep.subr.mxu0 %v492
    %3203 = vmatpush1.msra.mxu0 %v491
    %3204 = vmatprep.subr.mxu0 %v496
    %3205 = vmatpush1.msra.mxu0 %v495
    %3206 = vmatprep.subr.mxu0 %v500
    %3207 = vmatpush1.msra.mxu0 %v499
    %3208 = vmatprep.subr.mxu0 %v504
    %3209 = vmatpush1.msra.mxu0 %v503
    %3210 = vmatprep.mubr.f32.mxu0 %v2822
    %3211 = vmatmul.mubr.f32.gmra.mrb[0].mxu0 %v3145
    %v3212 = vpop.f32.mrb[0].mxu0
    %v3213 = vadd.f32 %v657, %v3212
    %v3214 = vpop.f32.mrb[0].mxu0
    %v3215 = vadd.f32 %v661, %v3214
    %3216 = vdwg.mxu0
    %3217 = vmatprep.subr.mxu0 %v382
    %3218 = vmatpush1.msra.mxu0 %v381
    %3219 = vmatprep.subr.mxu0 %v386
    %3220 = vmatpush1.msra.mxu0 %v385
    %3221 = vmatprep.subr.mxu0 %v390
    %3222 = vmatpush1.msra.mxu0 %v389
    %3223 = vmatprep.subr.mxu0 %v394
    %3224 = vmatpush1.msra.mxu0 %v393
    %3225 = vmatprep.subr.mxu0 %v398
    %3226 = vmatpush1.msra.mxu0 %v397
    %3227 = vmatprep.subr.mxu0 %v402
    %3228 = vmatpush1.msra.mxu0 %v401
    %3229 = vmatprep.subr.mxu0 %v406
    %3230 = vmatpush1.msra.mxu0 %v405
    %3231 = vmatprep.subr.mxu0 %v410
    %3232 = vmatpush1.msra.mxu0 %v409
    %3233 = vmatprep.subr.mxu0 %v414
    %3234 = vmatpush1.msra.mxu0 %v413
    %3235 = vmatprep.subr.mxu0 %v418
    %3236 = vmatpush1.msra.mxu0 %v417
    %3237 = vmatprep.subr.mxu0 %v422
    %3238 = vmatpush1.msra.mxu0 %v421
    %3239 = vmatprep.subr.mxu0 %v426
    %3240 = vmatpush1.msra.mxu0 %v425
    %3241 = vmatprep.subr.mxu0 %v430
    %3242 = vmatpush1.msra.mxu0 %v429
    %3243 = vmatprep.subr.mxu0 %v434
    %3244 = vmatpush1.msra.mxu0 %v433
    %3245 = vmatprep.subr.mxu0 %v438
    %3246 = vmatpush1.msra.mxu0 %v437
    %3247 = vmatprep.subr.mxu0 %v442
    %3248 = vmatpush1.msra.mxu0 %v441
    %3249 = vmatprep.subr.mxu0 %v446
    %3250 = vmatpush1.msra.mxu0 %v445
    %3251 = vmatprep.subr.mxu0 %v450
    %3252 = vmatpush1.msra.mxu0 %v449
    %3253 = vmatprep.subr.mxu0 %v454
    %3254 = vmatpush1.msra.mxu0 %v453
    %3255 = vmatprep.subr.mxu0 %v458
    %3256 = vmatpush1.msra.mxu0 %v457
    %3257 = vmatprep.subr.mxu0 %v462
    %3258 = vmatpush1.msra.mxu0 %v461
    %3259 = vmatprep.subr.mxu0 %v466
    %3260 = vmatpush1.msra.mxu0 %v465
    %3261 = vmatprep.subr.mxu0 %v470
    %3262 = vmatpush1.msra.mxu0 %v469
    %3263 = vmatprep.subr.mxu0 %v474
    %3264 = vmatpush1.msra.mxu0 %v473
    %3265 = vmatprep.subr.mxu0 %v478
    %3266 = vmatpush1.msra.mxu0 %v477
    %3267 = vmatprep.subr.mxu0 %v482
    %3268 = vmatpush1.msra.mxu0 %v481
    %3269 = vmatprep.subr.mxu0 %v486
    %3270 = vmatpush1.msra.mxu0 %v485
    %3271 = vmatprep.subr.mxu0 %v490
    %3272 = vmatpush1.msra.mxu0 %v489
    %3273 = vmatprep.subr.mxu0 %v494
    %3274 = vmatpush1.msra.mxu0 %v493
    %3275 = vmatprep.subr.mxu0 %v498
    %3276 = vmatpush1.msra.mxu0 %v497
    %3277 = vmatprep.subr.mxu0 %v502
    %3278 = vmatpush1.msra.mxu0 %v501
    %3279 = vmatprep.subr.mxu0 %v506
    %3280 = vmatpush1.msra.mxu0 %v505
    %3281 = vmatprep.mubr.f32.mxu0 %v2822
    %3282 = vmatmul.mubr.f32.gmra.mrb[0].mxu0 %v3145
    %v3283 = vpop.f32.mrb[0].mxu0
    %v3284 = vadd.f32 %v665, %v3283
    %v3285 = vpop.f32.mrb[0].mxu0
    %v3286 = vadd.f32 %v669, %v3285
    %3287 = vdwg.mxu0
    %v3288 = vxor.u32 %v3213, 2147483648
    %v3289 = vmul.f32 %v3288, 1.442695
    %v3290 = vpow.pop %v3289
    %v3291 = vadd.f32 %v3290, 1.0
    %v3292 = vrcp.pop %v3291
    %v3293 = vmul.f32 1.0, %v3292
    %v3294 = vxor.u32 %v3215, 2147483648
    %v3295 = vmul.f32 %v3294, 1.442695
    %v3296 = vpow.pop %v3295
    %v3297 = vadd.f32 %v3296, 1.0
    %v3298 = vrcp.pop %v3297
    %v3299 = vmul.f32 1.0, %v3298
    %v3300 = vtanh.pop %v3284
    %v3301 = vxor.u32 %v3286, 2147483648
    %v3302 = vmul.f32 %v3301, 1.442695
    %v3303 = vpow.pop %v3302
    %v3304 = vadd.f32 %v3303, 1.0
    %v3305 = vrcp.pop %v3304
    %v3306 = vmul.f32 1.0, %v3305
    %v3307 = vmul.f32 %v3299, %v2820
    %v3308 = vmul.f32 %v3293, %v3300
    %v3309 = vadd.f32 %v3307, %v3308
    %v3310 = vtanh.pop %v3309
    %v3311 = vmul.f32 %v3306, %v3310
    %3312 = vmatprep.subr.mxu0 %v508
    %3313 = vmatpush1.msra.mxu0 %v507
    %3314 = vmatprep.subr.mxu0 %v512
    %3315 = vmatpush1.msra.mxu0 %v511
    %3316 = vmatprep.subr.mxu0 %v516
    %3317 = vmatpush1.msra.mxu0 %v515
    %3318 = vmatprep.subr.mxu0 %v520
    %3319 = vmatpush1.msra.mxu0 %v519
    %3320 = vmatprep.subr.mxu0 %v524
    %3321 = vmatpush1.msra.mxu0 %v523
    %3322 = vmatprep.subr.mxu0 %v528
    %3323 = vmatpush1.msra.mxu0 %v527
    %3324 = vmatprep.subr.mxu0 %v532
    %3325 = vmatpush1.msra.mxu0 %v531
    %3326 = vmatprep.subr.mxu0 %v536
    %3327 = vmatpush1.msra.mxu0 %v535
    %3328 = vmatprep.subr.mxu0 %v540
    %3329 = vmatpush1.msra.mxu0 %v539
    %3330 = vmatprep.subr.mxu0 %v544
    %3331 = vmatpush1.msra.mxu0 %v543
    %3332 = vmatprep.subr.mxu0 %v548
    %3333 = vmatpush1.msra.mxu0 %v547
    %3334 = vmatprep.subr.mxu0 %v552
    %3335 = vmatpush1.msra.mxu0 %v551
    %3336 = vmatprep.subr.mxu0 %v556
    %3337 = vmatpush1.msra.mxu0 %v555
    %3338 = vmatprep.subr.mxu0 %v560
    %3339 = vmatpush1.msra.mxu0 %v559
    %3340 = vmatprep.subr.mxu0 %v564
    %3341 = vmatpush1.msra.mxu0 %v563
    %3342 = vmatprep.subr.mxu0 %v568
    %3343 = vmatpush1.msra.mxu0 %v567
    %3344 = vmatprep.subr.mxu0 %v572
    %3345 = vmatpush1.msra.mxu0 %v571
    %3346 = vmatprep.subr.mxu0 %v576
    %3347 = vmatpush1.msra.mxu0 %v575
    %3348 = vmatprep.subr.mxu0 %v580
    %3349 = vmatpush1.msra.mxu0 %v579
    %3350 = vmatprep.subr.mxu0 %v584
    %3351 = vmatpush1.msra.mxu0 %v583
    %3352 = vmatprep.subr.mxu0 %v588
    %3353 = vmatpush1.msra.mxu0 %v587
    %3354 = vmatprep.subr.mxu0 %v592
    %3355 = vmatpush1.msra.mxu0 %v591
    %3356 = vmatprep.subr.mxu0 %v596
    %3357 = vmatpush1.msra.mxu0 %v595
    %3358 = vmatprep.subr.mxu0 %v600
    %3359 = vmatpush1.msra.mxu0 %v599
    %3360 = vmatprep.subr.mxu0 %v604
    %3361 = vmatpush1.msra.mxu0 %v603
    %3362 = vmatprep.subr.mxu0 %v608
    %3363 = vmatpush1.msra.mxu0 %v607
    %3364 = vmatprep.subr.mxu0 %v612
    %3365 = vmatpush1.msra.mxu0 %v611
    %3366 = vmatprep.subr.mxu0 %v616
    %3367 = vmatpush1.msra.mxu0 %v615
    %3368 = vmatprep.subr.mxu0 %v620
    %3369 = vmatpush1.msra.mxu0 %v619
    %3370 = vmatprep.subr.mxu0 %v624
    %3371 = vmatpush1.msra.mxu0 %v623
    %3372 = vmatprep.subr.mxu0 %v628
    %3373 = vmatpush1.msra.mxu0 %v627
    %3374 = vmatprep.subr.mxu0 %v632
    %3375 = vmatpush1.msra.mxu0 %v631
    %3376 = vmatprep.mubr.f32.mxu0 %v2988
    %3377 = vmatmul.mubr.f32.gmra.mrb[0].mxu0 %v3311
    %v3378 = vpop.f32.mrb[0].mxu0
    %v3379 = vadd.f32 %v844, %v3378
    %v3380 = vpop.f32.mrb[0].mxu0
    %v3381 = vadd.f32 %v848, %v3380
    %3382 = vdwg.mxu0
    %3383 = vmatprep.subr.mxu0 %v510
    %3384 = vmatpush1.msra.mxu0 %v509
    %3385 = vmatprep.subr.mxu0 %v514
    %3386 = vmatpush1.msra.mxu0 %v513
    %3387 = vmatprep.subr.mxu0 %v518
    %3388 = vmatpush1.msra.mxu0 %v517
    %3389 = vmatprep.subr.mxu0 %v522
    %3390 = vmatpush1.msra.mxu0 %v521
    %3391 = vmatprep.subr.mxu0 %v526
    %3392 = vmatpush1.msra.mxu0 %v525
    %3393 = vmatprep.subr.mxu0 %v530
    %3394 = vmatpush1.msra.mxu0 %v529
    %3395 = vmatprep.subr.mxu0 %v534
    %3396 = vmatpush1.msra.mxu0 %v533
    %3397 = vmatprep.subr.mxu0 %v538
    %3398 = vmatpush1.msra.mxu0 %v537
    %3399 = vmatprep.subr.mxu0 %v542
    %3400 = vmatpush1.msra.mxu0 %v541
    %3401 = vmatprep.subr.mxu0 %v546
    %3402 = vmatpush1.msra.mxu0 %v545
    %3403 = vmatprep.subr.mxu0 %v550
    %3404 = vmatpush1.msra.mxu0 %v549
    %3405 = vmatprep.subr.mxu0 %v554
    %3406 = vmatpush1.msra.mxu0 %v553
    %3407 = vmatprep.subr.mxu0 %v558
    %3408 = vmatpush1.msra.mxu0 %v557
    %3409 = vmatprep.subr.mxu0 %v562
    %3410 = vmatpush1.msra.mxu0 %v561
    %3411 = vmatprep.subr.mxu0 %v566
    %3412 = vmatpush1.msra.mxu0 %v565
    %3413 = vmatprep.subr.mxu0 %v570
    %3414 = vmatpush1.msra.mxu0 %v569
    %3415 = vmatprep.subr.mxu0 %v574
    %3416 = vmatpush1.msra.mxu0 %v573
    %3417 = vmatprep.subr.mxu0 %v578
    %3418 = vmatpush1.msra.mxu0 %v577
    %3419 = vmatprep.subr.mxu0 %v582
    %3420 = vmatpush1.msra.mxu0 %v581
    %3421 = vmatprep.subr.mxu0 %v586
    %3422 = vmatpush1.msra.mxu0 %v585
    %3423 = vmatprep.subr.mxu0 %v590
    %3424 = vmatpush1.msra.mxu0 %v589
    %3425 = vmatprep.subr.mxu0 %v594
    %3426 = vmatpush1.msra.mxu0 %v593
    %3427 = vmatprep.subr.mxu0 %v598
    %3428 = vmatpush1.msra.mxu0 %v597
    %3429 = vmatprep.subr.mxu0 %v602
    %3430 = vmatpush1.msra.mxu0 %v601
    %3431 = vmatprep.subr.mxu0 %v606
    %3432 = vmatpush1.msra.mxu0 %v605
    %3433 = vmatprep.subr.mxu0 %v610
    %3434 = vmatpush1.msra.mxu0 %v609
    %3435 = vmatprep.subr.mxu0 %v614
    %3436 = vmatpush1.msra.mxu0 %v613
    %3437 = vmatprep.subr.mxu0 %v618
    %3438 = vmatpush1.msra.mxu0 %v617
    %3439 = vmatprep.subr.mxu0 %v622
    %3440 = vmatpush1.msra.mxu0 %v621
    %3441 = vmatprep.subr.mxu0 %v626
    %3442 = vmatpush1.msra.mxu0 %v625
    %3443 = vmatprep.subr.mxu0 %v630
    %3444 = vmatpush1.msra.mxu0 %v629
    %3445 = vmatprep.subr.mxu0 %v634
    %3446 = vmatpush1.msra.mxu0 %v633
    %3447 = vmatprep.mubr.f32.mxu0 %v2988
    %3448 = vmatmul.mubr.f32.gmra.mrb[0].mxu0 %v3311
    %v3449 = vpop.f32.mrb[0].mxu0
    %v3450 = vadd.f32 %v852, %v3449
    %v3451 = vpop.f32.mrb[0].mxu0
    %v3452 = vadd.f32 %v856, %v3451
    %3453 = vdwg.mxu0
    %v3454 = vxor.u32 %v3379, 2147483648
    %v3455 = vmul.f32 %v3454, 1.442695
    %v3456 = vpow.pop %v3455
    %v3457 = vadd.f32 %v3456, 1.0
    %v3458 = vrcp.pop %v3457
    %v3459 = vmul.f32 1.0, %v3458
    %v3460 = vxor.u32 %v3381, 2147483648
    %v3461 = vmul.f32 %v3460, 1.442695
    %v3462 = vpow.pop %v3461
    %v3463 = vadd.f32 %v3462, 1.0
    %v3464 = vrcp.pop %v3463
    %v3465 = vmul.f32 1.0, %v3464
    %v3466 = vtanh.pop %v3450
    %v3467 = vxor.u32 %v3452, 2147483648
    %v3468 = vmul.f32 %v3467, 1.442695
    %v3469 = vpow.pop %v3468
    %v3470 = vadd.f32 %v3469, 1.0
    %v3471 = vrcp.pop %v3470
    %v3472 = vmul.f32 1.0, %v3471
    %v3473 = vmul.f32 %v3465, %v2986
    %v3474 = vmul.f32 %v3459, %v3466
    %v3475 = vadd.f32 %v3473, %v3474
    %v3476 = vtanh.pop %v3475
    %v3477 = vmul.f32 %v3472, %v3476
    %3478 = vmatprep.subr.mxu0 0.0
    %3479 = vmatpush1.msra.mxu0 %v635
    %3480 = vmatprep.subr.mxu0 0.0
    %3481 = vmatpush1.msra.mxu0 %v636
    %3482 = vmatprep.subr.mxu0 0.0
    %3483 = vmatpush1.msra.mxu0 %v637
    %3484 = vmatprep.subr.mxu0 0.0
    %3485 = vmatpush1.msra.mxu0 %v638
    %3486 = vmatprep.subr.mxu0 0.0
    %3487 = vmatpush1.msra.mxu0 %v639
    %3488 = vmatprep.subr.mxu0 0.0
    %3489 = vmatpush1.msra.mxu0 %v640
    %3490 = vmatprep.subr.mxu0 0.0
    %3491 = vmatpush1.msra.mxu0 %v641
    %3492 = vmatprep.subr.mxu0 0.0
    %3493 = vmatpush1.msra.mxu0 %v642
    %3494 = vmatprep.subr.mxu0 0.0
    %3495 = vmatpush1.msra.mxu0 %v643
    %3496 = vmatprep.subr.mxu0 0.0
    %3497 = vmatpush1.msra.mxu0 %v644
    %3498 = vmatprep.subr.mxu0 0.0
    %3499 = vmatpush1.msra.mxu0 %v645
    %3500 = vmatprep.subr.mxu0 0.0
    %3501 = vmatpush1.msra.mxu0 %v646
    %3502 = vmatprep.subr.mxu0 0.0
    %3503 = vmatpush1.msra.mxu0 %v647
    %3504 = vmatprep.subr.mxu0 0.0
    %3505 = vmatpush1.msra.mxu0 %v648
    %3506 = vmatprep.subr.mxu0 0.0
    %3507 = vmatpush1.msra.mxu0 %v649
    %3508 = vmatprep.subr.mxu0 0.0
    %3509 = vmatpush1.msra.mxu0 %v650
    %3510 = vmatprep.subr.mxu0 0.0
    %3511 = vmatpush1.msra.mxu0 0.0
    %3512 = vmatprep.subr.mxu0 0.0
    %3513 = vmatpush1.msra.mxu0 0.0
    %3514 = vmatprep.subr.mxu0 0.0
    %3515 = vmatpush1.msra.mxu0 0.0
    %3516 = vmatprep.subr.mxu0 0.0
    %3517 = vmatpush1.msra.mxu0 0.0
    %3518 = vmatprep.subr.mxu0 0.0
    %3519 = vmatpush1.msra.mxu0 0.0
    %3520 = vmatprep.subr.mxu0 0.0
    %3521 = vmatpush1.msra.mxu0 0.0
    %3522 = vmatprep.subr.mxu0 0.0
    %3523 = vmatpush1.msra.mxu0 0.0
    %3524 = vmatprep.subr.mxu0 0.0
    %3525 = vmatpush1.msra.mxu0 0.0
    %3526 = vmatprep.subr.mxu0 0.0
    %3527 = vmatpush1.msra.mxu0 0.0
    %3528 = vmatprep.subr.mxu0 0.0
    %3529 = vmatpush1.msra.mxu0 0.0
    %3530 = vmatprep.subr.mxu0 0.0
    %3531 = vmatpush1.msra.mxu0 0.0
    %3532 = vmatprep.subr.mxu0 0.0
    %3533 = vmatpush1.msra.mxu0 0.0
    %3534 = vmatprep.subr.mxu0 0.0
    %3535 = vmatpush1.msra.mxu0 0.0
    %3536 = vmatprep.subr.mxu0 0.0
    %3537 = vmatpush1.msra.mxu0 0.0
    %3538 = vmatprep.subr.mxu0 0.0
    %3539 = vmatpush1.msra.mxu0 0.0
    %3540 = vmatprep.subr.mxu0 0.0
    %3541 = vmatpush1.msra.mxu0 0.0
    %3542 = vmatprep.mubr.f32.mxu0 0.0
    %3543 = vmatmul.mubr.f32.gmra.mrb[0].mxu0 %v3477
    %v3544 = vpop.f32.mrb[0].mxu0
    %v3545 = vadd.f32 %v1031, %v3544
    %v3546 = vpop.f32.mrb[0].mxu0
    %3547 = vdwg.mxu0
    %v3549 = vcombine.high %v3545, %v3545
    %v3551 = vunpack.c.l.s4 1966171168
    %v3552 = vunpack.c.0.s8 %v3551
    %v3553 = vlaneseq
    %v3554 = vshrl.u32 %v3553, 7
    %v3555 = vsub.s32 %v3552, %v3554
    %v3556 = vrot.slane %v3545, %v3555
    %v3558 = vunpack.c.l.s4 1966171168
    %v3559 = vunpack.c.0.s8 %v3558
    %v3560 = vlaneseq
    %v3561 = vshrl.u32 %v3560, 7
    %v3562 = vsub.s32 %v3559, %v3561
    %v3563 = vrot.slane %v3549, %v3562
    %v3564 = vcombine.high %v3556, %v3556
    %v3565 = vcombine.high %v3563, %v3563
    %v3567 = vunpack.c.l.s4 1966171168
    %v3568 = vunpack.c.0.s8 %v3567
    %v3569 = vlaneseq
    %v3570 = vshrl.u32 %v3569, 7
    %v3571 = vsub.s32 %v3568, %v3570
    %v3572 = vrot.slane %v3556, %v3571
    %v3574 = vunpack.c.l.s4 1966171168
    %v3575 = vunpack.c.0.s8 %v3574
    %v3576 = vlaneseq
    %v3577 = vshrl.u32 %v3576, 7
    %v3578 = vsub.s32 %v3575, %v3577
    %v3579 = vrot.slane %v3563, %v3578
    %v3581 = vunpack.c.l.s4 1966171168
    %v3582 = vunpack.c.0.s8 %v3581
    %v3583 = vlaneseq
    %v3584 = vshrl.u32 %v3583, 7
    %v3585 = vsub.s32 %v3582, %v3584
    %v3586 = vrot.slane %v3564, %v3585
    %v3588 = vunpack.c.l.s4 1966171168
    %v3589 = vunpack.c.0.s8 %v3588
    %v3590 = vlaneseq
    %v3591 = vshrl.u32 %v3590, 7
    %v3592 = vsub.s32 %v3589, %v3591
    %v3593 = vrot.slane %v3565, %v3592
    %v3594 = vcombine.high %v3572, %v3572
    %v3595 = vcombine.high %v3579, %v3579
    %v3596 = vcombine.high %v3586, %v3586
    %v3597 = vcombine.high %v3593, %v3593
    %3606 = vst [vmem:[%s7 + $0x5] sm:$0x1] %v3572
    %3607 = vst [vmem:[%s7 + $0xd] sm:$0x1] %v3586
    %3608 = vst [vmem:[%s7 + $0x15] sm:$0x1] %v3594
    %3609 = vst [vmem:[%s7 + $0x1d] sm:$0x1] %v3596
    %3610 = vst [vmem:[%s7 + $0x25] sm:$0x1] %v3579
    %3611 = vst [vmem:[%s7 + $0x2d] sm:$0x1] %v3593
    %3612 = vst [vmem:[%s7 + $0x35] sm:$0x1] %v3595
    %3613 = vst [vmem:[%s7 + $0x3d] sm:$0x1] %v3597
    %3614 = vmax.xlane.f32.xlu0 %v3545
    %v3615 = vpop.xlane.xlu0 %3614
    %vm3616 = vcmp.eq.f32.partialorder %v3545, %v3615
    %v3617 = vsel %vm3616, %v652, 128
    %v3618 = vand.u32 %v3617, 65535
    %v3619 = vshra.s32 %v3617, 16
    %v3620 = vcvt.s32.f32 %v3618
    %v3621 = vcvt.s32.f32 %v3619
    %3622 = vmin.xlane.f32.xlu0 %v3621
    %v3623 = vpop.xlane.xlu0 %3622
    %vm3624 = vcmp.eq.f32.partialorder %v3621, %v3623
    %v3625 = vsel %vm3624, %v3620, inf
    %3626 = vmin.xlane.f32.xlu0 %v3625
    %v3627 = vpop.xlane.xlu0 %3626
    %v3628 = vcvt.f32.s32 %v3627
    %v3629 = vcvt.f32.s32 %v3623
    %v3630 = vshll.u32 %v3629, 16
    %v3631 = vadd.s32 %v3630, %v3628
    %vm3632 = vcmp.eq.s32.totalorder %v652, %v3631
    %v3633 = vsel %vm3632, 1, 0
    %v3634 = vcvt.s32.f32 %v3633
    %3635 = vmatprep.subr.mxu0 %v380
    %3636 = vmatpush1.msra.mxu0 %v379
    %3637 = vmatprep.subr.mxu0 %v384
    %3638 = vmatpush1.msra.mxu0 %v383
    %3639 = vmatprep.subr.mxu0 %v388
    %3640 = vmatpush1.msra.mxu0 %v387
    %3641 = vmatprep.subr.mxu0 %v392
    %3642 = vmatpush1.msra.mxu0 %v391
    %3643 = vmatprep.subr.mxu0 %v396
    %3644 = vmatpush1.msra.mxu0 %v395
    %3645 = vmatprep.subr.mxu0 %v400
    %3646 = vmatpush1.msra.mxu0 %v399
    %3647 = vmatprep.subr.mxu0 %v404
    %3648 = vmatpush1.msra.mxu0 %v403
    %3649 = vmatprep.subr.mxu0 %v408
    %3650 = vmatpush1.msra.mxu0 %v407
    %3651 = vmatprep.subr.mxu0 %v412
    %3652 = vmatpush1.msra.mxu0 %v411
    %3653 = vmatprep.subr.mxu0 %v416
    %3654 = vmatpush1.msra.mxu0 %v415
    %3655 = vmatprep.subr.mxu0 %v420
    %3656 = vmatpush1.msra.mxu0 %v419
    %3657 = vmatprep.subr.mxu0 %v424
    %3658 = vmatpush1.msra.mxu0 %v423
    %3659 = vmatprep.subr.mxu0 %v428
    %3660 = vmatpush1.msra.mxu0 %v427
    %3661 = vmatprep.subr.mxu0 %v432
    %3662 = vmatpush1.msra.mxu0 %v431
    %3663 = vmatprep.subr.mxu0 %v436
    %3664 = vmatpush1.msra.mxu0 %v435
    %3665 = vmatprep.subr.mxu0 %v440
    %3666 = vmatpush1.msra.mxu0 %v439
    %3667 = vmatprep.subr.mxu0 %v444
    %3668 = vmatpush1.msra.mxu0 %v443
    %3669 = vmatprep.subr.mxu0 %v448
    %3670 = vmatpush1.msra.mxu0 %v447
    %3671 = vmatprep.subr.mxu0 %v452
    %3672 = vmatpush1.msra.mxu0 %v451
    %3673 = vmatprep.subr.mxu0 %v456
    %3674 = vmatpush1.msra.mxu0 %v455
    %3675 = vmatprep.subr.mxu0 %v460
    %3676 = vmatpush1.msra.mxu0 %v459
    %3677 = vmatprep.subr.mxu0 %v464
    %3678 = vmatpush1.msra.mxu0 %v463
    %3679 = vmatprep.subr.mxu0 %v468
    %3680 = vmatpush1.msra.mxu0 %v467
    %3681 = vmatprep.subr.mxu0 %v472
    %3682 = vmatpush1.msra.mxu0 %v471
    %3683 = vmatprep.subr.mxu0 %v476
    %3684 = vmatpush1.msra.mxu0 %v475
    %3685 = vmatprep.subr.mxu0 %v480
    %3686 = vmatpush1.msra.mxu0 %v479
    %3687 = vmatprep.subr.mxu0 %v484
    %3688 = vmatpush1.msra.mxu0 %v483
    %3689 = vmatprep.subr.mxu0 %v488
    %3690 = vmatpush1.msra.mxu0 %v487
    %3691 = vmatprep.subr.mxu0 %v492
    %3692 = vmatpush1.msra.mxu0 %v491
    %3693 = vmatprep.subr.mxu0 %v496
    %3694 = vmatpush1.msra.mxu0 %v495
    %3695 = vmatprep.subr.mxu0 %v500
    %3696 = vmatpush1.msra.mxu0 %v499
    %3697 = vmatprep.subr.mxu0 %v504
    %3698 = vmatpush1.msra.mxu0 %v503
    %3699 = vmatprep.mubr.f32.mxu0 %v3311
    %3700 = vmatmul.mubr.f32.gmra.mrb[0].mxu0 %v3634
    %v3701 = vpop.f32.mrb[0].mxu0
    %v3702 = vadd.f32 %v657, %v3701
    %v3703 = vpop.f32.mrb[0].mxu0
    %v3704 = vadd.f32 %v661, %v3703
    %3705 = vdwg.mxu0
    %3706 = vmatprep.subr.mxu0 %v382
    %3707 = vmatpush1.msra.mxu0 %v381
    %3708 = vmatprep.subr.mxu0 %v386
    %3709 = vmatpush1.msra.mxu0 %v385
    %3710 = vmatprep.subr.mxu0 %v390
    %3711 = vmatpush1.msra.mxu0 %v389
    %3712 = vmatprep.subr.mxu0 %v394
    %3713 = vmatpush1.msra.mxu0 %v393
    %3714 = vmatprep.subr.mxu0 %v398
    %3715 = vmatpush1.msra.mxu0 %v397
    %3716 = vmatprep.subr.mxu0 %v402
    %3717 = vmatpush1.msra.mxu0 %v401
    %3718 = vmatprep.subr.mxu0 %v406
    %3719 = vmatpush1.msra.mxu0 %v405
    %3720 = vmatprep.subr.mxu0 %v410
    %3721 = vmatpush1.msra.mxu0 %v409
    %3722 = vmatprep.subr.mxu0 %v414
    %3723 = vmatpush1.msra.mxu0 %v413
    %3724 = vmatprep.subr.mxu0 %v418
    %3725 = vmatpush1.msra.mxu0 %v417
    %3726 = vmatprep.subr.mxu0 %v422
    %3727 = vmatpush1.msra.mxu0 %v421
    %3728 = vmatprep.subr.mxu0 %v426
    %3729 = vmatpush1.msra.mxu0 %v425
    %3730 = vmatprep.subr.mxu0 %v430
    %3731 = vmatpush1.msra.mxu0 %v429
    %3732 = vmatprep.subr.mxu0 %v434
    %3733 = vmatpush1.msra.mxu0 %v433
    %3734 = vmatprep.subr.mxu0 %v438
    %3735 = vmatpush1.msra.mxu0 %v437
    %3736 = vmatprep.subr.mxu0 %v442
    %3737 = vmatpush1.msra.mxu0 %v441
    %3738 = vmatprep.subr.mxu0 %v446
    %3739 = vmatpush1.msra.mxu0 %v445
    %3740 = vmatprep.subr.mxu0 %v450
    %3741 = vmatpush1.msra.mxu0 %v449
    %3742 = vmatprep.subr.mxu0 %v454
    %3743 = vmatpush1.msra.mxu0 %v453
    %3744 = vmatprep.subr.mxu0 %v458
    %3745 = vmatpush1.msra.mxu0 %v457
    %3746 = vmatprep.subr.mxu0 %v462
    %3747 = vmatpush1.msra.mxu0 %v461
    %3748 = vmatprep.subr.mxu0 %v466
    %3749 = vmatpush1.msra.mxu0 %v465
    %3750 = vmatprep.subr.mxu0 %v470
    %3751 = vmatpush1.msra.mxu0 %v469
    %3752 = vmatprep.subr.mxu0 %v474
    %3753 = vmatpush1.msra.mxu0 %v473
    %3754 = vmatprep.subr.mxu0 %v478
    %3755 = vmatpush1.msra.mxu0 %v477
    %3756 = vmatprep.subr.mxu0 %v482
    %3757 = vmatpush1.msra.mxu0 %v481
    %3758 = vmatprep.subr.mxu0 %v486
    %3759 = vmatpush1.msra.mxu0 %v485
    %3760 = vmatprep.subr.mxu0 %v490
    %3761 = vmatpush1.msra.mxu0 %v489
    %3762 = vmatprep.subr.mxu0 %v494
    %3763 = vmatpush1.msra.mxu0 %v493
    %3764 = vmatprep.subr.mxu0 %v498
    %3765 = vmatpush1.msra.mxu0 %v497
    %3766 = vmatprep.subr.mxu0 %v502
    %3767 = vmatpush1.msra.mxu0 %v501
    %3768 = vmatprep.subr.mxu0 %v506
    %3769 = vmatpush1.msra.mxu0 %v505
    %3770 = vmatprep.mubr.f32.mxu0 %v3311
    %3771 = vmatmul.mubr.f32.gmra.mrb[0].mxu0 %v3634
    %v3772 = vpop.f32.mrb[0].mxu0
    %v3773 = vadd.f32 %v665, %v3772
    %v3774 = vpop.f32.mrb[0].mxu0
    %v3775 = vadd.f32 %v669, %v3774
    %3776 = vdwg.mxu0
    %v3777 = vxor.u32 %v3702, 2147483648
    %v3778 = vmul.f32 %v3777, 1.442695
    %v3779 = vpow.pop %v3778
    %v3780 = vadd.f32 %v3779, 1.0
    %v3781 = vrcp.pop %v3780
    %v3782 = vmul.f32 1.0, %v3781
    %v3783 = vxor.u32 %v3704, 2147483648
    %v3784 = vmul.f32 %v3783, 1.442695
    %v3785 = vpow.pop %v3784
    %v3786 = vadd.f32 %v3785, 1.0
    %v3787 = vrcp.pop %v3786
    %v3788 = vmul.f32 1.0, %v3787
    %v3789 = vtanh.pop %v3773
    %v3790 = vxor.u32 %v3775, 2147483648
    %v3791 = vmul.f32 %v3790, 1.442695
    %v3792 = vpow.pop %v3791
    %v3793 = vadd.f32 %v3792, 1.0
    %v3794 = vrcp.pop %v3793
    %v3795 = vmul.f32 1.0, %v3794
    %v3796 = vmul.f32 %v3788, %v3309
    %v3797 = vmul.f32 %v3782, %v3789
    %v3798 = vadd.f32 %v3796, %v3797
    %v3799 = vtanh.pop %v3798
    %v3800 = vmul.f32 %v3795, %v3799
    %3801 = vmatprep.subr.mxu0 %v508
    %3802 = vmatpush1.msra.mxu0 %v507
    %3803 = vmatprep.subr.mxu0 %v512
    %3804 = vmatpush1.msra.mxu0 %v511
    %3805 = vmatprep.subr.mxu0 %v516
    %3806 = vmatpush1.msra.mxu0 %v515
    %3807 = vmatprep.subr.mxu0 %v520
    %3808 = vmatpush1.msra.mxu0 %v519
    %3809 = vmatprep.subr.mxu0 %v524
    %3810 = vmatpush1.msra.mxu0 %v523
    %3811 = vmatprep.subr.mxu0 %v528
    %3812 = vmatpush1.msra.mxu0 %v527
    %3813 = vmatprep.subr.mxu0 %v532
    %3814 = vmatpush1.msra.mxu0 %v531
    %3815 = vmatprep.subr.mxu0 %v536
    %3816 = vmatpush1.msra.mxu0 %v535
    %3817 = vmatprep.subr.mxu0 %v540
    %3818 = vmatpush1.msra.mxu0 %v539
    %3819 = vmatprep.subr.mxu0 %v544
    %3820 = vmatpush1.msra.mxu0 %v543
    %3821 = vmatprep.subr.mxu0 %v548
    %3822 = vmatpush1.msra.mxu0 %v547
    %3823 = vmatprep.subr.mxu0 %v552
    %3824 = vmatpush1.msra.mxu0 %v551
    %3825 = vmatprep.subr.mxu0 %v556
    %3826 = vmatpush1.msra.mxu0 %v555
    %3827 = vmatprep.subr.mxu0 %v560
    %3828 = vmatpush1.msra.mxu0 %v559
    %3829 = vmatprep.subr.mxu0 %v564
    %3830 = vmatpush1.msra.mxu0 %v563
    %3831 = vmatprep.subr.mxu0 %v568
    %3832 = vmatpush1.msra.mxu0 %v567
    %3833 = vmatprep.subr.mxu0 %v572
    %3834 = vmatpush1.msra.mxu0 %v571
    %3835 = vmatprep.subr.mxu0 %v576
    %3836 = vmatpush1.msra.mxu0 %v575
    %3837 = vmatprep.subr.mxu0 %v580
    %3838 = vmatpush1.msra.mxu0 %v579
    %3839 = vmatprep.subr.mxu0 %v584
    %3840 = vmatpush1.msra.mxu0 %v583
    %3841 = vmatprep.subr.mxu0 %v588
    %3842 = vmatpush1.msra.mxu0 %v587
    %3843 = vmatprep.subr.mxu0 %v592
    %3844 = vmatpush1.msra.mxu0 %v591
    %3845 = vmatprep.subr.mxu0 %v596
    %3846 = vmatpush1.msra.mxu0 %v595
    %3847 = vmatprep.subr.mxu0 %v600
    %3848 = vmatpush1.msra.mxu0 %v599
    %3849 = vmatprep.subr.mxu0 %v604
    %3850 = vmatpush1.msra.mxu0 %v603
    %3851 = vmatprep.subr.mxu0 %v608
    %3852 = vmatpush1.msra.mxu0 %v607
    %3853 = vmatprep.subr.mxu0 %v612
    %3854 = vmatpush1.msra.mxu0 %v611
    %3855 = vmatprep.subr.mxu0 %v616
    %3856 = vmatpush1.msra.mxu0 %v615
    %3857 = vmatprep.subr.mxu0 %v620
    %3858 = vmatpush1.msra.mxu0 %v619
    %3859 = vmatprep.subr.mxu0 %v624
    %3860 = vmatpush1.msra.mxu0 %v623
    %3861 = vmatprep.subr.mxu0 %v628
    %3862 = vmatpush1.msra.mxu0 %v627
    %3863 = vmatprep.subr.mxu0 %v632
    %3864 = vmatpush1.msra.mxu0 %v631
    %3865 = vmatprep.mubr.f32.mxu0 %v3477
    %3866 = vmatmul.mubr.f32.gmra.mrb[0].mxu0 %v3800
    %v3867 = vpop.f32.mrb[0].mxu0
    %v3868 = vadd.f32 %v844, %v3867
    %v3869 = vpop.f32.mrb[0].mxu0
    %v3870 = vadd.f32 %v848, %v3869
    %3871 = vdwg.mxu0
    %3872 = vmatprep.subr.mxu0 %v510
    %3873 = vmatpush1.msra.mxu0 %v509
    %3874 = vmatprep.subr.mxu0 %v514
    %3875 = vmatpush1.msra.mxu0 %v513
    %3876 = vmatprep.subr.mxu0 %v518
    %3877 = vmatpush1.msra.mxu0 %v517
    %3878 = vmatprep.subr.mxu0 %v522
    %3879 = vmatpush1.msra.mxu0 %v521
    %3880 = vmatprep.subr.mxu0 %v526
    %3881 = vmatpush1.msra.mxu0 %v525
    %3882 = vmatprep.subr.mxu0 %v530
    %3883 = vmatpush1.msra.mxu0 %v529
    %3884 = vmatprep.subr.mxu0 %v534
    %3885 = vmatpush1.msra.mxu0 %v533
    %3886 = vmatprep.subr.mxu0 %v538
    %3887 = vmatpush1.msra.mxu0 %v537
    %3888 = vmatprep.subr.mxu0 %v542
    %3889 = vmatpush1.msra.mxu0 %v541
    %3890 = vmatprep.subr.mxu0 %v546
    %3891 = vmatpush1.msra.mxu0 %v545
    %3892 = vmatprep.subr.mxu0 %v550
    %3893 = vmatpush1.msra.mxu0 %v549
    %3894 = vmatprep.subr.mxu0 %v554
    %3895 = vmatpush1.msra.mxu0 %v553
    %3896 = vmatprep.subr.mxu0 %v558
    %3897 = vmatpush1.msra.mxu0 %v557
    %3898 = vmatprep.subr.mxu0 %v562
    %3899 = vmatpush1.msra.mxu0 %v561
    %3900 = vmatprep.subr.mxu0 %v566
    %3901 = vmatpush1.msra.mxu0 %v565
    %3902 = vmatprep.subr.mxu0 %v570
    %3903 = vmatpush1.msra.mxu0 %v569
    %3904 = vmatprep.subr.mxu0 %v574
    %3905 = vmatpush1.msra.mxu0 %v573
    %3906 = vmatprep.subr.mxu0 %v578
    %3907 = vmatpush1.msra.mxu0 %v577
    %3908 = vmatprep.subr.mxu0 %v582
    %3909 = vmatpush1.msra.mxu0 %v581
    %3910 = vmatprep.subr.mxu0 %v586
    %3911 = vmatpush1.msra.mxu0 %v585
    %3912 = vmatprep.subr.mxu0 %v590
    %3913 = vmatpush1.msra.mxu0 %v589
    %3914 = vmatprep.subr.mxu0 %v594
    %3915 = vmatpush1.msra.mxu0 %v593
    %3916 = vmatprep.subr.mxu0 %v598
    %3917 = vmatpush1.msra.mxu0 %v597
    %3918 = vmatprep.subr.mxu0 %v602
    %3919 = vmatpush1.msra.mxu0 %v601
    %3920 = vmatprep.subr.mxu0 %v606
    %3921 = vmatpush1.msra.mxu0 %v605
    %3922 = vmatprep.subr.mxu0 %v610
    %3923 = vmatpush1.msra.mxu0 %v609
    %3924 = vmatprep.subr.mxu0 %v614
    %3925 = vmatpush1.msra.mxu0 %v613
    %3926 = vmatprep.subr.mxu0 %v618
    %3927 = vmatpush1.msra.mxu0 %v617
    %3928 = vmatprep.subr.mxu0 %v622
    %3929 = vmatpush1.msra.mxu0 %v621
    %3930 = vmatprep.subr.mxu0 %v626
    %3931 = vmatpush1.msra.mxu0 %v625
    %3932 = vmatprep.subr.mxu0 %v630
    %3933 = vmatpush1.msra.mxu0 %v629
    %3934 = vmatprep.subr.mxu0 %v634
    %3935 = vmatpush1.msra.mxu0 %v633
    %3936 = vmatprep.mubr.f32.mxu0 %v3477
    %3937 = vmatmul.mubr.f32.gmra.mrb[0].mxu0 %v3800
    %v3938 = vpop.f32.mrb[0].mxu0
    %v3939 = vadd.f32 %v852, %v3938
    %v3940 = vpop.f32.mrb[0].mxu0
    %v3941 = vadd.f32 %v856, %v3940
    %3942 = vdwg.mxu0
    %v3943 = vxor.u32 %v3868, 2147483648
    %v3944 = vmul.f32 %v3943, 1.442695
    %v3945 = vpow.pop %v3944
    %v3946 = vadd.f32 %v3945, 1.0
    %v3947 = vrcp.pop %v3946
    %v3948 = vmul.f32 1.0, %v3947
    %v3949 = vxor.u32 %v3870, 2147483648
    %v3950 = vmul.f32 %v3949, 1.442695
    %v3951 = vpow.pop %v3950
    %v3952 = vadd.f32 %v3951, 1.0
    %v3953 = vrcp.pop %v3952
    %v3954 = vmul.f32 1.0, %v3953
    %v3955 = vtanh.pop %v3939
    %v3956 = vxor.u32 %v3941, 2147483648
    %v3957 = vmul.f32 %v3956, 1.442695
    %v3958 = vpow.pop %v3957
    %v3959 = vadd.f32 %v3958, 1.0
    %v3960 = vrcp.pop %v3959
    %v3961 = vmul.f32 1.0, %v3960
    %v3962 = vmul.f32 %v3954, %v3475
    %v3963 = vmul.f32 %v3948, %v3955
    %v3964 = vadd.f32 %v3962, %v3963
    %v3965 = vtanh.pop %v3964
    %v3966 = vmul.f32 %v3961, %v3965
    %3967 = vmatprep.subr.mxu0 0.0
    %3968 = vmatpush1.msra.mxu0 %v635
    %3969 = vmatprep.subr.mxu0 0.0
    %3970 = vmatpush1.msra.mxu0 %v636
    %3971 = vmatprep.subr.mxu0 0.0
    %3972 = vmatpush1.msra.mxu0 %v637
    %3973 = vmatprep.subr.mxu0 0.0
    %3974 = vmatpush1.msra.mxu0 %v638
    %3975 = vmatprep.subr.mxu0 0.0
    %3976 = vmatpush1.msra.mxu0 %v639
    %3977 = vmatprep.subr.mxu0 0.0
    %3978 = vmatpush1.msra.mxu0 %v640
    %3979 = vmatprep.subr.mxu0 0.0
    %3980 = vmatpush1.msra.mxu0 %v641
    %3981 = vmatprep.subr.mxu0 0.0
    %3982 = vmatpush1.msra.mxu0 %v642
    %3983 = vmatprep.subr.mxu0 0.0
    %3984 = vmatpush1.msra.mxu0 %v643
    %3985 = vmatprep.subr.mxu0 0.0
    %3986 = vmatpush1.msra.mxu0 %v644
    %3987 = vmatprep.subr.mxu0 0.0
    %3988 = vmatpush1.msra.mxu0 %v645
    %3989 = vmatprep.subr.mxu0 0.0
    %3990 = vmatpush1.msra.mxu0 %v646
    %3991 = vmatprep.subr.mxu0 0.0
    %3992 = vmatpush1.msra.mxu0 %v647
    %3993 = vmatprep.subr.mxu0 0.0
    %3994 = vmatpush1.msra.mxu0 %v648
    %3995 = vmatprep.subr.mxu0 0.0
    %3996 = vmatpush1.msra.mxu0 %v649
    %3997 = vmatprep.subr.mxu0 0.0
    %3998 = vmatpush1.msra.mxu0 %v650
    %3999 = vmatprep.subr.mxu0 0.0
    %4000 = vmatpush1.msra.mxu0 0.0
    %4001 = vmatprep.subr.mxu0 0.0
    %4002 = vmatpush1.msra.mxu0 0.0
    %4003 = vmatprep.subr.mxu0 0.0
    %4004 = vmatpush1.msra.mxu0 0.0
    %4005 = vmatprep.subr.mxu0 0.0
    %4006 = vmatpush1.msra.mxu0 0.0
    %4007 = vmatprep.subr.mxu0 0.0
    %4008 = vmatpush1.msra.mxu0 0.0
    %4009 = vmatprep.subr.mxu0 0.0
    %4010 = vmatpush1.msra.mxu0 0.0
    %4011 = vmatprep.subr.mxu0 0.0
    %4012 = vmatpush1.msra.mxu0 0.0
    %4013 = vmatprep.subr.mxu0 0.0
    %4014 = vmatpush1.msra.mxu0 0.0
    %4015 = vmatprep.subr.mxu0 0.0
    %4016 = vmatpush1.msra.mxu0 0.0
    %4017 = vmatprep.subr.mxu0 0.0
    %4018 = vmatpush1.msra.mxu0 0.0
    %4019 = vmatprep.subr.mxu0 0.0
    %4020 = vmatpush1.msra.mxu0 0.0
    %4021 = vmatprep.subr.mxu0 0.0
    %4022 = vmatpush1.msra.mxu0 0.0
    %4023 = vmatprep.subr.mxu0 0.0
    %4024 = vmatpush1.msra.mxu0 0.0
    %4025 = vmatprep.subr.mxu0 0.0
    %4026 = vmatpush1.msra.mxu0 0.0
    %4027 = vmatprep.subr.mxu0 0.0
    %4028 = vmatpush1.msra.mxu0 0.0
    %4029 = vmatprep.subr.mxu0 0.0
    %4030 = vmatpush1.msra.mxu0 0.0
    %4031 = vmatprep.mubr.f32.mxu0 0.0
    %4032 = vmatmul.mubr.f32.gmra.mrb[0].mxu0 %v3966
    %v4033 = vpop.f32.mrb[0].mxu0
    %v4034 = vadd.f32 %v1031, %v4033
    %v4035 = vpop.f32.mrb[0].mxu0
    %4036 = vdwg.mxu0
    %v4038 = vcombine.high %v4034, %v4034
    %v4040 = vunpack.c.l.s4 1966171168
    %v4041 = vunpack.c.0.s8 %v4040
    %v4042 = vlaneseq
    %v4043 = vshrl.u32 %v4042, 7
    %v4044 = vsub.s32 %v4041, %v4043
    %v4045 = vrot.slane %v4034, %v4044
    %v4047 = vunpack.c.l.s4 1966171168
    %v4048 = vunpack.c.0.s8 %v4047
    %v4049 = vlaneseq
    %v4050 = vshrl.u32 %v4049, 7
    %v4051 = vsub.s32 %v4048, %v4050
    %v4052 = vrot.slane %v4038, %v4051
    %v4053 = vcombine.high %v4045, %v4045
    %v4054 = vcombine.high %v4052, %v4052
    %v4056 = vunpack.c.l.s4 1966171168
    %v4057 = vunpack.c.0.s8 %v4056
    %v4058 = vlaneseq
    %v4059 = vshrl.u32 %v4058, 7
    %v4060 = vsub.s32 %v4057, %v4059
    %v4061 = vrot.slane %v4045, %v4060
    %v4063 = vunpack.c.l.s4 1966171168
    %v4064 = vunpack.c.0.s8 %v4063
    %v4065 = vlaneseq
    %v4066 = vshrl.u32 %v4065, 7
    %v4067 = vsub.s32 %v4064, %v4066
    %v4068 = vrot.slane %v4052, %v4067
    %v4070 = vunpack.c.l.s4 1966171168
    %v4071 = vunpack.c.0.s8 %v4070
    %v4072 = vlaneseq
    %v4073 = vshrl.u32 %v4072, 7
    %v4074 = vsub.s32 %v4071, %v4073
    %v4075 = vrot.slane %v4053, %v4074
    %v4077 = vunpack.c.l.s4 1966171168
    %v4078 = vunpack.c.0.s8 %v4077
    %v4079 = vlaneseq
    %v4080 = vshrl.u32 %v4079, 7
    %v4081 = vsub.s32 %v4078, %v4080
    %v4082 = vrot.slane %v4054, %v4081
    %v4083 = vcombine.high %v4061, %v4061
    %v4084 = vcombine.high %v4068, %v4068
    %v4085 = vcombine.high %v4075, %v4075
    %v4086 = vcombine.high %v4082, %v4082
    %4095 = vst [vmem:[%s7 + $0x6] sm:$0x1] %v4061
    %4096 = vst [vmem:[%s7 + $0xe] sm:$0x1] %v4075
    %4097 = vst [vmem:[%s7 + $0x16] sm:$0x1] %v4083
    %4098 = vst [vmem:[%s7 + $0x1e] sm:$0x1] %v4085
    %4099 = vst [vmem:[%s7 + $0x26] sm:$0x1] %v4068
    %4100 = vst [vmem:[%s7 + $0x2e] sm:$0x1] %v4082
    %4101 = vst [vmem:[%s7 + $0x36] sm:$0x1] %v4084
    %4102 = vst [vmem:[%s7 + $0x3e] sm:$0x1] %v4086
    %4103 = vmax.xlane.f32.xlu0 %v4034
    %v4104 = vpop.xlane.xlu0 %4103
    %vm4105 = vcmp.eq.f32.partialorder %v4034, %v4104
    %v4106 = vsel %vm4105, %v652, 128
    %v4107 = vand.u32 %v4106, 65535
    %v4108 = vshra.s32 %v4106, 16
    %v4109 = vcvt.s32.f32 %v4107
    %v4110 = vcvt.s32.f32 %v4108
    %4111 = vmin.xlane.f32.xlu0 %v4110
    %v4112 = vpop.xlane.xlu0 %4111
    %vm4113 = vcmp.eq.f32.partialorder %v4110, %v4112
    %v4114 = vsel %vm4113, %v4109, inf
    %4115 = vmin.xlane.f32.xlu0 %v4114
    %v4116 = vpop.xlane.xlu0 %4115
    %v4117 = vcvt.f32.s32 %v4116
    %v4118 = vcvt.f32.s32 %v4112
    %v4119 = vshll.u32 %v4118, 16
    %v4120 = vadd.s32 %v4119, %v4117
    %vm4121 = vcmp.eq.s32.totalorder %v652, %v4120
    %v4122 = vsel %vm4121, 1, 0
    %v4123 = vcvt.s32.f32 %v4122
    %4124 = vmatprep.subr.mxu0 %v380
    %4125 = vmatpush1.msra.mxu0 %v379
    %4126 = vmatprep.subr.mxu0 %v384
    %4127 = vmatpush1.msra.mxu0 %v383
    %4128 = vmatprep.subr.mxu0 %v388
    %4129 = vmatpush1.msra.mxu0 %v387
    %4130 = vmatprep.subr.mxu0 %v392
    %4131 = vmatpush1.msra.mxu0 %v391
    %4132 = vmatprep.subr.mxu0 %v396
    %4133 = vmatpush1.msra.mxu0 %v395
    %4134 = vmatprep.subr.mxu0 %v400
    %4135 = vmatpush1.msra.mxu0 %v399
    %4136 = vmatprep.subr.mxu0 %v404
    %4137 = vmatpush1.msra.mxu0 %v403
    %4138 = vmatprep.subr.mxu0 %v408
    %4139 = vmatpush1.msra.mxu0 %v407
    %4140 = vmatprep.subr.mxu0 %v412
    %4141 = vmatpush1.msra.mxu0 %v411
    %4142 = vmatprep.subr.mxu0 %v416
    %4143 = vmatpush1.msra.mxu0 %v415
    %4144 = vmatprep.subr.mxu0 %v420
    %4145 = vmatpush1.msra.mxu0 %v419
    %4146 = vmatprep.subr.mxu0 %v424
    %4147 = vmatpush1.msra.mxu0 %v423
    %4148 = vmatprep.subr.mxu0 %v428
    %4149 = vmatpush1.msra.mxu0 %v427
    %4150 = vmatprep.subr.mxu0 %v432
    %4151 = vmatpush1.msra.mxu0 %v431
    %4152 = vmatprep.subr.mxu0 %v436
    %4153 = vmatpush1.msra.mxu0 %v435
    %4154 = vmatprep.subr.mxu0 %v440
    %4155 = vmatpush1.msra.mxu0 %v439
    %4156 = vmatprep.subr.mxu0 %v444
    %4157 = vmatpush1.msra.mxu0 %v443
    %4158 = vmatprep.subr.mxu0 %v448
    %4159 = vmatpush1.msra.mxu0 %v447
    %4160 = vmatprep.subr.mxu0 %v452
    %4161 = vmatpush1.msra.mxu0 %v451
    %4162 = vmatprep.subr.mxu0 %v456
    %4163 = vmatpush1.msra.mxu0 %v455
    %4164 = vmatprep.subr.mxu0 %v460
    %4165 = vmatpush1.msra.mxu0 %v459
    %4166 = vmatprep.subr.mxu0 %v464
    %4167 = vmatpush1.msra.mxu0 %v463
    %4168 = vmatprep.subr.mxu0 %v468
    %4169 = vmatpush1.msra.mxu0 %v467
    %4170 = vmatprep.subr.mxu0 %v472
    %4171 = vmatpush1.msra.mxu0 %v471
    %4172 = vmatprep.subr.mxu0 %v476
    %4173 = vmatpush1.msra.mxu0 %v475
    %4174 = vmatprep.subr.mxu0 %v480
    %4175 = vmatpush1.msra.mxu0 %v479
    %4176 = vmatprep.subr.mxu0 %v484
    %4177 = vmatpush1.msra.mxu0 %v483
    %4178 = vmatprep.subr.mxu0 %v488
    %4179 = vmatpush1.msra.mxu0 %v487
    %4180 = vmatprep.subr.mxu0 %v492
    %4181 = vmatpush1.msra.mxu0 %v491
    %4182 = vmatprep.subr.mxu0 %v496
    %4183 = vmatpush1.msra.mxu0 %v495
    %4184 = vmatprep.subr.mxu0 %v500
    %4185 = vmatpush1.msra.mxu0 %v499
    %4186 = vmatprep.subr.mxu0 %v504
    %4187 = vmatpush1.msra.mxu0 %v503
    %4188 = vmatprep.mubr.f32.mxu0 %v3800
    %4189 = vmatmul.mubr.f32.gmra.mrb[0].mxu0 %v4123
    %v4190 = vpop.f32.mrb[0].mxu0
    %v4191 = vadd.f32 %v657, %v4190
    %v4192 = vpop.f32.mrb[0].mxu0
    %v4193 = vadd.f32 %v661, %v4192
    %4194 = vdwg.mxu0
    %4195 = vmatprep.subr.mxu0 %v382
    %4196 = vmatpush1.msra.mxu0 %v381
    %4197 = vmatprep.subr.mxu0 %v386
    %4198 = vmatpush1.msra.mxu0 %v385
    %4199 = vmatprep.subr.mxu0 %v390
    %4200 = vmatpush1.msra.mxu0 %v389
    %4201 = vmatprep.subr.mxu0 %v394
    %4202 = vmatpush1.msra.mxu0 %v393
    %4203 = vmatprep.subr.mxu0 %v398
    %4204 = vmatpush1.msra.mxu0 %v397
    %4205 = vmatprep.subr.mxu0 %v402
    %4206 = vmatpush1.msra.mxu0 %v401
    %4207 = vmatprep.subr.mxu0 %v406
    %4208 = vmatpush1.msra.mxu0 %v405
    %4209 = vmatprep.subr.mxu0 %v410
    %4210 = vmatpush1.msra.mxu0 %v409
    %4211 = vmatprep.subr.mxu0 %v414
    %4212 = vmatpush1.msra.mxu0 %v413
    %4213 = vmatprep.subr.mxu0 %v418
    %4214 = vmatpush1.msra.mxu0 %v417
    %4215 = vmatprep.subr.mxu0 %v422
    %4216 = vmatpush1.msra.mxu0 %v421
    %4217 = vmatprep.subr.mxu0 %v426
    %4218 = vmatpush1.msra.mxu0 %v425
    %4219 = vmatprep.subr.mxu0 %v430
    %4220 = vmatpush1.msra.mxu0 %v429
    %4221 = vmatprep.subr.mxu0 %v434
    %4222 = vmatpush1.msra.mxu0 %v433
    %4223 = vmatprep.subr.mxu0 %v438
    %4224 = vmatpush1.msra.mxu0 %v437
    %4225 = vmatprep.subr.mxu0 %v442
    %4226 = vmatpush1.msra.mxu0 %v441
    %4227 = vmatprep.subr.mxu0 %v446
    %4228 = vmatpush1.msra.mxu0 %v445
    %4229 = vmatprep.subr.mxu0 %v450
    %4230 = vmatpush1.msra.mxu0 %v449
    %4231 = vmatprep.subr.mxu0 %v454
    %4232 = vmatpush1.msra.mxu0 %v453
    %4233 = vmatprep.subr.mxu0 %v458
    %4234 = vmatpush1.msra.mxu0 %v457
    %4235 = vmatprep.subr.mxu0 %v462
    %4236 = vmatpush1.msra.mxu0 %v461
    %4237 = vmatprep.subr.mxu0 %v466
    %4238 = vmatpush1.msra.mxu0 %v465
    %4239 = vmatprep.subr.mxu0 %v470
    %4240 = vmatpush1.msra.mxu0 %v469
    %4241 = vmatprep.subr.mxu0 %v474
    %4242 = vmatpush1.msra.mxu0 %v473
    %4243 = vmatprep.subr.mxu0 %v478
    %4244 = vmatpush1.msra.mxu0 %v477
    %4245 = vmatprep.subr.mxu0 %v482
    %4246 = vmatpush1.msra.mxu0 %v481
    %4247 = vmatprep.subr.mxu0 %v486
    %4248 = vmatpush1.msra.mxu0 %v485
    %4249 = vmatprep.subr.mxu0 %v490
    %4250 = vmatpush1.msra.mxu0 %v489
    %4251 = vmatprep.subr.mxu0 %v494
    %4252 = vmatpush1.msra.mxu0 %v493
    %4253 = vmatprep.subr.mxu0 %v498
    %4254 = vmatpush1.msra.mxu0 %v497
    %4255 = vmatprep.subr.mxu0 %v502
    %4256 = vmatpush1.msra.mxu0 %v501
    %4257 = vmatprep.subr.mxu0 %v506
    %4258 = vmatpush1.msra.mxu0 %v505
    %4259 = vmatprep.mubr.f32.mxu0 %v3800
    %4260 = vmatmul.mubr.f32.gmra.mrb[0].mxu0 %v4123
    %v4261 = vpop.f32.mrb[0].mxu0
    %v4262 = vadd.f32 %v665, %v4261
    %v4263 = vpop.f32.mrb[0].mxu0
    %v4264 = vadd.f32 %v669, %v4263
    %4265 = vdwg.mxu0
    %v4266 = vxor.u32 %v4191, 2147483648
    %v4267 = vmul.f32 %v4266, 1.442695
    %v4268 = vpow.pop %v4267
    %v4269 = vadd.f32 %v4268, 1.0
    %v4270 = vrcp.pop %v4269
    %v4271 = vmul.f32 1.0, %v4270
    %v4272 = vxor.u32 %v4193, 2147483648
    %v4273 = vmul.f32 %v4272, 1.442695
    %v4274 = vpow.pop %v4273
    %v4275 = vadd.f32 %v4274, 1.0
    %v4276 = vrcp.pop %v4275
    %v4277 = vmul.f32 1.0, %v4276
    %v4278 = vtanh.pop %v4262
    %v4279 = vxor.u32 %v4264, 2147483648
    %v4280 = vmul.f32 %v4279, 1.442695
    %v4281 = vpow.pop %v4280
    %v4282 = vadd.f32 %v4281, 1.0
    %v4283 = vrcp.pop %v4282
    %v4284 = vmul.f32 1.0, %v4283
    %v4285 = vmul.f32 %v4277, %v3798
    %v4286 = vmul.f32 %v4271, %v4278
    %v4287 = vadd.f32 %v4285, %v4286
    %v4288 = vtanh.pop %v4287
    %v4289 = vmul.f32 %v4284, %v4288
    %4290 = vmatprep.subr.mxu0 %v508
    %4291 = vmatpush1.msra.mxu0 %v507
    %4292 = vmatprep.subr.mxu0 %v512
    %4293 = vmatpush1.msra.mxu0 %v511
    %4294 = vmatprep.subr.mxu0 %v516
    %4295 = vmatpush1.msra.mxu0 %v515
    %4296 = vmatprep.subr.mxu0 %v520
    %4297 = vmatpush1.msra.mxu0 %v519
    %4298 = vmatprep.subr.mxu0 %v524
    %4299 = vmatpush1.msra.mxu0 %v523
    %4300 = vmatprep.subr.mxu0 %v528
    %4301 = vmatpush1.msra.mxu0 %v527
    %4302 = vmatprep.subr.mxu0 %v532
    %4303 = vmatpush1.msra.mxu0 %v531
    %4304 = vmatprep.subr.mxu0 %v536
    %4305 = vmatpush1.msra.mxu0 %v535
    %4306 = vmatprep.subr.mxu0 %v540
    %4307 = vmatpush1.msra.mxu0 %v539
    %4308 = vmatprep.subr.mxu0 %v544
    %4309 = vmatpush1.msra.mxu0 %v543
    %4310 = vmatprep.subr.mxu0 %v548
    %4311 = vmatpush1.msra.mxu0 %v547
    %4312 = vmatprep.subr.mxu0 %v552
    %4313 = vmatpush1.msra.mxu0 %v551
    %4314 = vmatprep.subr.mxu0 %v556
    %4315 = vmatpush1.msra.mxu0 %v555
    %4316 = vmatprep.subr.mxu0 %v560
    %4317 = vmatpush1.msra.mxu0 %v559
    %4318 = vmatprep.subr.mxu0 %v564
    %4319 = vmatpush1.msra.mxu0 %v563
    %4320 = vmatprep.subr.mxu0 %v568
    %4321 = vmatpush1.msra.mxu0 %v567
    %4322 = vmatprep.subr.mxu0 %v572
    %4323 = vmatpush1.msra.mxu0 %v571
    %4324 = vmatprep.subr.mxu0 %v576
    %4325 = vmatpush1.msra.mxu0 %v575
    %4326 = vmatprep.subr.mxu0 %v580
    %4327 = vmatpush1.msra.mxu0 %v579
    %4328 = vmatprep.subr.mxu0 %v584
    %4329 = vmatpush1.msra.mxu0 %v583
    %4330 = vmatprep.subr.mxu0 %v588
    %4331 = vmatpush1.msra.mxu0 %v587
    %4332 = vmatprep.subr.mxu0 %v592
    %4333 = vmatpush1.msra.mxu0 %v591
    %4334 = vmatprep.subr.mxu0 %v596
    %4335 = vmatpush1.msra.mxu0 %v595
    %4336 = vmatprep.subr.mxu0 %v600
    %4337 = vmatpush1.msra.mxu0 %v599
    %4338 = vmatprep.subr.mxu0 %v604
    %4339 = vmatpush1.msra.mxu0 %v603
    %4340 = vmatprep.subr.mxu0 %v608
    %4341 = vmatpush1.msra.mxu0 %v607
    %4342 = vmatprep.subr.mxu0 %v612
    %4343 = vmatpush1.msra.mxu0 %v611
    %4344 = vmatprep.subr.mxu0 %v616
    %4345 = vmatpush1.msra.mxu0 %v615
    %4346 = vmatprep.subr.mxu0 %v620
    %4347 = vmatpush1.msra.mxu0 %v619
    %4348 = vmatprep.subr.mxu0 %v624
    %4349 = vmatpush1.msra.mxu0 %v623
    %4350 = vmatprep.subr.mxu0 %v628
    %4351 = vmatpush1.msra.mxu0 %v627
    %4352 = vmatprep.subr.mxu0 %v632
    %4353 = vmatpush1.msra.mxu0 %v631
    %4354 = vmatprep.mubr.f32.mxu0 %v3966
    %4355 = vmatmul.mubr.f32.gmra.mrb[0].mxu0 %v4289
    %v4356 = vpop.f32.mrb[0].mxu0
    %v4357 = vadd.f32 %v844, %v4356
    %v4358 = vpop.f32.mrb[0].mxu0
    %v4359 = vadd.f32 %v848, %v4358
    %4360 = vdwg.mxu0
    %4361 = vmatprep.subr.mxu0 %v510
    %4362 = vmatpush1.msra.mxu0 %v509
    %4363 = vmatprep.subr.mxu0 %v514
    %4364 = vmatpush1.msra.mxu0 %v513
    %4365 = vmatprep.subr.mxu0 %v518
    %4366 = vmatpush1.msra.mxu0 %v517
    %4367 = vmatprep.subr.mxu0 %v522
    %4368 = vmatpush1.msra.mxu0 %v521
    %4369 = vmatprep.subr.mxu0 %v526
    %4370 = vmatpush1.msra.mxu0 %v525
    %4371 = vmatprep.subr.mxu0 %v530
    %4372 = vmatpush1.msra.mxu0 %v529
    %4373 = vmatprep.subr.mxu0 %v534
    %4374 = vmatpush1.msra.mxu0 %v533
    %4375 = vmatprep.subr.mxu0 %v538
    %4376 = vmatpush1.msra.mxu0 %v537
    %4377 = vmatprep.subr.mxu0 %v542
    %4378 = vmatpush1.msra.mxu0 %v541
    %4379 = vmatprep.subr.mxu0 %v546
    %4380 = vmatpush1.msra.mxu0 %v545
    %4381 = vmatprep.subr.mxu0 %v550
    %4382 = vmatpush1.msra.mxu0 %v549
    %4383 = vmatprep.subr.mxu0 %v554
    %4384 = vmatpush1.msra.mxu0 %v553
    %4385 = vmatprep.subr.mxu0 %v558
    %4386 = vmatpush1.msra.mxu0 %v557
    %4387 = vmatprep.subr.mxu0 %v562
    %4388 = vmatpush1.msra.mxu0 %v561
    %4389 = vmatprep.subr.mxu0 %v566
    %4390 = vmatpush1.msra.mxu0 %v565
    %4391 = vmatprep.subr.mxu0 %v570
    %4392 = vmatpush1.msra.mxu0 %v569
    %4393 = vmatprep.subr.mxu0 %v574
    %4394 = vmatpush1.msra.mxu0 %v573
    %4395 = vmatprep.subr.mxu0 %v578
    %4396 = vmatpush1.msra.mxu0 %v577
    %4397 = vmatprep.subr.mxu0 %v582
    %4398 = vmatpush1.msra.mxu0 %v581
    %4399 = vmatprep.subr.mxu0 %v586
    %4400 = vmatpush1.msra.mxu0 %v585
    %4401 = vmatprep.subr.mxu0 %v590
    %4402 = vmatpush1.msra.mxu0 %v589
    %4403 = vmatprep.subr.mxu0 %v594
    %4404 = vmatpush1.msra.mxu0 %v593
    %4405 = vmatprep.subr.mxu0 %v598
    %4406 = vmatpush1.msra.mxu0 %v597
    %4407 = vmatprep.subr.mxu0 %v602
    %4408 = vmatpush1.msra.mxu0 %v601
    %4409 = vmatprep.subr.mxu0 %v606
    %4410 = vmatpush1.msra.mxu0 %v605
    %4411 = vmatprep.subr.mxu0 %v610
    %4412 = vmatpush1.msra.mxu0 %v609
    %4413 = vmatprep.subr.mxu0 %v614
    %4414 = vmatpush1.msra.mxu0 %v613
    %4415 = vmatprep.subr.mxu0 %v618
    %4416 = vmatpush1.msra.mxu0 %v617
    %4417 = vmatprep.subr.mxu0 %v622
    %4418 = vmatpush1.msra.mxu0 %v621
    %4419 = vmatprep.subr.mxu0 %v626
    %4420 = vmatpush1.msra.mxu0 %v625
    %4421 = vmatprep.subr.mxu0 %v630
    %4422 = vmatpush1.msra.mxu0 %v629
    %4423 = vmatprep.subr.mxu0 %v634
    %4424 = vmatpush1.msra.mxu0 %v633
    %4425 = vmatprep.mubr.f32.mxu0 %v3966
    %4426 = vmatmul.mubr.f32.gmra.mrb[0].mxu0 %v4289
    %v4427 = vpop.f32.mrb[0].mxu0
    %v4428 = vadd.f32 %v852, %v4427
    %v4429 = vpop.f32.mrb[0].mxu0
    %v4430 = vadd.f32 %v856, %v4429
    %4431 = vdwg.mxu0
    %v4432 = vxor.u32 %v4357, 2147483648
    %v4433 = vmul.f32 %v4432, 1.442695
    %v4434 = vpow.pop %v4433
    %v4435 = vadd.f32 %v4434, 1.0
    %v4436 = vrcp.pop %v4435
    %v4437 = vmul.f32 1.0, %v4436
    %v4438 = vxor.u32 %v4359, 2147483648
    %v4439 = vmul.f32 %v4438, 1.442695
    %v4440 = vpow.pop %v4439
    %v4441 = vadd.f32 %v4440, 1.0
    %v4442 = vrcp.pop %v4441
    %v4443 = vmul.f32 1.0, %v4442
    %v4444 = vtanh.pop %v4428
    %v4445 = vxor.u32 %v4430, 2147483648
    %v4446 = vmul.f32 %v4445, 1.442695
    %v4447 = vpow.pop %v4446
    %v4448 = vadd.f32 %v4447, 1.0
    %v4449 = vrcp.pop %v4448
    %v4450 = vmul.f32 1.0, %v4449
    %v4451 = vmul.f32 %v4443, %v3964
    %v4452 = vmul.f32 %v4437, %v4444
    %v4453 = vadd.f32 %v4451, %v4452
    %v4454 = vtanh.pop %v4453
    %v4455 = vmul.f32 %v4450, %v4454
    %4456 = vmatprep.subr.mxu0 0.0
    %4457 = vmatpush1.msra.mxu0 %v635
    %4458 = vmatprep.subr.mxu0 0.0
    %4459 = vmatpush1.msra.mxu0 %v636
    %4460 = vmatprep.subr.mxu0 0.0
    %4461 = vmatpush1.msra.mxu0 %v637
    %4462 = vmatprep.subr.mxu0 0.0
    %4463 = vmatpush1.msra.mxu0 %v638
    %4464 = vmatprep.subr.mxu0 0.0
    %4465 = vmatpush1.msra.mxu0 %v639
    %4466 = vmatprep.subr.mxu0 0.0
    %4467 = vmatpush1.msra.mxu0 %v640
    %4468 = vmatprep.subr.mxu0 0.0
    %4469 = vmatpush1.msra.mxu0 %v641
    %4470 = vmatprep.subr.mxu0 0.0
    %4471 = vmatpush1.msra.mxu0 %v642
    %4472 = vmatprep.subr.mxu0 0.0
    %4473 = vmatpush1.msra.mxu0 %v643
    %4474 = vmatprep.subr.mxu0 0.0
    %4475 = vmatpush1.msra.mxu0 %v644
    %4476 = vmatprep.subr.mxu0 0.0
    %4477 = vmatpush1.msra.mxu0 %v645
    %4478 = vmatprep.subr.mxu0 0.0
    %4479 = vmatpush1.msra.mxu0 %v646
    %4480 = vmatprep.subr.mxu0 0.0
    %4481 = vmatpush1.msra.mxu0 %v647
    %4482 = vmatprep.subr.mxu0 0.0
    %4483 = vmatpush1.msra.mxu0 %v648
    %4484 = vmatprep.subr.mxu0 0.0
    %4485 = vmatpush1.msra.mxu0 %v649
    %4486 = vmatprep.subr.mxu0 0.0
    %4487 = vmatpush1.msra.mxu0 %v650
    %4488 = vmatprep.subr.mxu0 0.0
    %4489 = vmatpush1.msra.mxu0 0.0
    %4490 = vmatprep.subr.mxu0 0.0
    %4491 = vmatpush1.msra.mxu0 0.0
    %4492 = vmatprep.subr.mxu0 0.0
    %4493 = vmatpush1.msra.mxu0 0.0
    %4494 = vmatprep.subr.mxu0 0.0
    %4495 = vmatpush1.msra.mxu0 0.0
    %4496 = vmatprep.subr.mxu0 0.0
    %4497 = vmatpush1.msra.mxu0 0.0
    %4498 = vmatprep.subr.mxu0 0.0
    %4499 = vmatpush1.msra.mxu0 0.0
    %4500 = vmatprep.subr.mxu0 0.0
    %4501 = vmatpush1.msra.mxu0 0.0
    %4502 = vmatprep.subr.mxu0 0.0
    %4503 = vmatpush1.msra.mxu0 0.0
    %4504 = vmatprep.subr.mxu0 0.0
    %4505 = vmatpush1.msra.mxu0 0.0
    %4506 = vmatprep.subr.mxu0 0.0
    %4507 = vmatpush1.msra.mxu0 0.0
    %4508 = vmatprep.subr.mxu0 0.0
    %4509 = vmatpush1.msra.mxu0 0.0
    %4510 = vmatprep.subr.mxu0 0.0
    %4511 = vmatpush1.msra.mxu0 0.0
    %4512 = vmatprep.subr.mxu0 0.0
    %4513 = vmatpush1.msra.mxu0 0.0
    %4514 = vmatprep.subr.mxu0 0.0
    %4515 = vmatpush1.msra.mxu0 0.0
    %4516 = vmatprep.subr.mxu0 0.0
    %4517 = vmatpush1.msra.mxu0 0.0
    %4518 = vmatprep.subr.mxu0 0.0
    %4519 = vmatpush1.msra.mxu0 0.0
    %4520 = vmatprep.mubr.f32.mxu0 0.0
    %4521 = vmatmul.mubr.f32.gmra.mrb[0].mxu0 %v4455
    %v4522 = vpop.f32.mrb[0].mxu0
    %v4523 = vadd.f32 %v1031, %v4522
    %v4524 = vpop.f32.mrb[0].mxu0
    %4525 = vdwg.mxu0
    %v4527 = vcombine.high %v4523, %v4523
    %v4529 = vunpack.c.l.s4 1966171168
    %v4530 = vunpack.c.0.s8 %v4529
    %v4531 = vlaneseq
    %v4532 = vshrl.u32 %v4531, 7
    %v4533 = vsub.s32 %v4530, %v4532
    %v4534 = vrot.slane %v4523, %v4533
    %v4536 = vunpack.c.l.s4 1966171168
    %v4537 = vunpack.c.0.s8 %v4536
    %v4538 = vlaneseq
    %v4539 = vshrl.u32 %v4538, 7
    %v4540 = vsub.s32 %v4537, %v4539
    %v4541 = vrot.slane %v4527, %v4540
    %v4542 = vcombine.high %v4534, %v4534
    %v4543 = vcombine.high %v4541, %v4541
    %v4545 = vunpack.c.l.s4 1966171168
    %v4546 = vunpack.c.0.s8 %v4545
    %v4547 = vlaneseq
    %v4548 = vshrl.u32 %v4547, 7
    %v4549 = vsub.s32 %v4546, %v4548
    %v4550 = vrot.slane %v4534, %v4549
    %v4552 = vunpack.c.l.s4 1966171168
    %v4553 = vunpack.c.0.s8 %v4552
    %v4554 = vlaneseq
    %v4555 = vshrl.u32 %v4554, 7
    %v4556 = vsub.s32 %v4553, %v4555
    %v4557 = vrot.slane %v4541, %v4556
    %v4559 = vunpack.c.l.s4 1966171168
    %v4560 = vunpack.c.0.s8 %v4559
    %v4561 = vlaneseq
    %v4562 = vshrl.u32 %v4561, 7
    %v4563 = vsub.s32 %v4560, %v4562
    %v4564 = vrot.slane %v4542, %v4563
    %v4566 = vunpack.c.l.s4 1966171168
    %v4567 = vunpack.c.0.s8 %v4566
    %v4568 = vlaneseq
    %v4569 = vshrl.u32 %v4568, 7
    %v4570 = vsub.s32 %v4567, %v4569
    %v4571 = vrot.slane %v4543, %v4570
    %v4572 = vcombine.high %v4550, %v4550
    %v4573 = vcombine.high %v4557, %v4557
    %v4574 = vcombine.high %v4564, %v4564
    %v4575 = vcombine.high %v4571, %v4571
    %4584 = vst [vmem:[%s7 + $0x7] sm:$0x1] %v4550
    %4585 = vst [vmem:[%s7 + $0xf] sm:$0x1] %v4564
    %4586 = vst [vmem:[%s7 + $0x17] sm:$0x1] %v4572
    %4587 = vst [vmem:[%s7 + $0x1f] sm:$0x1] %v4574
    %4588 = vst [vmem:[%s7 + $0x27] sm:$0x1] %v4557
    %4589 = vst [vmem:[%s7 + $0x2f] sm:$0x1] %v4571
    %4590 = vst [vmem:[%s7 + $0x37] sm:$0x1] %v4573
    %4591 = vst [vmem:[%s7 + $0x3f] sm:$0x1] %v4575
    // Predicated region
    $region50: #{question_generator_forward.1} parent=1 // pred_check
      _
    $region51: #{question_generator_forward.1} parent=1 // pred_check_branch
      %4593 = sbr.rel (0) target = $region53
    $region52: #{question_generator_forward.1} parent=1 // pred_region
      _
    $region53: #{question_generator_forward.1} parent=1 // pred_fallthru
      _
    // Predicated region
    $region54: #{question_generator_forward.1} parent=1 // pred_check
      _
    $region55: #{question_generator_forward.1} parent=1 // pred_check_branch
      %4595 = sbr.rel (0) target = $region57
    $region56: #{question_generator_forward.1} parent=1 // pred_region
      _
    $region57: #{question_generator_forward.1} parent=1 // pred_fallthru
      _
    %4596 = vsyncpa [#allocation3], 1
    %4597 = vsyncpa [#allocation5], 1
    %4598 = vsyncpa [#allocation8], 1

</llo_original>
